<compile_context>
chip_gen: v7x
topology: tpu7x:2x2x1
jax: 0.10.0
libtpu: 0.0.40
codegen_flags: <defaults>
</compile_context>

<pallas_src>
import functools
import math

import jax
import jax.numpy as jnp
from jax.experimental import pallas as pl
from jax.experimental.pallas import tpu as pltpu


# ----------------------------- in-kernel helpers -----------------------------

def _bf16_dot(a, b):
    """a @ b with bf16 MXU inputs and f32 accumulation."""
    return jnp.dot(a.astype(jnp.bfloat16), b.astype(jnp.bfloat16),
                   preferred_element_type=jnp.float32)


def _bf16_dot_nt(a, b):
    """a @ b.T (contract last dims of both) without an explicit transpose."""
    return jax.lax.dot_general(
        a.astype(jnp.bfloat16), b.astype(jnp.bfloat16),
        dimension_numbers=(((1,), (1,)), ((), ())),
        preferred_element_type=jnp.float32)


def _layernorm(x, gamma, beta, eps):
    mu = jnp.mean(x, axis=-1, keepdims=True)
    xc = x - mu
    var = jnp.mean(xc * xc, axis=-1, keepdims=True)
    return xc * jax.lax.rsqrt(var + eps) * gamma + beta


# ----------------------------- Pallas kernels -----------------------------

def _embed_kernel(tok_ref, w_ref, b_ref, pos_ref, o_ref):
    # tok_ref: (1, T, token_d); w_ref: (token_d, D); b_ref: (1, D); pos_ref: (T, D)
    y = _bf16_dot(tok_ref[0], w_ref[...])
    o_ref[0] = y + b_ref[...] + pos_ref[...]


def _encoder_block_kernel(x_ref, ln1_g_ref, ln1_b_ref, wqkv_ref, bqkv_ref,
                          wo_ref, bo_ref, ln2_g_ref, ln2_b_ref,
                          w1_ref, b1_ref, w2_ref, b2_ref, o_ref,
                          *, head_num, scale, eps):
    x = x_ref[0]                                   # (T, D) float32
    T, D = x.shape
    dh = D // head_num

    # ---- pre-norm multi-head attention ----
    h = _layernorm(x, ln1_g_ref[...], ln1_b_ref[...], eps)
    qkv = _bf16_dot(h, wqkv_ref[...]) + bqkv_ref[...]          # (T, 3D)
    wo = wo_ref[...]                                           # (D, D)

    attn_proj = jnp.zeros((T, D), jnp.float32)
    for hd in range(head_num):                                 # static unroll
        lo = hd * dh
        qh = qkv[:, lo:lo + dh]                                # (T, dh)
        kh = qkv[:, D + lo:D + lo + dh]
        vh = qkv[:, 2 * D + lo:2 * D + lo + dh]
        s = _bf16_dot_nt(qh, kh) * scale                       # (T, T)
        s = s - jnp.max(s, axis=-1, keepdims=True)
        p = jnp.exp(s)
        p = p * pl.reciprocal(jnp.sum(p, axis=-1, keepdims=True), approx=True)
        oh = _bf16_dot(p, vh)                                  # (T, dh)
        # out-projection accumulated per head: attn @ Wo == sum_h oh @ Wo[rows_h]
        attn_proj = attn_proj + _bf16_dot(oh, wo[lo:lo + dh, :])
    x = x + attn_proj + bo_ref[...]

    # ---- pre-norm MLP ----
    h2 = _layernorm(x, ln2_g_ref[...], ln2_b_ref[...], eps)
    m = _bf16_dot(h2, w1_ref[...]) + b1_ref[...]
    m = jax.nn.gelu(m, approximate=True)
    m = _bf16_dot(m, w2_ref[...]) + b2_ref[...]
    o_ref[0] = x + m


# ----------------------------- wrappers -----------------------------

def _const_spec(shape):
    return pl.BlockSpec(shape, lambda b, _n=len(shape): (0,) * _n)


def pallas_embed(tokens, emb_w, emb_b, pos_emb):
    """tokens: (B, T, token_d) -> (B, T, D); one batch element per grid step."""
    B, T, token_d = tokens.shape
    D = emb_w.shape[1]
    return pl.pallas_call(
        _embed_kernel,
        out_shape=jax.ShapeDtypeStruct((B, T, D), jnp.float32),
        grid=(B,),
        in_specs=[
            pl.BlockSpec((1, T, token_d), lambda b: (b, 0, 0)),
            _const_spec((token_d, D)),
            _const_spec((1, D)),
            _const_spec((T, D)),
        ],
        out_specs=pl.BlockSpec((1, T, D), lambda b: (b, 0, 0)),
        compiler_params=pltpu.CompilerParams(dimension_semantics=("parallel",)),
    )(tokens, emb_w, emb_b.reshape(1, D), pos_emb)


def pallas_encoder_block(x, p, head_num, eps=1e-5):
    """Fused pre-norm transformer block; x: (B, T, D) -> (B, T, D)."""
    B, T, D = x.shape
    dh = D // head_num
    scale = 1.0 / math.sqrt(dh)          # Python float -> no captured constant
    mlp_d = p["w1"].shape[1]

    kernel = functools.partial(_encoder_block_kernel,
                               head_num=head_num, scale=scale, eps=eps)
    return pl.pallas_call(
        kernel,
        out_shape=jax.ShapeDtypeStruct((B, T, D), jnp.float32),
        grid=(B,),
        in_specs=[
            pl.BlockSpec((1, T, D), lambda b: (b, 0, 0)),   # x
            _const_spec((1, D)), _const_spec((1, D)),       # ln1 gamma/beta
            _const_spec((D, 3 * D)), _const_spec((1, 3 * D)),  # wqkv, bqkv
            _const_spec((D, D)), _const_spec((1, D)),       # wo, bo
            _const_spec((1, D)), _const_spec((1, D)),       # ln2 gamma/beta
            _const_spec((D, mlp_d)), _const_spec((1, mlp_d)),  # w1, b1
            _const_spec((mlp_d, D)), _const_spec((1, D)),   # w2, b2
        ],
        out_specs=pl.BlockSpec((1, T, D), lambda b: (b, 0, 0)),
        compiler_params=pltpu.CompilerParams(dimension_semantics=("parallel",)),
    )(x,
      p["ln1_g"].reshape(1, D), p["ln1_b"].reshape(1, D),
      p["wqkv"], p["bqkv"].reshape(1, 3 * D),
      p["wo"], p["bo"].reshape(1, D),
      p["ln2_g"].reshape(1, D), p["ln2_b"].reshape(1, D),
      p["w1"], p["b1"].reshape(1, mlp_d),
      p["w2"], p["b2"].reshape(1, D))


# ----------------------------- model glue -----------------------------

def patchify(img, patch_d):
    """einops: 'b c (px x) (py y) -> b (x y) (px py c)' with px=py=patch_d."""
    B, C, H, W = img.shape
    Xs, Ys = H // patch_d, W // patch_d
    t = img.reshape(B, C, patch_d, Xs, patch_d, Ys)       # (b, c, px, x, py, y)
    t = jnp.transpose(t, (0, 3, 5, 2, 4, 1))              # (b, x, y, px, py, c)
    return t.reshape(B, Xs * Ys, patch_d * patch_d * C)


def vit_forward(params, img, patch_d, head_num):
    tokens = patchify(img, patch_d)                       # (B, T, token_d)
    x = pallas_embed(tokens, params["emb_w"], params["emb_b"], params["pos_emb"])
    # dropout: identity (eval mode)
    for blk in params["blocks"]:
        x = pallas_encoder_block(x, blk, head_num)
    return x


# ----------------------------- param init -----------------------------

def _dense_init(key, fan_in, fan_out):
    kw, _ = jax.random.split(key)
    scale = math.sqrt(2.0 / (fan_in + fan_out))           # xavier-normal-ish
    w = scale * jax.random.normal(kw, (fan_in, fan_out), jnp.float32)
    b = jnp.zeros((fan_out,), jnp.float32)
    return w, b


def init_vit_params(key, *, block_size, mlp_d, head_num, emb_d,
                    in_channels, img_x, img_y, patch_d):
    token_d = in_channels * patch_d ** 2
    token_num = (img_y // patch_d) * (img_x // patch_d)
    keys = jax.random.split(key, 2 + block_size)
    params = {}
    params["pos_emb"] = (math.sqrt(2.0 / (token_num + emb_d))
                         * jax.random.normal(keys[0], (token_num, emb_d), jnp.float32))
    params["emb_w"], params["emb_b"] = _dense_init(keys[1], token_d, emb_d)
    blocks = []
    for l in range(block_size):
        ks = jax.random.split(keys[2 + l], 6)
        wq, bq = _dense_init(ks[0], emb_d, emb_d)
        wk, bk = _dense_init(ks[1], emb_d, emb_d)
        wv, bv = _dense_init(ks[2], emb_d, emb_d)
        blk = {
            "wqkv": jnp.concatenate([wq, wk, wv], axis=1),   # (D, 3D) fused QKV
            "bqkv": jnp.concatenate([bq, bk, bv], axis=0),   # (3D,)
        }
        blk["wo"], blk["bo"] = _dense_init(ks[3], emb_d, emb_d)
        blk["w1"], blk["b1"] = _dense_init(ks[4], emb_d, mlp_d)
        blk["w2"], blk["b2"] = _dense_init(ks[5], mlp_d, emb_d)
        blk["ln1_g"] = jnp.ones((emb_d,), jnp.float32)
        blk["ln1_b"] = jnp.zeros((emb_d,), jnp.float32)
        blk["ln2_g"] = jnp.ones((emb_d,), jnp.float32)
        blk["ln2_b"] = jnp.zeros((emb_d,), jnp.float32)
        blocks.append(blk)
    params["blocks"] = blocks
    return params


# ----------------------------- main -----------------------------

if __name__ == "__main__":
    batch = 2
    in_channels = 4
    img_x = img_y = 16
    patch_d = 4
    emb_d = 32
    head_num = 4
    mlp_d = 64
    block_size = 2          # number of encoder layers
    dropout = 0.0           # eval / identity

    key = jax.random.PRNGKey(0)
    k_img, k_par = jax.random.split(key)

    img = jax.random.normal(k_img, (batch, in_channels, img_x, img_y), jnp.float32)
    params = init_vit_params(
        k_par, block_size=block_size, mlp_d=mlp_d, head_num=head_num,
        emb_d=emb_d, in_channels=in_channels, img_x=img_x, img_y=img_y,
        patch_d=patch_d)

    fwd = jax.jit(lambda p, x: vit_forward(p, x, patch_d, head_num))
    out = jax.block_until_ready(fwd(params, img))

    token_num = (img_y // patch_d) * (img_x // patch_d)
    assert out.shape == (batch, token_num, emb_d), out.shape
    assert bool(jnp.all(jnp.isfinite(out)))
    print("KERNEL_OK")
</pallas_src>

<mosaic_0001>
module attributes {stable_mosaic.version = 11 : i64} {
  func.func @_embed_kernel(%arg0: i32, %arg1: memref<1x16x64xf32, #tpu.memory_space<vmem>>, %arg2: memref<64x32xf32, #tpu.memory_space<vmem>>, %arg3: memref<1x32xf32, #tpu.memory_space<vmem>>, %arg4: memref<16x32xf32, #tpu.memory_space<vmem>>, %arg5: memref<1x16x32xf32, #tpu.memory_space<vmem>>) attributes {dimension_semantics = [#tpu.dimension_semantics<parallel>], iteration_bounds = array<i64: 2>, scalar_prefetch = 0 : i64, scratch_operands = 0 : i64, tpu.core_type = #tpu.core_type<tc>, window_params = [{transform_indices = @transform_0, window_bounds = array<i64: 1, 16, 64>}, {pipeline_mode = #tpu.pipeline_mode<synchronous>, transform_indices = @transform_1, window_bounds = array<i64: 64, 32>}, {pipeline_mode = #tpu.pipeline_mode<synchronous>, transform_indices = @transform_2, window_bounds = array<i64: 1, 32>}, {pipeline_mode = #tpu.pipeline_mode<synchronous>, transform_indices = @transform_3, window_bounds = array<i64: 16, 32>}, {transform_indices = @transform_4, window_bounds = array<i64: 1, 16, 32>}]} {
    %c0 = arith.constant 0 : index
    %c0_0 = arith.constant 0 : index
    %c0_1 = arith.constant 0 : index
    %0 = vector.load %arg1[%c0, %c0_0, %c0_1] : memref<1x16x64xf32, #tpu.memory_space<vmem>>, vector<1x16x64xf32>
    %1 = vector.shape_cast %0 : vector<1x16x64xf32> to vector<16x64xf32>
    %c0_2 = arith.constant 0 : index
    %c0_3 = arith.constant 0 : index
    %2 = vector.load %arg2[%c0_2, %c0_3] : memref<64x32xf32, #tpu.memory_space<vmem>>, vector<64x32xf32>
    %3 = arith.truncf %1 : vector<16x64xf32> to vector<16x64xbf16>
    %4 = arith.truncf %2 : vector<64x32xf32> to vector<64x32xbf16>
    %cst = arith.constant dense<0.000000e+00> : vector<16x32xf32>
    %5 = tpu.matmul %3, %4, %cst {dimension_numbers = #tpu.dot_dimension_numbers<[1], [0], [0], [1], [0, 0, 1, 1], [], []>} : vector<16x64xbf16>, vector<64x32xbf16>, vector<16x32xf32> -> vector<16x32xf32>
    %c0_4 = arith.constant 0 : index
    %c0_5 = arith.constant 0 : index
    %6 = vector.load %arg3[%c0_4, %c0_5] : memref<1x32xf32, #tpu.memory_space<vmem>>, vector<1x32xf32>
    %7 = vector.broadcast %6 : vector<1x32xf32> to vector<16x32xf32>
    %8 = arith.addf %5, %7 : vector<16x32xf32>
    %c0_6 = arith.constant 0 : index
    %c0_7 = arith.constant 0 : index
    %9 = vector.load %arg4[%c0_6, %c0_7] : memref<16x32xf32, #tpu.memory_space<vmem>>, vector<16x32xf32>
    %10 = arith.addf %8, %9 : vector<16x32xf32>
    %c0_8 = arith.constant 0 : index
    %c0_9 = arith.constant 0 : index
    %c0_10 = arith.constant 0 : index
    %11 = vector.load %arg5[%c0_8, %c0_9, %c0_10] : memref<1x16x32xf32, #tpu.memory_space<vmem>>, vector<1x16x32xf32>
    %12 = vector.shape_cast %11 : vector<1x16x32xf32> to vector<16x32xf32>
    %13 = vector.shape_cast %10 : vector<16x32xf32> to vector<1x16x32xf32>
    tpu.vector_store %arg5[%c0_8, %c0_9, %c0_10], %13 {strides = array<i32>} : memref<1x16x32xf32, #tpu.memory_space<vmem>>, vector<1x16x32xf32>,
    return
  }
  func.func @transform_0(%arg0: i32) -> (i32, i32, i32) {
    %c0_i32 = arith.constant 0 : i32
    %c0_i32_0 = arith.constant 0 : i32
    %c0_i32_1 = arith.constant 0 : i32
    return %arg0, %c0_i32, %c0_i32_0 : i32, i32, i32
  }
  func.func @transform_1(%arg0: i32) -> (i32, i32) {
    %c0_i32 = arith.constant 0 : i32
    %c0_i32_0 = arith.constant 0 : i32
    %c0_i32_1 = arith.constant 0 : i32
    return %c0_i32, %c0_i32_0 : i32, i32
  }
  func.func @transform_2(%arg0: i32) -> (i32, i32) {
    %c0_i32 = arith.constant 0 : i32
    %c0_i32_0 = arith.constant 0 : i32
    %c0_i32_1 = arith.constant 0 : i32
    return %c0_i32, %c0_i32_0 : i32, i32
  }
  func.func @transform_3(%arg0: i32) -> (i32, i32) {
    %c0_i32 = arith.constant 0 : i32
    %c0_i32_0 = arith.constant 0 : i32
    %c0_i32_1 = arith.constant 0 : i32
    return %c0_i32, %c0_i32_0 : i32, i32
  }
  func.func @transform_4(%arg0: i32) -> (i32, i32, i32) {
    %c0_i32 = arith.constant 0 : i32
    %c0_i32_0 = arith.constant 0 : i32
    %c0_i32_1 = arith.constant 0 : i32
    return %arg0, %c0_i32, %c0_i32_0 : i32, i32, i32
  }
}

module attributes {stable_mosaic.version = 11 : i64} {
  func.func @_encoder_block_kernel(%arg0: i32, %arg1: memref<1x16x32xf32, #tpu.memory_space<vmem>>, %arg2: memref<1x32xf32, #tpu.memory_space<vmem>>, %arg3: memref<1x32xf32, #tpu.memory_space<vmem>>, %arg4: memref<32x96xf32, #tpu.memory_space<vmem>>, %arg5: memref<1x96xf32, #tpu.memory_space<vmem>>, %arg6: memref<32x32xf32, #tpu.memory_space<vmem>>, %arg7: memref<1x32xf32, #tpu.memory_space<vmem>>, %arg8: memref<1x32xf32, #tpu.memory_space<vmem>>, %arg9: memref<1x32xf32, #tpu.memory_space<vmem>>, %arg10: memref<32x64xf32, #tpu.memory_space<vmem>>, %arg11: memref<1x64xf32, #tpu.memory_space<vmem>>, %arg12: memref<64x32xf32, #tpu.memory_space<vmem>>, %arg13: memref<1x32xf32, #tpu.memory_space<vmem>>, %arg14: memref<1x16x32xf32, #tpu.memory_space<vmem>>) attributes {dimension_semantics = [#tpu.dimension_semantics<parallel>], iteration_bounds = array<i64: 2>, scalar_prefetch = 0 : i64, scratch_operands = 0 : i64, tpu.core_type = #tpu.core_type<tc>, window_params = [{transform_indices = @transform_0, window_bounds = array<i64: 1, 16, 32>}, {pipeline_mode = #tpu.pipeline_mode<synchronous>, transform_indices = @transform_1, window_bounds = array<i64: 1, 32>}, {pipeline_mode = #tpu.pipeline_mode<synchronous>, transform_indices = @transform_2, window_bounds = array<i64: 1, 32>}, {pipeline_mode = #tpu.pipeline_mode<synchronous>, transform_indices = @transform_3, window_bounds = array<i64: 32, 96>}, {pipeline_mode = #tpu.pipeline_mode<synchronous>, transform_indices = @transform_4, window_bounds = array<i64: 1, 96>}, {pipeline_mode = #tpu.pipeline_mode<synchronous>, transform_indices = @transform_5, window_bounds = array<i64: 32, 32>}, {pipeline_mode = #tpu.pipeline_mode<synchronous>, transform_indices = @transform_6, window_bounds = array<i64: 1, 32>}, {pipeline_mode = #tpu.pipeline_mode<synchronous>, transform_indices = @transform_7, window_bounds = array<i64: 1, 32>}, {pipeline_mode = #tpu.pipeline_mode<synchronous>, transform_indices = @transform_8, window_bounds = array<i64: 1, 32>}, {pipeline_mode = #tpu.pipeline_mode<synchronous>, transform_indices = @transform_9, window_bounds = array<i64: 32, 64>}, {pipeline_mode = #tpu.pipeline_mode<synchronous>, transform_indices = @transform_10, window_bounds = array<i64: 1, 64>}, {pipeline_mode = #tpu.pipeline_mode<synchronous>, transform_indices = @transform_11, window_bounds = array<i64: 64, 32>}, {pipeline_mode = #tpu.pipeline_mode<synchronous>, transform_indices = @transform_12, window_bounds = array<i64: 1, 32>}, {transform_indices = @transform_13, window_bounds = array<i64: 1, 16, 32>}]} {
    %c0 = arith.constant 0 : index
    %c0_0 = arith.constant 0 : index
    %c0_1 = arith.constant 0 : index
    %0 = vector.load %arg1[%c0, %c0_0, %c0_1] : memref<1x16x32xf32, #tpu.memory_space<vmem>>, vector<1x16x32xf32>
    %1 = vector.shape_cast %0 : vector<1x16x32xf32> to vector<16x32xf32>
    %c0_2 = arith.constant 0 : index
    %c0_3 = arith.constant 0 : index
    %2 = vector.load %arg2[%c0_2, %c0_3] : memref<1x32xf32, #tpu.memory_space<vmem>>, vector<1x32xf32>
    %c0_4 = arith.constant 0 : index
    %c0_5 = arith.constant 0 : index
    %3 = vector.load %arg3[%c0_4, %c0_5] : memref<1x32xf32, #tpu.memory_space<vmem>>, vector<1x32xf32>
    %cst = arith.constant dense<0.000000e+00> : vector<16xf32>
    %4 = vector.multi_reduction <add>, %1, %cst [1] : vector<16x32xf32> to vector<16xf32>
    %5 = vector.shape_cast %4 : vector<16xf32> to vector<16x1xf32>
    %cst_6 = arith.constant 3.200000e+01 : f32
    %6 = vector.broadcast %cst_6 : f32 to vector<16x1xf32>
    %7 = arith.divf %5, %6 : vector<16x1xf32>
    %8 = vector.broadcast %7 : vector<16x1xf32> to vector<16x32xf32>
    %9 = arith.subf %1, %8 : vector<16x32xf32>
    %10 = arith.mulf %9, %9 : vector<16x32xf32>
    %cst_7 = arith.constant dense<0.000000e+00> : vector<16xf32>
    %11 = vector.multi_reduction <add>, %10, %cst_7 [1] : vector<16x32xf32> to vector<16xf32>
    %12 = vector.shape_cast %11 : vector<16xf32> to vector<16x1xf32>
    %cst_8 = arith.constant 3.200000e+01 : f32
    %13 = vector.broadcast %cst_8 : f32 to vector<16x1xf32>
    %14 = arith.divf %12, %13 : vector<16x1xf32>
    %cst_9 = arith.constant 9.99999974E-6 : f32
    %15 = vector.broadcast %cst_9 : f32 to vector<16x1xf32>
    %16 = arith.addf %14, %15 : vector<16x1xf32>
    %17 = math.rsqrt %16 : vector<16x1xf32>
    %18 = vector.broadcast %17 : vector<16x1xf32> to vector<16x32xf32>
    %19 = arith.mulf %9, %18 : vector<16x32xf32>
    %20 = vector.broadcast %2 : vector<1x32xf32> to vector<16x32xf32>
    %21 = arith.mulf %19, %20 : vector<16x32xf32>
    %22 = vector.broadcast %3 : vector<1x32xf32> to vector<16x32xf32>
    %23 = arith.addf %21, %22 : vector<16x32xf32>
    %c0_10 = arith.constant 0 : index
    %c0_11 = arith.constant 0 : index
    %24 = vector.load %arg4[%c0_10, %c0_11] : memref<32x96xf32, #tpu.memory_space<vmem>>, vector<32x96xf32>
    %25 = arith.truncf %23 : vector<16x32xf32> to vector<16x32xbf16>
    %26 = arith.truncf %24 : vector<32x96xf32> to vector<32x96xbf16>
    %cst_12 = arith.constant dense<0.000000e+00> : vector<16x96xf32>
    %27 = tpu.matmul %25, %26, %cst_12 {dimension_numbers = #tpu.dot_dimension_numbers<[1], [0], [0], [1], [0, 0, 1, 1], [], []>} : vector<16x32xbf16>, vector<32x96xbf16>, vector<16x96xf32> -> vector<16x96xf32>
    %c0_13 = arith.constant 0 : index
    %c0_14 = arith.constant 0 : index
    %28 = vector.load %arg5[%c0_13, %c0_14] : memref<1x96xf32, #tpu.memory_space<vmem>>, vector<1x96xf32>
    %29 = vector.broadcast %28 : vector<1x96xf32> to vector<16x96xf32>
    %30 = arith.addf %27, %29 : vector<16x96xf32>
    %c0_15 = arith.constant 0 : index
    %c0_16 = arith.constant 0 : index
    %31 = vector.load %arg6[%c0_15, %c0_16] : memref<32x32xf32, #tpu.memory_space<vmem>>, vector<32x32xf32>
    %cst_17 = arith.constant 0.000000e+00 : f32
    %32 = vector.broadcast %cst_17 : f32 to vector<16x32xf32>
    %33 = vector.extract_strided_slice %30 {offsets = [0, 0], sizes = [16, 8], strides = [1, 1]} : vector<16x96xf32> to vector<16x8xf32>
    %34 = vector.extract_strided_slice %30 {offsets = [0, 32], sizes = [16, 8], strides = [1, 1]} : vector<16x96xf32> to vector<16x8xf32>
    %35 = vector.extract_strided_slice %30 {offsets = [0, 64], sizes = [16, 8], strides = [1, 1]} : vector<16x96xf32> to vector<16x8xf32>
    %36 = arith.truncf %33 : vector<16x8xf32> to vector<16x8xbf16>
    %37 = arith.truncf %34 : vector<16x8xf32> to vector<16x8xbf16>
    %cst_18 = arith.constant dense<0.000000e+00> : vector<16x16xf32>
    %38 = tpu.matmul %36, %37, %cst_18 {dimension_numbers = #tpu.dot_dimension_numbers<[1], [1], [0], [0], [0, 0, 1, 0], [], []>} : vector<16x8xbf16>, vector<16x8xbf16>, vector<16x16xf32> -> vector<16x16xf32>
    %cst_19 = arith.constant 0.353553385 : f32
    %39 = vector.broadcast %cst_19 : f32 to vector<16x16xf32>
    %40 = arith.mulf %38, %39 : vector<16x16xf32>
    %cst_20 = arith.constant dense<0xFF800000> : vector<16xf32>
    %41 = vector.multi_reduction <maximumf>, %40, %cst_20 [1] : vector<16x16xf32> to vector<16xf32>
    %42 = vector.shape_cast %41 : vector<16xf32> to vector<16x1xf32>
    %43 = vector.broadcast %42 : vector<16x1xf32> to vector<16x16xf32>
    %44 = arith.subf %40, %43 : vector<16x16xf32>
    %45 = math.exp %44 : vector<16x16xf32>
    %cst_21 = arith.constant dense<0.000000e+00> : vector<16xf32>
    %46 = vector.multi_reduction <add>, %45, %cst_21 [1] : vector<16x16xf32> to vector<16xf32>
    %47 = vector.shape_cast %46 : vector<16xf32> to vector<16x1xf32>
    %48 = tpu.reciprocal %47 {approx = true} : vector<16x1xf32> -> vector<16x1xf32>
    %49 = vector.broadcast %48 : vector<16x1xf32> to vector<16x16xf32>
    %50 = arith.mulf %45, %49 : vector<16x16xf32>
    %51 = arith.truncf %50 : vector<16x16xf32> to vector<16x16xbf16>
    %52 = arith.truncf %35 : vector<16x8xf32> to vector<16x8xbf16>
    %cst_22 = arith.constant dense<0.000000e+00> : vector<16x8xf32>
    %53 = tpu.matmul %51, %52, %cst_22 {dimension_numbers = #tpu.dot_dimension_numbers<[1], [0], [0], [1], [0, 0, 1, 1], [], []>} : vector<16x16xbf16>, vector<16x8xbf16>, vector<16x8xf32> -> vector<16x8xf32>
    %54 = vector.extract_strided_slice %31 {offsets = [0, 0], sizes = [8, 32], strides = [1, 1]} : vector<32x32xf32> to vector<8x32xf32>
    %55 = arith.truncf %53 : vector<16x8xf32> to vector<16x8xbf16>
    %56 = arith.truncf %54 : vector<8x32xf32> to vector<8x32xbf16>
    %cst_23 = arith.constant dense<0.000000e+00> : vector<16x32xf32>
    %57 = tpu.matmul %55, %56, %cst_23 {dimension_numbers = #tpu.dot_dimension_numbers<[1], [0], [0], [1], [0, 0, 1, 1], [], []>} : vector<16x8xbf16>, vector<8x32xbf16>, vector<16x32xf32> -> vector<16x32xf32>
    %58 = arith.addf %32, %57 : vector<16x32xf32>
    %59 = vector.extract_strided_slice %30 {offsets = [0, 8], sizes = [16, 8], strides = [1, 1]} : vector<16x96xf32> to vector<16x8xf32>
    %60 = vector.extract_strided_slice %30 {offsets = [0, 40], sizes = [16, 8], strides = [1, 1]} : vector<16x96xf32> to vector<16x8xf32>
    %61 = vector.extract_strided_slice %30 {offsets = [0, 72], sizes = [16, 8], strides = [1, 1]} : vector<16x96xf32> to vector<16x8xf32>
    %62 = arith.truncf %59 : vector<16x8xf32> to vector<16x8xbf16>
    %63 = arith.truncf %60 : vector<16x8xf32> to vector<16x8xbf16>
    %cst_24 = arith.constant dense<0.000000e+00> : vector<16x16xf32>
    %64 = tpu.matmul %62, %63, %cst_24 {dimension_numbers = #tpu.dot_dimension_numbers<[1], [1], [0], [0], [0, 0, 1, 0], [], []>} : vector<16x8xbf16>, vector<16x8xbf16>, vector<16x16xf32> -> vector<16x16xf32>
    %cst_25 = arith.constant 0.353553385 : f32
    %65 = vector.broadcast %cst_25 : f32 to vector<16x16xf32>
    %66 = arith.mulf %64, %65 : vector<16x16xf32>
    %cst_26 = arith.constant dense<0xFF800000> : vector<16xf32>
    %67 = vector.multi_reduction <maximumf>, %66, %cst_26 [1] : vector<16x16xf32> to vector<16xf32>
    %68 = vector.shape_cast %67 : vector<16xf32> to vector<16x1xf32>
    %69 = vector.broadcast %68 : vector<16x1xf32> to vector<16x16xf32>
    %70 = arith.subf %66, %69 : vector<16x16xf32>
    %71 = math.exp %70 : vector<16x16xf32>
    %cst_27 = arith.constant dense<0.000000e+00> : vector<16xf32>
    %72 = vector.multi_reduction <add>, %71, %cst_27 [1] : vector<16x16xf32> to vector<16xf32>
    %73 = vector.shape_cast %72 : vector<16xf32> to vector<16x1xf32>
    %74 = tpu.reciprocal %73 {approx = true} : vector<16x1xf32> -> vector<16x1xf32>
    %75 = vector.broadcast %74 : vector<16x1xf32> to vector<16x16xf32>
    %76 = arith.mulf %71, %75 : vector<16x16xf32>
    %77 = arith.truncf %76 : vector<16x16xf32> to vector<16x16xbf16>
    %78 = arith.truncf %61 : vector<16x8xf32> to vector<16x8xbf16>
    %cst_28 = arith.constant dense<0.000000e+00> : vector<16x8xf32>
    %79 = tpu.matmul %77, %78, %cst_28 {dimension_numbers = #tpu.dot_dimension_numbers<[1], [0], [0], [1], [0, 0, 1, 1], [], []>} : vector<16x16xbf16>, vector<16x8xbf16>, vector<16x8xf32> -> vector<16x8xf32>
    %80 = vector.extract_strided_slice %31 {offsets = [8, 0], sizes = [8, 32], strides = [1, 1]} : vector<32x32xf32> to vector<8x32xf32>
    %81 = arith.truncf %79 : vector<16x8xf32> to vector<16x8xbf16>
    %82 = arith.truncf %80 : vector<8x32xf32> to vector<8x32xbf16>
    %cst_29 = arith.constant dense<0.000000e+00> : vector<16x32xf32>
    %83 = tpu.matmul %81, %82, %cst_29 {dimension_numbers = #tpu.dot_dimension_numbers<[1], [0], [0], [1], [0, 0, 1, 1], [], []>} : vector<16x8xbf16>, vector<8x32xbf16>, vector<16x32xf32> -> vector<16x32xf32>
    %84 = arith.addf %58, %83 : vector<16x32xf32>
    %85 = vector.extract_strided_slice %30 {offsets = [0, 16], sizes = [16, 8], strides = [1, 1]} : vector<16x96xf32> to vector<16x8xf32>
    %86 = vector.extract_strided_slice %30 {offsets = [0, 48], sizes = [16, 8], strides = [1, 1]} : vector<16x96xf32> to vector<16x8xf32>
    %87 = vector.extract_strided_slice %30 {offsets = [0, 80], sizes = [16, 8], strides = [1, 1]} : vector<16x96xf32> to vector<16x8xf32>
    %88 = arith.truncf %85 : vector<16x8xf32> to vector<16x8xbf16>
    %89 = arith.truncf %86 : vector<16x8xf32> to vector<16x8xbf16>
    %cst_30 = arith.constant dense<0.000000e+00> : vector<16x16xf32>
    %90 = tpu.matmul %88, %89, %cst_30 {dimension_numbers = #tpu.dot_dimension_numbers<[1], [1], [0], [0], [0, 0, 1, 0], [], []>} : vector<16x8xbf16>, vector<16x8xbf16>, vector<16x16xf32> -> vector<16x16xf32>
    %cst_31 = arith.constant 0.353553385 : f32
    %91 = vector.broadcast %cst_31 : f32 to vector<16x16xf32>
    %92 = arith.mulf %90, %91 : vector<16x16xf32>
    %cst_32 = arith.constant dense<0xFF800000> : vector<16xf32>
    %93 = vector.multi_reduction <maximumf>, %92, %cst_32 [1] : vector<16x16xf32> to vector<16xf32>
    %94 = vector.shape_cast %93 : vector<16xf32> to vector<16x1xf32>
    %95 = vector.broadcast %94 : vector<16x1xf32> to vector<16x16xf32>
    %96 = arith.subf %92, %95 : vector<16x16xf32>
    %97 = math.exp %96 : vector<16x16xf32>
    %cst_33 = arith.constant dense<0.000000e+00> : vector<16xf32>
    %98 = vector.multi_reduction <add>, %97, %cst_33 [1] : vector<16x16xf32> to vector<16xf32>
    %99 = vector.shape_cast %98 : vector<16xf32> to vector<16x1xf32>
    %100 = tpu.reciprocal %99 {approx = true} : vector<16x1xf32> -> vector<16x1xf32>
    %101 = vector.broadcast %100 : vector<16x1xf32> to vector<16x16xf32>
    %102 = arith.mulf %97, %101 : vector<16x16xf32>
    %103 = arith.truncf %102 : vector<16x16xf32> to vector<16x16xbf16>
    %104 = arith.truncf %87 : vector<16x8xf32> to vector<16x8xbf16>
    %cst_34 = arith.constant dense<0.000000e+00> : vector<16x8xf32>
    %105 = tpu.matmul %103, %104, %cst_34 {dimension_numbers = #tpu.dot_dimension_numbers<[1], [0], [0], [1], [0, 0, 1, 1], [], []>} : vector<16x16xbf16>, vector<16x8xbf16>, vector<16x8xf32> -> vector<16x8xf32>
    %106 = vector.extract_strided_slice %31 {offsets = [16, 0], sizes = [8, 32], strides = [1, 1]} : vector<32x32xf32> to vector<8x32xf32>
    %107 = arith.truncf %105 : vector<16x8xf32> to vector<16x8xbf16>
    %108 = arith.truncf %106 : vector<8x32xf32> to vector<8x32xbf16>
    %cst_35 = arith.constant dense<0.000000e+00> : vector<16x32xf32>
    %109 = tpu.matmul %107, %108, %cst_35 {dimension_numbers = #tpu.dot_dimension_numbers<[1], [0], [0], [1], [0, 0, 1, 1], [], []>} : vector<16x8xbf16>, vector<8x32xbf16>, vector<16x32xf32> -> vector<16x32xf32>
    %110 = arith.addf %84, %109 : vector<16x32xf32>
    %111 = vector.extract_strided_slice %30 {offsets = [0, 24], sizes = [16, 8], strides = [1, 1]} : vector<16x96xf32> to vector<16x8xf32>
    %112 = vector.extract_strided_slice %30 {offsets = [0, 56], sizes = [16, 8], strides = [1, 1]} : vector<16x96xf32> to vector<16x8xf32>
    %113 = vector.extract_strided_slice %30 {offsets = [0, 88], sizes = [16, 8], strides = [1, 1]} : vector<16x96xf32> to vector<16x8xf32>
    %114 = arith.truncf %111 : vector<16x8xf32> to vector<16x8xbf16>
    %115 = arith.truncf %112 : vector<16x8xf32> to vector<16x8xbf16>
    %cst_36 = arith.constant dense<0.000000e+00> : vector<16x16xf32>
    %116 = tpu.matmul %114, %115, %cst_36 {dimension_numbers = #tpu.dot_dimension_numbers<[1], [1], [0], [0], [0, 0, 1, 0], [], []>} : vector<16x8xbf16>, vector<16x8xbf16>, vector<16x16xf32> -> vector<16x16xf32>
    %cst_37 = arith.constant 0.353553385 : f32
    %117 = vector.broadcast %cst_37 : f32 to vector<16x16xf32>
    %118 = arith.mulf %116, %117 : vector<16x16xf32>
    %cst_38 = arith.constant dense<0xFF800000> : vector<16xf32>
    %119 = vector.multi_reduction <maximumf>, %118, %cst_38 [1] : vector<16x16xf32> to vector<16xf32>
    %120 = vector.shape_cast %119 : vector<16xf32> to vector<16x1xf32>
    %121 = vector.broadcast %120 : vector<16x1xf32> to vector<16x16xf32>
    %122 = arith.subf %118, %121 : vector<16x16xf32>
    %123 = math.exp %122 : vector<16x16xf32>
    %cst_39 = arith.constant dense<0.000000e+00> : vector<16xf32>
    %124 = vector.multi_reduction <add>, %123, %cst_39 [1] : vector<16x16xf32> to vector<16xf32>
    %125 = vector.shape_cast %124 : vector<16xf32> to vector<16x1xf32>
    %126 = tpu.reciprocal %125 {approx = true} : vector<16x1xf32> -> vector<16x1xf32>
    %127 = vector.broadcast %126 : vector<16x1xf32> to vector<16x16xf32>
    %128 = arith.mulf %123, %127 : vector<16x16xf32>
    %129 = arith.truncf %128 : vector<16x16xf32> to vector<16x16xbf16>
    %130 = arith.truncf %113 : vector<16x8xf32> to vector<16x8xbf16>
    %cst_40 = arith.constant dense<0.000000e+00> : vector<16x8xf32>
    %131 = tpu.matmul %129, %130, %cst_40 {dimension_numbers = #tpu.dot_dimension_numbers<[1], [0], [0], [1], [0, 0, 1, 1], [], []>} : vector<16x16xbf16>, vector<16x8xbf16>, vector<16x8xf32> -> vector<16x8xf32>
    %132 = vector.extract_strided_slice %31 {offsets = [24, 0], sizes = [8, 32], strides = [1, 1]} : vector<32x32xf32> to vector<8x32xf32>
    %133 = arith.truncf %131 : vector<16x8xf32> to vector<16x8xbf16>
    %134 = arith.truncf %132 : vector<8x32xf32> to vector<8x32xbf16>
    %cst_41 = arith.constant dense<0.000000e+00> : vector<16x32xf32>
    %135 = tpu.matmul %133, %134, %cst_41 {dimension_numbers = #tpu.dot_dimension_numbers<[1], [0], [0], [1], [0, 0, 1, 1], [], []>} : vector<16x8xbf16>, vector<8x32xbf16>, vector<16x32xf32> -> vector<16x32xf32>
    %136 = arith.addf %110, %135 : vector<16x32xf32>
    %137 = arith.addf %1, %136 : vector<16x32xf32>
    %c0_42 = arith.constant 0 : index
    %c0_43 = arith.constant 0 : index
    %138 = vector.load %arg7[%c0_42, %c0_43] : memref<1x32xf32, #tpu.memory_space<vmem>>, vector<1x32xf32>
    %139 = vector.broadcast %138 : vector<1x32xf32> to vector<16x32xf32>
    %140 = arith.addf %137, %139 : vector<16x32xf32>
    %c0_44 = arith.constant 0 : index
    %c0_45 = arith.constant 0 : index
    %141 = vector.load %arg8[%c0_44, %c0_45] : memref<1x32xf32, #tpu.memory_space<vmem>>, vector<1x32xf32>
    %c0_46 = arith.constant 0 : index
    %c0_47 = arith.constant 0 : index
    %142 = vector.load %arg9[%c0_46, %c0_47] : memref<1x32xf32, #tpu.memory_space<vmem>>, vector<1x32xf32>
    %cst_48 = arith.constant dense<0.000000e+00> : vector<16xf32>
    %143 = vector.multi_reduction <add>, %140, %cst_48 [1] : vector<16x32xf32> to vector<16xf32>
    %144 = vector.shape_cast %143 : vector<16xf32> to vector<16x1xf32>
    %cst_49 = arith.constant 3.200000e+01 : f32
    %145 = vector.broadcast %cst_49 : f32 to vector<16x1xf32>
    %146 = arith.divf %144, %145 : vector<16x1xf32>
    %147 = vector.broadcast %146 : vector<16x1xf32> to vector<16x32xf32>
    %148 = arith.subf %140, %147 : vector<16x32xf32>
    %149 = arith.mulf %148, %148 : vector<16x32xf32>
    %cst_50 = arith.constant dense<0.000000e+00> : vector<16xf32>
    %150 = vector.multi_reduction <add>, %149, %cst_50 [1] : vector<16x32xf32> to vector<16xf32>
    %151 = vector.shape_cast %150 : vector<16xf32> to vector<16x1xf32>
    %cst_51 = arith.constant 3.200000e+01 : f32
    %152 = vector.broadcast %cst_51 : f32 to vector<16x1xf32>
    %153 = arith.divf %151, %152 : vector<16x1xf32>
    %cst_52 = arith.constant 9.99999974E-6 : f32
    %154 = vector.broadcast %cst_52 : f32 to vector<16x1xf32>
    %155 = arith.addf %153, %154 : vector<16x1xf32>
    %156 = math.rsqrt %155 : vector<16x1xf32>
    %157 = vector.broadcast %156 : vector<16x1xf32> to vector<16x32xf32>
    %158 = arith.mulf %148, %157 : vector<16x32xf32>
    %159 = vector.broadcast %141 : vector<1x32xf32> to vector<16x32xf32>
    %160 = arith.mulf %158, %159 : vector<16x32xf32>
    %161 = vector.broadcast %142 : vector<1x32xf32> to vector<16x32xf32>
    %162 = arith.addf %160, %161 : vector<16x32xf32>
    %c0_53 = arith.constant 0 : index
    %c0_54 = arith.constant 0 : index
    %163 = vector.load %arg10[%c0_53, %c0_54] : memref<32x64xf32, #tpu.memory_space<vmem>>, vector<32x64xf32>
    %164 = arith.truncf %162 : vector<16x32xf32> to vector<16x32xbf16>
    %165 = arith.truncf %163 : vector<32x64xf32> to vector<32x64xbf16>
    %cst_55 = arith.constant dense<0.000000e+00> : vector<16x64xf32>
    %166 = tpu.matmul %164, %165, %cst_55 {dimension_numbers = #tpu.dot_dimension_numbers<[1], [0], [0], [1], [0, 0, 1, 1], [], []>} : vector<16x32xbf16>, vector<32x64xbf16>, vector<16x64xf32> -> vector<16x64xf32>
    %c0_56 = arith.constant 0 : index
    %c0_57 = arith.constant 0 : index
    %167 = vector.load %arg11[%c0_56, %c0_57] : memref<1x64xf32, #tpu.memory_space<vmem>>, vector<1x64xf32>
    %168 = vector.broadcast %167 : vector<1x64xf32> to vector<16x64xf32>
    %169 = arith.addf %166, %168 : vector<16x64xf32>
    %170 = arith.mulf %169, %169 : vector<16x64xf32>
    %171 = arith.mulf %169, %170 : vector<16x64xf32>
    %cst_58 = arith.constant 4.471500e-02 : f32
    %172 = vector.broadcast %cst_58 : f32 to vector<16x64xf32>
    %173 = arith.mulf %172, %171 : vector<16x64xf32>
    %174 = arith.addf %169, %173 : vector<16x64xf32>
    %cst_59 = arith.constant 0.797884583 : f32
    %175 = vector.broadcast %cst_59 : f32 to vector<16x64xf32>
    %176 = arith.mulf %175, %174 : vector<16x64xf32>
    %177 = math.tanh %176 : vector<16x64xf32>
    %cst_60 = arith.constant 1.000000e+00 : f32
    %178 = vector.broadcast %cst_60 : f32 to vector<16x64xf32>
    %179 = arith.addf %178, %177 : vector<16x64xf32>
    %cst_61 = arith.constant 5.000000e-01 : f32
    %180 = vector.broadcast %cst_61 : f32 to vector<16x64xf32>
    %181 = arith.mulf %180, %179 : vector<16x64xf32>
    %182 = arith.mulf %169, %181 : vector<16x64xf32>
    %c0_62 = arith.constant 0 : index
    %c0_63 = arith.constant 0 : index
    %183 = vector.load %arg12[%c0_62, %c0_63] : memref<64x32xf32, #tpu.memory_space<vmem>>, vector<64x32xf32>
    %184 = arith.truncf %182 : vector<16x64xf32> to vector<16x64xbf16>
    %185 = arith.truncf %183 : vector<64x32xf32> to vector<64x32xbf16>
    %cst_64 = arith.constant dense<0.000000e+00> : vector<16x32xf32>
    %186 = tpu.matmul %184, %185, %cst_64 {dimension_numbers = #tpu.dot_dimension_numbers<[1], [0], [0], [1], [0, 0, 1, 1], [], []>} : vector<16x64xbf16>, vector<64x32xbf16>, vector<16x32xf32> -> vector<16x32xf32>
    %c0_65 = arith.constant 0 : index
    %c0_66 = arith.constant 0 : index
    %187 = vector.load %arg13[%c0_65, %c0_66] : memref<1x32xf32, #tpu.memory_space<vmem>>, vector<1x32xf32>
    %188 = vector.broadcast %187 : vector<1x32xf32> to vector<16x32xf32>
    %189 = arith.addf %186, %188 : vector<16x32xf32>
    %190 = arith.addf %140, %189 : vector<16x32xf32>
    %c0_67 = arith.constant 0 : index
    %c0_68 = arith.constant 0 : index
    %c0_69 = arith.constant 0 : index
    %191 = vector.load %arg14[%c0_67, %c0_68, %c0_69] : memref<1x16x32xf32, #tpu.memory_space<vmem>>, vector<1x16x32xf32>
    %192 = vector.shape_cast %191 : vector<1x16x32xf32> to vector<16x32xf32>
    %193 = vector.shape_cast %190 : vector<16x32xf32> to vector<1x16x32xf32>
    tpu.vector_store %arg14[%c0_67, %c0_68, %c0_69], %193 {strides = array<i32>} : memref<1x16x32xf32, #tpu.memory_space<vmem>>, vector<1x16x32xf32>,
    return
  }
  func.func @transform_0(%arg0: i32) -> (i32, i32, i32) {
    %c0_i32 = arith.constant 0 : i32
    %c0_i32_0 = arith.constant 0 : i32
    %c0_i32_1 = arith.constant 0 : i32
    return %arg0, %c0_i32, %c0_i32_0 : i32, i32, i32
  }
  func.func @transform_1(%arg0: i32) -> (i32, i32) {
    %c0_i32 = arith.constant 0 : i32
    %c0_i32_0 = arith.constant 0 : i32
    %c0_i32_1 = arith.constant 0 : i32
    return %c0_i32, %c0_i32_0 : i32, i32
  }
  func.func @transform_2(%arg0: i32) -> (i32, i32) {
    %c0_i32 = arith.constant 0 : i32
    %c0_i32_0 = arith.constant 0 : i32
    %c0_i32_1 = arith.constant 0 : i32
    return %c0_i32, %c0_i32_0 : i32, i32
  }
  func.func @transform_3(%arg0: i32) -> (i32, i32) {
    %c0_i32 = arith.constant 0 : i32
    %c0_i32_0 = arith.constant 0 : i32
    %c0_i32_1 = arith.constant 0 : i32
    return %c0_i32, %c0_i32_0 : i32, i32
  }
  func.func @transform_4(%arg0: i32) -> (i32, i32) {
    %c0_i32 = arith.constant 0 : i32
    %c0_i32_0 = arith.constant 0 : i32
    %c0_i32_1 = arith.constant 0 : i32
    return %c0_i32, %c0_i32_0 : i32, i32
  }
  func.func @transform_5(%arg0: i32) -> (i32, i32) {
    %c0_i32 = arith.constant 0 : i32
    %c0_i32_0 = arith.constant 0 : i32
    %c0_i32_1 = arith.constant 0 : i32
    return %c0_i32, %c0_i32_0 : i32, i32
  }
  func.func @transform_6(%arg0: i32) -> (i32, i32) {
    %c0_i32 = arith.constant 0 : i32
    %c0_i32_0 = arith.constant 0 : i32
    %c0_i32_1 = arith.constant 0 : i32
    return %c0_i32, %c0_i32_0 : i32, i32
  }
  func.func @transform_7(%arg0: i32) -> (i32, i32) {
    %c0_i32 = arith.constant 0 : i32
    %c0_i32_0 = arith.constant 0 : i32
    %c0_i32_1 = arith.constant 0 : i32
    return %c0_i32, %c0_i32_0 : i32, i32
  }
  func.func @transform_8(%arg0: i32) -> (i32, i32) {
    %c0_i32 = arith.constant 0 : i32
    %c0_i32_0 = arith.constant 0 : i32
    %c0_i32_1 = arith.constant 0 : i32
    return %c0_i32, %c0_i32_0 : i32, i32
  }
  func.func @transform_9(%arg0: i32) -> (i32, i32) {
    %c0_i32 = arith.constant 0 : i32
    %c0_i32_0 = arith.constant 0 : i32
    %c0_i32_1 = arith.constant 0 : i32
    return %c0_i32, %c0_i32_0 : i32, i32
  }
  func.func @transform_10(%arg0: i32) -> (i32, i32) {
    %c0_i32 = arith.constant 0 : i32
    %c0_i32_0 = arith.constant 0 : i32
    %c0_i32_1 = arith.constant 0 : i32
    return %c0_i32, %c0_i32_0 : i32, i32
  }
  func.func @transform_11(%arg0: i32) -> (i32, i32) {
    %c0_i32 = arith.constant 0 : i32
    %c0_i32_0 = arith.constant 0 : i32
    %c0_i32_1 = arith.constant 0 : i32
    return %c0_i32, %c0_i32_0 : i32, i32
  }
  func.func @transform_12(%arg0: i32) -> (i32, i32) {
    %c0_i32 = arith.constant 0 : i32
    %c0_i32_0 = arith.constant 0 : i32
    %c0_i32_1 = arith.constant 0 : i32
    return %c0_i32, %c0_i32_0 : i32, i32
  }
  func.func @transform_13(%arg0: i32) -> (i32, i32, i32) {
    %c0_i32 = arith.constant 0 : i32
    %c0_i32_0 = arith.constant 0 : i32
    %c0_i32_1 = arith.constant 0 : i32
    return %arg0, %c0_i32, %c0_i32_0 : i32, i32, i32
  }
}

module attributes {stable_mosaic.version = 11 : i64} {
  func.func @_encoder_block_kernel(%arg0: i32, %arg1: memref<1x16x32xf32, #tpu.memory_space<vmem>>, %arg2: memref<1x32xf32, #tpu.memory_space<vmem>>, %arg3: memref<1x32xf32, #tpu.memory_space<vmem>>, %arg4: memref<32x96xf32, #tpu.memory_space<vmem>>, %arg5: memref<1x96xf32, #tpu.memory_space<vmem>>, %arg6: memref<32x32xf32, #tpu.memory_space<vmem>>, %arg7: memref<1x32xf32, #tpu.memory_space<vmem>>, %arg8: memref<1x32xf32, #tpu.memory_space<vmem>>, %arg9: memref<1x32xf32, #tpu.memory_space<vmem>>, %arg10: memref<32x64xf32, #tpu.memory_space<vmem>>, %arg11: memref<1x64xf32, #tpu.memory_space<vmem>>, %arg12: memref<64x32xf32, #tpu.memory_space<vmem>>, %arg13: memref<1x32xf32, #tpu.memory_space<vmem>>, %arg14: memref<1x16x32xf32, #tpu.memory_space<vmem>>) attributes {dimension_semantics = [#tpu.dimension_semantics<parallel>], iteration_bounds = array<i64: 2>, scalar_prefetch = 0 : i64, scratch_operands = 0 : i64, tpu.core_type = #tpu.core_type<tc>, window_params = [{transform_indices = @transform_0, window_bounds = array<i64: 1, 16, 32>}, {pipeline_mode = #tpu.pipeline_mode<synchronous>, transform_indices = @transform_1, window_bounds = array<i64: 1, 32>}, {pipeline_mode = #tpu.pipeline_mode<synchronous>, transform_indices = @transform_2, window_bounds = array<i64: 1, 32>}, {pipeline_mode = #tpu.pipeline_mode<synchronous>, transform_indices = @transform_3, window_bounds = array<i64: 32, 96>}, {pipeline_mode = #tpu.pipeline_mode<synchronous>, transform_indices = @transform_4, window_bounds = array<i64: 1, 96>}, {pipeline_mode = #tpu.pipeline_mode<synchronous>, transform_indices = @transform_5, window_bounds = array<i64: 32, 32>}, {pipeline_mode = #tpu.pipeline_mode<synchronous>, transform_indices = @transform_6, window_bounds = array<i64: 1, 32>}, {pipeline_mode = #tpu.pipeline_mode<synchronous>, transform_indices = @transform_7, window_bounds = array<i64: 1, 32>}, {pipeline_mode = #tpu.pipeline_mode<synchronous>, transform_indices = @transform_8, window_bounds = array<i64: 1, 32>}, {pipeline_mode = #tpu.pipeline_mode<synchronous>, transform_indices = @transform_9, window_bounds = array<i64: 32, 64>}, {pipeline_mode = #tpu.pipeline_mode<synchronous>, transform_indices = @transform_10, window_bounds = array<i64: 1, 64>}, {pipeline_mode = #tpu.pipeline_mode<synchronous>, transform_indices = @transform_11, window_bounds = array<i64: 64, 32>}, {pipeline_mode = #tpu.pipeline_mode<synchronous>, transform_indices = @transform_12, window_bounds = array<i64: 1, 32>}, {transform_indices = @transform_13, window_bounds = array<i64: 1, 16, 32>}]} {
    %c0 = arith.constant 0 : index
    %c0_0 = arith.constant 0 : index
    %c0_1 = arith.constant 0 : index
    %0 = vector.load %arg1[%c0, %c0_0, %c0_1] : memref<1x16x32xf32, #tpu.memory_space<vmem>>, vector<1x16x32xf32>
    %1 = vector.shape_cast %0 : vector<1x16x32xf32> to vector<16x32xf32>
    %c0_2 = arith.constant 0 : index
    %c0_3 = arith.constant 0 : index
    %2 = vector.load %arg2[%c0_2, %c0_3] : memref<1x32xf32, #tpu.memory_space<vmem>>, vector<1x32xf32>
    %c0_4 = arith.constant 0 : index
    %c0_5 = arith.constant 0 : index
    %3 = vector.load %arg3[%c0_4, %c0_5] : memref<1x32xf32, #tpu.memory_space<vmem>>, vector<1x32xf32>
    %cst = arith.constant dense<0.000000e+00> : vector<16xf32>
    %4 = vector.multi_reduction <add>, %1, %cst [1] : vector<16x32xf32> to vector<16xf32>
    %5 = vector.shape_cast %4 : vector<16xf32> to vector<16x1xf32>
    %cst_6 = arith.constant 3.200000e+01 : f32
    %6 = vector.broadcast %cst_6 : f32 to vector<16x1xf32>
    %7 = arith.divf %5, %6 : vector<16x1xf32>
    %8 = vector.broadcast %7 : vector<16x1xf32> to vector<16x32xf32>
    %9 = arith.subf %1, %8 : vector<16x32xf32>
    %10 = arith.mulf %9, %9 : vector<16x32xf32>
    %cst_7 = arith.constant dense<0.000000e+00> : vector<16xf32>
    %11 = vector.multi_reduction <add>, %10, %cst_7 [1] : vector<16x32xf32> to vector<16xf32>
    %12 = vector.shape_cast %11 : vector<16xf32> to vector<16x1xf32>
    %cst_8 = arith.constant 3.200000e+01 : f32
    %13 = vector.broadcast %cst_8 : f32 to vector<16x1xf32>
    %14 = arith.divf %12, %13 : vector<16x1xf32>
    %cst_9 = arith.constant 9.99999974E-6 : f32
    %15 = vector.broadcast %cst_9 : f32 to vector<16x1xf32>
    %16 = arith.addf %14, %15 : vector<16x1xf32>
    %17 = math.rsqrt %16 : vector<16x1xf32>
    %18 = vector.broadcast %17 : vector<16x1xf32> to vector<16x32xf32>
    %19 = arith.mulf %9, %18 : vector<16x32xf32>
    %20 = vector.broadcast %2 : vector<1x32xf32> to vector<16x32xf32>
    %21 = arith.mulf %19, %20 : vector<16x32xf32>
    %22 = vector.broadcast %3 : vector<1x32xf32> to vector<16x32xf32>
    %23 = arith.addf %21, %22 : vector<16x32xf32>
    %c0_10 = arith.constant 0 : index
    %c0_11 = arith.constant 0 : index
    %24 = vector.load %arg4[%c0_10, %c0_11] : memref<32x96xf32, #tpu.memory_space<vmem>>, vector<32x96xf32>
    %25 = arith.truncf %23 : vector<16x32xf32> to vector<16x32xbf16>
    %26 = arith.truncf %24 : vector<32x96xf32> to vector<32x96xbf16>
    %cst_12 = arith.constant dense<0.000000e+00> : vector<16x96xf32>
    %27 = tpu.matmul %25, %26, %cst_12 {dimension_numbers = #tpu.dot_dimension_numbers<[1], [0], [0], [1], [0, 0, 1, 1], [], []>} : vector<16x32xbf16>, vector<32x96xbf16>, vector<16x96xf32> -> vector<16x96xf32>
    %c0_13 = arith.constant 0 : index
    %c0_14 = arith.constant 0 : index
    %28 = vector.load %arg5[%c0_13, %c0_14] : memref<1x96xf32, #tpu.memory_space<vmem>>, vector<1x96xf32>
    %29 = vector.broadcast %28 : vector<1x96xf32> to vector<16x96xf32>
    %30 = arith.addf %27, %29 : vector<16x96xf32>
    %c0_15 = arith.constant 0 : index
    %c0_16 = arith.constant 0 : index
    %31 = vector.load %arg6[%c0_15, %c0_16] : memref<32x32xf32, #tpu.memory_space<vmem>>, vector<32x32xf32>
    %cst_17 = arith.constant 0.000000e+00 : f32
    %32 = vector.broadcast %cst_17 : f32 to vector<16x32xf32>
    %33 = vector.extract_strided_slice %30 {offsets = [0, 0], sizes = [16, 8], strides = [1, 1]} : vector<16x96xf32> to vector<16x8xf32>
    %34 = vector.extract_strided_slice %30 {offsets = [0, 32], sizes = [16, 8], strides = [1, 1]} : vector<16x96xf32> to vector<16x8xf32>
    %35 = vector.extract_strided_slice %30 {offsets = [0, 64], sizes = [16, 8], strides = [1, 1]} : vector<16x96xf32> to vector<16x8xf32>
    %36 = arith.truncf %33 : vector<16x8xf32> to vector<16x8xbf16>
    %37 = arith.truncf %34 : vector<16x8xf32> to vector<16x8xbf16>
    %cst_18 = arith.constant dense<0.000000e+00> : vector<16x16xf32>
    %38 = tpu.matmul %36, %37, %cst_18 {dimension_numbers = #tpu.dot_dimension_numbers<[1], [1], [0], [0], [0, 0, 1, 0], [], []>} : vector<16x8xbf16>, vector<16x8xbf16>, vector<16x16xf32> -> vector<16x16xf32>
    %cst_19 = arith.constant 0.353553385 : f32
    %39 = vector.broadcast %cst_19 : f32 to vector<16x16xf32>
    %40 = arith.mulf %38, %39 : vector<16x16xf32>
    %cst_20 = arith.constant dense<0xFF800000> : vector<16xf32>
    %41 = vector.multi_reduction <maximumf>, %40, %cst_20 [1] : vector<16x16xf32> to vector<16xf32>
    %42 = vector.shape_cast %41 : vector<16xf32> to vector<16x1xf32>
    %43 = vector.broadcast %42 : vector<16x1xf32> to vector<16x16xf32>
    %44 = arith.subf %40, %43 : vector<16x16xf32>
    %45 = math.exp %44 : vector<16x16xf32>
    %cst_21 = arith.constant dense<0.000000e+00> : vector<16xf32>
    %46 = vector.multi_reduction <add>, %45, %cst_21 [1] : vector<16x16xf32> to vector<16xf32>
    %47 = vector.shape_cast %46 : vector<16xf32> to vector<16x1xf32>
    %48 = tpu.reciprocal %47 {approx = true} : vector<16x1xf32> -> vector<16x1xf32>
    %49 = vector.broadcast %48 : vector<16x1xf32> to vector<16x16xf32>
    %50 = arith.mulf %45, %49 : vector<16x16xf32>
    %51 = arith.truncf %50 : vector<16x16xf32> to vector<16x16xbf16>
    %52 = arith.truncf %35 : vector<16x8xf32> to vector<16x8xbf16>
    %cst_22 = arith.constant dense<0.000000e+00> : vector<16x8xf32>
    %53 = tpu.matmul %51, %52, %cst_22 {dimension_numbers = #tpu.dot_dimension_numbers<[1], [0], [0], [1], [0, 0, 1, 1], [], []>} : vector<16x16xbf16>, vector<16x8xbf16>, vector<16x8xf32> -> vector<16x8xf32>
    %54 = vector.extract_strided_slice %31 {offsets = [0, 0], sizes = [8, 32], strides = [1, 1]} : vector<32x32xf32> to vector<8x32xf32>
    %55 = arith.truncf %53 : vector<16x8xf32> to vector<16x8xbf16>
    %56 = arith.truncf %54 : vector<8x32xf32> to vector<8x32xbf16>
    %cst_23 = arith.constant dense<0.000000e+00> : vector<16x32xf32>
    %57 = tpu.matmul %55, %56, %cst_23 {dimension_numbers = #tpu.dot_dimension_numbers<[1], [0], [0], [1], [0, 0, 1, 1], [], []>} : vector<16x8xbf16>, vector<8x32xbf16>, vector<16x32xf32> -> vector<16x32xf32>
    %58 = arith.addf %32, %57 : vector<16x32xf32>
    %59 = vector.extract_strided_slice %30 {offsets = [0, 8], sizes = [16, 8], strides = [1, 1]} : vector<16x96xf32> to vector<16x8xf32>
    %60 = vector.extract_strided_slice %30 {offsets = [0, 40], sizes = [16, 8], strides = [1, 1]} : vector<16x96xf32> to vector<16x8xf32>
    %61 = vector.extract_strided_slice %30 {offsets = [0, 72], sizes = [16, 8], strides = [1, 1]} : vector<16x96xf32> to vector<16x8xf32>
    %62 = arith.truncf %59 : vector<16x8xf32> to vector<16x8xbf16>
    %63 = arith.truncf %60 : vector<16x8xf32> to vector<16x8xbf16>
    %cst_24 = arith.constant dense<0.000000e+00> : vector<16x16xf32>
    %64 = tpu.matmul %62, %63, %cst_24 {dimension_numbers = #tpu.dot_dimension_numbers<[1], [1], [0], [0], [0, 0, 1, 0], [], []>} : vector<16x8xbf16>, vector<16x8xbf16>, vector<16x16xf32> -> vector<16x16xf32>
    %cst_25 = arith.constant 0.353553385 : f32
    %65 = vector.broadcast %cst_25 : f32 to vector<16x16xf32>
    %66 = arith.mulf %64, %65 : vector<16x16xf32>
    %cst_26 = arith.constant dense<0xFF800000> : vector<16xf32>
    %67 = vector.multi_reduction <maximumf>, %66, %cst_26 [1] : vector<16x16xf32> to vector<16xf32>
    %68 = vector.shape_cast %67 : vector<16xf32> to vector<16x1xf32>
    %69 = vector.broadcast %68 : vector<16x1xf32> to vector<16x16xf32>
    %70 = arith.subf %66, %69 : vector<16x16xf32>
    %71 = math.exp %70 : vector<16x16xf32>
    %cst_27 = arith.constant dense<0.000000e+00> : vector<16xf32>
    %72 = vector.multi_reduction <add>, %71, %cst_27 [1] : vector<16x16xf32> to vector<16xf32>
    %73 = vector.shape_cast %72 : vector<16xf32> to vector<16x1xf32>
    %74 = tpu.reciprocal %73 {approx = true} : vector<16x1xf32> -> vector<16x1xf32>
    %75 = vector.broadcast %74 : vector<16x1xf32> to vector<16x16xf32>
    %76 = arith.mulf %71, %75 : vector<16x16xf32>
    %77 = arith.truncf %76 : vector<16x16xf32> to vector<16x16xbf16>
    %78 = arith.truncf %61 : vector<16x8xf32> to vector<16x8xbf16>
    %cst_28 = arith.constant dense<0.000000e+00> : vector<16x8xf32>
    %79 = tpu.matmul %77, %78, %cst_28 {dimension_numbers = #tpu.dot_dimension_numbers<[1], [0], [0], [1], [0, 0, 1, 1], [], []>} : vector<16x16xbf16>, vector<16x8xbf16>, vector<16x8xf32> -> vector<16x8xf32>
    %80 = vector.extract_strided_slice %31 {offsets = [8, 0], sizes = [8, 32], strides = [1, 1]} : vector<32x32xf32> to vector<8x32xf32>
    %81 = arith.truncf %79 : vector<16x8xf32> to vector<16x8xbf16>
    %82 = arith.truncf %80 : vector<8x32xf32> to vector<8x32xbf16>
    %cst_29 = arith.constant dense<0.000000e+00> : vector<16x32xf32>
    %83 = tpu.matmul %81, %82, %cst_29 {dimension_numbers = #tpu.dot_dimension_numbers<[1], [0], [0], [1], [0, 0, 1, 1], [], []>} : vector<16x8xbf16>, vector<8x32xbf16>, vector<16x32xf32> -> vector<16x32xf32>
    %84 = arith.addf %58, %83 : vector<16x32xf32>
    %85 = vector.extract_strided_slice %30 {offsets = [0, 16], sizes = [16, 8], strides = [1, 1]} : vector<16x96xf32> to vector<16x8xf32>
    %86 = vector.extract_strided_slice %30 {offsets = [0, 48], sizes = [16, 8], strides = [1, 1]} : vector<16x96xf32> to vector<16x8xf32>
    %87 = vector.extract_strided_slice %30 {offsets = [0, 80], sizes = [16, 8], strides = [1, 1]} : vector<16x96xf32> to vector<16x8xf32>
    %88 = arith.truncf %85 : vector<16x8xf32> to vector<16x8xbf16>
    %89 = arith.truncf %86 : vector<16x8xf32> to vector<16x8xbf16>
    %cst_30 = arith.constant dense<0.000000e+00> : vector<16x16xf32>
    %90 = tpu.matmul %88, %89, %cst_30 {dimension_numbers = #tpu.dot_dimension_numbers<[1], [1], [0], [0], [0, 0, 1, 0], [], []>} : vector<16x8xbf16>, vector<16x8xbf16>, vector<16x16xf32> -> vector<16x16xf32>
    %cst_31 = arith.constant 0.353553385 : f32
    %91 = vector.broadcast %cst_31 : f32 to vector<16x16xf32>
    %92 = arith.mulf %90, %91 : vector<16x16xf32>
    %cst_32 = arith.constant dense<0xFF800000> : vector<16xf32>
    %93 = vector.multi_reduction <maximumf>, %92, %cst_32 [1] : vector<16x16xf32> to vector<16xf32>
    %94 = vector.shape_cast %93 : vector<16xf32> to vector<16x1xf32>
    %95 = vector.broadcast %94 : vector<16x1xf32> to vector<16x16xf32>
    %96 = arith.subf %92, %95 : vector<16x16xf32>
    %97 = math.exp %96 : vector<16x16xf32>
    %cst_33 = arith.constant dense<0.000000e+00> : vector<16xf32>
    %98 = vector.multi_reduction <add>, %97, %cst_33 [1] : vector<16x16xf32> to vector<16xf32>
    %99 = vector.shape_cast %98 : vector<16xf32> to vector<16x1xf32>
    %100 = tpu.reciprocal %99 {approx = true} : vector<16x1xf32> -> vector<16x1xf32>
    %101 = vector.broadcast %100 : vector<16x1xf32> to vector<16x16xf32>
    %102 = arith.mulf %97, %101 : vector<16x16xf32>
    %103 = arith.truncf %102 : vector<16x16xf32> to vector<16x16xbf16>
    %104 = arith.truncf %87 : vector<16x8xf32> to vector<16x8xbf16>
    %cst_34 = arith.constant dense<0.000000e+00> : vector<16x8xf32>
    %105 = tpu.matmul %103, %104, %cst_34 {dimension_numbers = #tpu.dot_dimension_numbers<[1], [0], [0], [1], [0, 0, 1, 1], [], []>} : vector<16x16xbf16>, vector<16x8xbf16>, vector<16x8xf32> -> vector<16x8xf32>
    %106 = vector.extract_strided_slice %31 {offsets = [16, 0], sizes = [8, 32], strides = [1, 1]} : vector<32x32xf32> to vector<8x32xf32>
    %107 = arith.truncf %105 : vector<16x8xf32> to vector<16x8xbf16>
    %108 = arith.truncf %106 : vector<8x32xf32> to vector<8x32xbf16>
    %cst_35 = arith.constant dense<0.000000e+00> : vector<16x32xf32>
    %109 = tpu.matmul %107, %108, %cst_35 {dimension_numbers = #tpu.dot_dimension_numbers<[1], [0], [0], [1], [0, 0, 1, 1], [], []>} : vector<16x8xbf16>, vector<8x32xbf16>, vector<16x32xf32> -> vector<16x32xf32>
    %110 = arith.addf %84, %109 : vector<16x32xf32>
    %111 = vector.extract_strided_slice %30 {offsets = [0, 24], sizes = [16, 8], strides = [1, 1]} : vector<16x96xf32> to vector<16x8xf32>
    %112 = vector.extract_strided_slice %30 {offsets = [0, 56], sizes = [16, 8], strides = [1, 1]} : vector<16x96xf32> to vector<16x8xf32>
    %113 = vector.extract_strided_slice %30 {offsets = [0, 88], sizes = [16, 8], strides = [1, 1]} : vector<16x96xf32> to vector<16x8xf32>
    %114 = arith.truncf %111 : vector<16x8xf32> to vector<16x8xbf16>
    %115 = arith.truncf %112 : vector<16x8xf32> to vector<16x8xbf16>
    %cst_36 = arith.constant dense<0.000000e+00> : vector<16x16xf32>
    %116 = tpu.matmul %114, %115, %cst_36 {dimension_numbers = #tpu.dot_dimension_numbers<[1], [1], [0], [0], [0, 0, 1, 0], [], []>} : vector<16x8xbf16>, vector<16x8xbf16>, vector<16x16xf32> -> vector<16x16xf32>
    %cst_37 = arith.constant 0.353553385 : f32
    %117 = vector.broadcast %cst_37 : f32 to vector<16x16xf32>
    %118 = arith.mulf %116, %117 : vector<16x16xf32>
    %cst_38 = arith.constant dense<0xFF800000> : vector<16xf32>
    %119 = vector.multi_reduction <maximumf>, %118, %cst_38 [1] : vector<16x16xf32> to vector<16xf32>
    %120 = vector.shape_cast %119 : vector<16xf32> to vector<16x1xf32>
    %121 = vector.broadcast %120 : vector<16x1xf32> to vector<16x16xf32>
    %122 = arith.subf %118, %121 : vector<16x16xf32>
    %123 = math.exp %122 : vector<16x16xf32>
    %cst_39 = arith.constant dense<0.000000e+00> : vector<16xf32>
    %124 = vector.multi_reduction <add>, %123, %cst_39 [1] : vector<16x16xf32> to vector<16xf32>
    %125 = vector.shape_cast %124 : vector<16xf32> to vector<16x1xf32>
    %126 = tpu.reciprocal %125 {approx = true} : vector<16x1xf32> -> vector<16x1xf32>
    %127 = vector.broadcast %126 : vector<16x1xf32> to vector<16x16xf32>
    %128 = arith.mulf %123, %127 : vector<16x16xf32>
    %129 = arith.truncf %128 : vector<16x16xf32> to vector<16x16xbf16>
    %130 = arith.truncf %113 : vector<16x8xf32> to vector<16x8xbf16>
    %cst_40 = arith.constant dense<0.000000e+00> : vector<16x8xf32>
    %131 = tpu.matmul %129, %130, %cst_40 {dimension_numbers = #tpu.dot_dimension_numbers<[1], [0], [0], [1], [0, 0, 1, 1], [], []>} : vector<16x16xbf16>, vector<16x8xbf16>, vector<16x8xf32> -> vector<16x8xf32>
    %132 = vector.extract_strided_slice %31 {offsets = [24, 0], sizes = [8, 32], strides = [1, 1]} : vector<32x32xf32> to vector<8x32xf32>
    %133 = arith.truncf %131 : vector<16x8xf32> to vector<16x8xbf16>
    %134 = arith.truncf %132 : vector<8x32xf32> to vector<8x32xbf16>
    %cst_41 = arith.constant dense<0.000000e+00> : vector<16x32xf32>
    %135 = tpu.matmul %133, %134, %cst_41 {dimension_numbers = #tpu.dot_dimension_numbers<[1], [0], [0], [1], [0, 0, 1, 1], [], []>} : vector<16x8xbf16>, vector<8x32xbf16>, vector<16x32xf32> -> vector<16x32xf32>
    %136 = arith.addf %110, %135 : vector<16x32xf32>
    %137 = arith.addf %1, %136 : vector<16x32xf32>
    %c0_42 = arith.constant 0 : index
    %c0_43 = arith.constant 0 : index
    %138 = vector.load %arg7[%c0_42, %c0_43] : memref<1x32xf32, #tpu.memory_space<vmem>>, vector<1x32xf32>
    %139 = vector.broadcast %138 : vector<1x32xf32> to vector<16x32xf32>
    %140 = arith.addf %137, %139 : vector<16x32xf32>
    %c0_44 = arith.constant 0 : index
    %c0_45 = arith.constant 0 : index
    %141 = vector.load %arg8[%c0_44, %c0_45] : memref<1x32xf32, #tpu.memory_space<vmem>>, vector<1x32xf32>
    %c0_46 = arith.constant 0 : index
    %c0_47 = arith.constant 0 : index
    %142 = vector.load %arg9[%c0_46, %c0_47] : memref<1x32xf32, #tpu.memory_space<vmem>>, vector<1x32xf32>
    %cst_48 = arith.constant dense<0.000000e+00> : vector<16xf32>
    %143 = vector.multi_reduction <add>, %140, %cst_48 [1] : vector<16x32xf32> to vector<16xf32>
    %144 = vector.shape_cast %143 : vector<16xf32> to vector<16x1xf32>
    %cst_49 = arith.constant 3.200000e+01 : f32
    %145 = vector.broadcast %cst_49 : f32 to vector<16x1xf32>
    %146 = arith.divf %144, %145 : vector<16x1xf32>
    %147 = vector.broadcast %146 : vector<16x1xf32> to vector<16x32xf32>
    %148 = arith.subf %140, %147 : vector<16x32xf32>
    %149 = arith.mulf %148, %148 : vector<16x32xf32>
    %cst_50 = arith.constant dense<0.000000e+00> : vector<16xf32>
    %150 = vector.multi_reduction <add>, %149, %cst_50 [1] : vector<16x32xf32> to vector<16xf32>
    %151 = vector.shape_cast %150 : vector<16xf32> to vector<16x1xf32>
    %cst_51 = arith.constant 3.200000e+01 : f32
    %152 = vector.broadcast %cst_51 : f32 to vector<16x1xf32>
    %153 = arith.divf %151, %152 : vector<16x1xf32>
    %cst_52 = arith.constant 9.99999974E-6 : f32
    %154 = vector.broadcast %cst_52 : f32 to vector<16x1xf32>
    %155 = arith.addf %153, %154 : vector<16x1xf32>
    %156 = math.rsqrt %155 : vector<16x1xf32>
    %157 = vector.broadcast %156 : vector<16x1xf32> to vector<16x32xf32>
    %158 = arith.mulf %148, %157 : vector<16x32xf32>
    %159 = vector.broadcast %141 : vector<1x32xf32> to vector<16x32xf32>
    %160 = arith.mulf %158, %159 : vector<16x32xf32>
    %161 = vector.broadcast %142 : vector<1x32xf32> to vector<16x32xf32>
    %162 = arith.addf %160, %161 : vector<16x32xf32>
    %c0_53 = arith.constant 0 : index
    %c0_54 = arith.constant 0 : index
    %163 = vector.load %arg10[%c0_53, %c0_54] : memref<32x64xf32, #tpu.memory_space<vmem>>, vector<32x64xf32>
    %164 = arith.truncf %162 : vector<16x32xf32> to vector<16x32xbf16>
    %165 = arith.truncf %163 : vector<32x64xf32> to vector<32x64xbf16>
    %cst_55 = arith.constant dense<0.000000e+00> : vector<16x64xf32>
    %166 = tpu.matmul %164, %165, %cst_55 {dimension_numbers = #tpu.dot_dimension_numbers<[1], [0], [0], [1], [0, 0, 1, 1], [], []>} : vector<16x32xbf16>, vector<32x64xbf16>, vector<16x64xf32> -> vector<16x64xf32>
    %c0_56 = arith.constant 0 : index
    %c0_57 = arith.constant 0 : index
    %167 = vector.load %arg11[%c0_56, %c0_57] : memref<1x64xf32, #tpu.memory_space<vmem>>, vector<1x64xf32>
    %168 = vector.broadcast %167 : vector<1x64xf32> to vector<16x64xf32>
    %169 = arith.addf %166, %168 : vector<16x64xf32>
    %170 = arith.mulf %169, %169 : vector<16x64xf32>
    %171 = arith.mulf %169, %170 : vector<16x64xf32>
    %cst_58 = arith.constant 4.471500e-02 : f32
    %172 = vector.broadcast %cst_58 : f32 to vector<16x64xf32>
    %173 = arith.mulf %172, %171 : vector<16x64xf32>
    %174 = arith.addf %169, %173 : vector<16x64xf32>
    %cst_59 = arith.constant 0.797884583 : f32
    %175 = vector.broadcast %cst_59 : f32 to vector<16x64xf32>
    %176 = arith.mulf %175, %174 : vector<16x64xf32>
    %177 = math.tanh %176 : vector<16x64xf32>
    %cst_60 = arith.constant 1.000000e+00 : f32
    %178 = vector.broadcast %cst_60 : f32 to vector<16x64xf32>
    %179 = arith.addf %178, %177 : vector<16x64xf32>
    %cst_61 = arith.constant 5.000000e-01 : f32
    %180 = vector.broadcast %cst_61 : f32 to vector<16x64xf32>
    %181 = arith.mulf %180, %179 : vector<16x64xf32>
    %182 = arith.mulf %169, %181 : vector<16x64xf32>
    %c0_62 = arith.constant 0 : index
    %c0_63 = arith.constant 0 : index
    %183 = vector.load %arg12[%c0_62, %c0_63] : memref<64x32xf32, #tpu.memory_space<vmem>>, vector<64x32xf32>
    %184 = arith.truncf %182 : vector<16x64xf32> to vector<16x64xbf16>
    %185 = arith.truncf %183 : vector<64x32xf32> to vector<64x32xbf16>
    %cst_64 = arith.constant dense<0.000000e+00> : vector<16x32xf32>
    %186 = tpu.matmul %184, %185, %cst_64 {dimension_numbers = #tpu.dot_dimension_numbers<[1], [0], [0], [1], [0, 0, 1, 1], [], []>} : vector<16x64xbf16>, vector<64x32xbf16>, vector<16x32xf32> -> vector<16x32xf32>
    %c0_65 = arith.constant 0 : index
    %c0_66 = arith.constant 0 : index
    %187 = vector.load %arg13[%c0_65, %c0_66] : memref<1x32xf32, #tpu.memory_space<vmem>>, vector<1x32xf32>
    %188 = vector.broadcast %187 : vector<1x32xf32> to vector<16x32xf32>
    %189 = arith.addf %186, %188 : vector<16x32xf32>
    %190 = arith.addf %140, %189 : vector<16x32xf32>
    %c0_67 = arith.constant 0 : index
    %c0_68 = arith.constant 0 : index
    %c0_69 = arith.constant 0 : index
    %191 = vector.load %arg14[%c0_67, %c0_68, %c0_69] : memref<1x16x32xf32, #tpu.memory_space<vmem>>, vector<1x16x32xf32>
    %192 = vector.shape_cast %191 : vector<1x16x32xf32> to vector<16x32xf32>
    %193 = vector.shape_cast %190 : vector<16x32xf32> to vector<1x16x32xf32>
    tpu.vector_store %arg14[%c0_67, %c0_68, %c0_69], %193 {strides = array<i32>} : memref<1x16x32xf32, #tpu.memory_space<vmem>>, vector<1x16x32xf32>,
    return
  }
  func.func @transform_0(%arg0: i32) -> (i32, i32, i32) {
    %c0_i32 = arith.constant 0 : i32
    %c0_i32_0 = arith.constant 0 : i32
    %c0_i32_1 = arith.constant 0 : i32
    return %arg0, %c0_i32, %c0_i32_0 : i32, i32, i32
  }
  func.func @transform_1(%arg0: i32) -> (i32, i32) {
    %c0_i32 = arith.constant 0 : i32
    %c0_i32_0 = arith.constant 0 : i32
    %c0_i32_1 = arith.constant 0 : i32
    return %c0_i32, %c0_i32_0 : i32, i32
  }
  func.func @transform_2(%arg0: i32) -> (i32, i32) {
    %c0_i32 = arith.constant 0 : i32
    %c0_i32_0 = arith.constant 0 : i32
    %c0_i32_1 = arith.constant 0 : i32
    return %c0_i32, %c0_i32_0 : i32, i32
  }
  func.func @transform_3(%arg0: i32) -> (i32, i32) {
    %c0_i32 = arith.constant 0 : i32
    %c0_i32_0 = arith.constant 0 : i32
    %c0_i32_1 = arith.constant 0 : i32
    return %c0_i32, %c0_i32_0 : i32, i32
  }
  func.func @transform_4(%arg0: i32) -> (i32, i32) {
    %c0_i32 = arith.constant 0 : i32
    %c0_i32_0 = arith.constant 0 : i32
    %c0_i32_1 = arith.constant 0 : i32
    return %c0_i32, %c0_i32_0 : i32, i32
  }
  func.func @transform_5(%arg0: i32) -> (i32, i32) {
    %c0_i32 = arith.constant 0 : i32
    %c0_i32_0 = arith.constant 0 : i32
    %c0_i32_1 = arith.constant 0 : i32
    return %c0_i32, %c0_i32_0 : i32, i32
  }
  func.func @transform_6(%arg0: i32) -> (i32, i32) {
    %c0_i32 = arith.constant 0 : i32
    %c0_i32_0 = arith.constant 0 : i32
    %c0_i32_1 = arith.constant 0 : i32
    return %c0_i32, %c0_i32_0 : i32, i32
  }
  func.func @transform_7(%arg0: i32) -> (i32, i32) {
    %c0_i32 = arith.constant 0 : i32
    %c0_i32_0 = arith.constant 0 : i32
    %c0_i32_1 = arith.constant 0 : i32
    return %c0_i32, %c0_i32_0 : i32, i32
  }
  func.func @transform_8(%arg0: i32) -> (i32, i32) {
    %c0_i32 = arith.constant 0 : i32
    %c0_i32_0 = arith.constant 0 : i32
    %c0_i32_1 = arith.constant 0 : i32
    return %c0_i32, %c0_i32_0 : i32, i32
  }
  func.func @transform_9(%arg0: i32) -> (i32, i32) {
    %c0_i32 = arith.constant 0 : i32
    %c0_i32_0 = arith.constant 0 : i32
    %c0_i32_1 = arith.constant 0 : i32
    return %c0_i32, %c0_i32_0 : i32, i32
  }
  func.func @transform_10(%arg0: i32) -> (i32, i32) {
    %c0_i32 = arith.constant 0 : i32
    %c0_i32_0 = arith.constant 0 : i32
    %c0_i32_1 = arith.constant 0 : i32
    return %c0_i32, %c0_i32_0 : i32, i32
  }
  func.func @transform_11(%arg0: i32) -> (i32, i32) {
    %c0_i32 = arith.constant 0 : i32
    %c0_i32_0 = arith.constant 0 : i32
    %c0_i32_1 = arith.constant 0 : i32
    return %c0_i32, %c0_i32_0 : i32, i32
  }
  func.func @transform_12(%arg0: i32) -> (i32, i32) {
    %c0_i32 = arith.constant 0 : i32
    %c0_i32_0 = arith.constant 0 : i32
    %c0_i32_1 = arith.constant 0 : i32
    return %c0_i32, %c0_i32_0 : i32, i32
  }
  func.func @transform_13(%arg0: i32) -> (i32, i32, i32) {
    %c0_i32 = arith.constant 0 : i32
    %c0_i32_0 = arith.constant 0 : i32
    %c0_i32_1 = arith.constant 0 : i32
    return %arg0, %c0_i32, %c0_i32_0 : i32, i32, i32
  }
}

</mosaic_0001>

<llo_original>
// kernel: _lambda_.3
$region0: #{_lambda_.3}
  #allocation0 [shape = 'u32[]', space=smem, size = 0x4, offset = 0x4, fixed_abs, tag = 'smem constant byte address 0x4 - core index']
  #allocation1 [shape = 'u32[144,128]{1,0:T(1,128)}', space=vmem, size = 0x12000, scoped, tag = 'internal scratch']
  %s0 = inlined_call_operand.vmem [shape: f32[2,16,64], index: 0, kind: input, shape index: {}]
  %s1 = inlined_call_operand.vmem [shape: f32[64,32], index: 1, kind: input, shape index: {}]
  %s2 = inlined_call_operand.vmem [shape: f32[1,32], index: 2, kind: input, shape index: {}]
  %s3 = inlined_call_operand.vmem [shape: f32[16,32], index: 3, kind: input, shape index: {}]
  %s4 = inlined_call_operand.vmem [shape: f32[2,16,32], index: 4, kind: output, shape index: {}]
  %s5 = sld [smem:[#allocation0]]
  $region49: #{_lambda_.3} parent=0
    _
  %s7 = ssub.s32 1, %s5
  %s8 = scalar_select 0, %s7, %s5
  loop: start=0, step=1, limit=4
  $region2: #{_lambda_.3} parent=0 // loop_pre_header
    _
  $region3: #{_lambda_.3} parent=0 // loop_header
    %s10 = sphi 0, %s14
    %p11 = scmp.ge.s32.totalorder %s10, 4
    %s20 = sphi 0, %s22
    %s23 = sphi 0, %s20
    %s24 = sphi 0, %s23
    %s40 = sphi 0, %s24
    %s44 = sphi 0, %s44
    %s46 = sphi 0, %s44
    %s47 = sphi 0, %s46
    %s61 = sphi 0, %s47
    %s65 = sphi 0, %s65
    %s67 = sphi 0, %s65
    %s68 = sphi 0, %s67
    %s82 = sphi 0, %s68
    %s86 = sphi 0, %s86
    %s88 = sphi 0, %s86
    %s89 = sphi 0, %s88
    %s103 = sphi 0, %s89
    %s109 = sphi 0, %s111
    %s112 = sphi 0, %s109
    %s113 = sphi 0, %s112
    %s129 = sphi 0, %s113
  $region4: #{_lambda_.3} parent=0 // loop_header_branch
    %13 = sbr.rel (%p11) target = $region8
  $region5: #{_lambda_.3} parent=0 // loop_body
    %s15 = ssub.s32 %s10, 1
    %s16 = ssub.s32 %s10, 2
    %s17 = sadd.s32 %s10, 1
    %s18 = ssub.s32 %s10, %s17
    %p19 = scmp.eq.s32.totalorder %s18, 0
    %s21 = sadd.s32 %s20, 1
    %s22 = scalar_select %p19, %s20, %s21
    %p25 = pneg %p19
    %p26 = scmp.eq.s32.totalorder %s10, 1
    %p27 = por %p25, %p26
    %p28 = scmp.ne.s32.totalorder %s20, %s23
    %p29 = scmp.eq.s32.totalorder %s10, 0
    %p30 = por %p28, %p29
    %p31 = scmp.ne.s32.totalorder %s20, %s23
    %p32 = scmp.eq.s32.totalorder %s15, 1
    %p33 = por %p31, %p32
    %p34 = scmp.ne.s32.totalorder %s23, %s24
    %p35 = scmp.eq.s32.totalorder %s15, 0
    %p36 = por %p34, %p35
    %p37 = scmp.ne.s32.totalorder %s23, %s24
    %p38 = scmp.eq.s32.totalorder %s16, 1
    %p39 = por %p37, %p38
    %p41 = scmp.ne.s32.totalorder %s24, %s40
    %p42 = scmp.eq.s32.totalorder %s16, 0
    %p43 = por %p41, %p42
    %s45 = sadd.s32 %s44, 1
    %p48 = scmp.eq.s32.totalorder %s10, 1
    %p49 = scmp.ne.s32.totalorder %s44, %s46
    %p50 = scmp.eq.s32.totalorder %s10, 0
    %p51 = por %p49, %p50
    %p52 = scmp.ne.s32.totalorder %s44, %s46
    %p53 = scmp.eq.s32.totalorder %s15, 1
    %p54 = por %p52, %p53
    %p55 = scmp.ne.s32.totalorder %s46, %s47
    %p56 = scmp.eq.s32.totalorder %s15, 0
    %p57 = por %p55, %p56
    %p58 = scmp.ne.s32.totalorder %s46, %s47
    %p59 = scmp.eq.s32.totalorder %s16, 1
    %p60 = por %p58, %p59
    %p62 = scmp.ne.s32.totalorder %s47, %s61
    %p63 = scmp.eq.s32.totalorder %s16, 0
    %p64 = por %p62, %p63
    %s66 = sadd.s32 %s65, 1
    %p69 = scmp.eq.s32.totalorder %s10, 1
    %p70 = scmp.ne.s32.totalorder %s65, %s67
    %p71 = scmp.eq.s32.totalorder %s10, 0
    %p72 = por %p70, %p71
    %p73 = scmp.ne.s32.totalorder %s65, %s67
    %p74 = scmp.eq.s32.totalorder %s15, 1
    %p75 = por %p73, %p74
    %p76 = scmp.ne.s32.totalorder %s67, %s68
    %p77 = scmp.eq.s32.totalorder %s15, 0
    %p78 = por %p76, %p77
    %p79 = scmp.ne.s32.totalorder %s67, %s68
    %p80 = scmp.eq.s32.totalorder %s16, 1
    %p81 = por %p79, %p80
    %p83 = scmp.ne.s32.totalorder %s68, %s82
    %p84 = scmp.eq.s32.totalorder %s16, 0
    %p85 = por %p83, %p84
    %s87 = sadd.s32 %s86, 1
    %p90 = scmp.eq.s32.totalorder %s10, 1
    %p91 = scmp.ne.s32.totalorder %s86, %s88
    %p92 = scmp.eq.s32.totalorder %s10, 0
    %p93 = por %p91, %p92
    %p94 = scmp.ne.s32.totalorder %s86, %s88
    %p95 = scmp.eq.s32.totalorder %s15, 1
    %p96 = por %p94, %p95
    %p97 = scmp.ne.s32.totalorder %s88, %s89
    %p98 = scmp.eq.s32.totalorder %s15, 0
    %p99 = por %p97, %p98
    %p100 = scmp.ne.s32.totalorder %s88, %s89
    %p101 = scmp.eq.s32.totalorder %s16, 1
    %p102 = por %p100, %p101
    %p104 = scmp.ne.s32.totalorder %s89, %s103
    %p105 = scmp.eq.s32.totalorder %s16, 0
    %p106 = por %p104, %p105
    %s107 = ssub.s32 %s10, %s17
    %p108 = scmp.eq.s32.totalorder %s107, 0
    %s110 = sadd.s32 %s109, 1
    %s111 = scalar_select %p108, %s109, %s110
    %p114 = pneg %p108
    %p115 = scmp.eq.s32.totalorder %s10, 1
    %p116 = por %p114, %p115
    %p117 = scmp.ne.s32.totalorder %s109, %s112
    %p118 = scmp.eq.s32.totalorder %s10, 0
    %p119 = por %p117, %p118
    %p120 = scmp.ne.s32.totalorder %s109, %s112
    %p121 = scmp.eq.s32.totalorder %s15, 1
    %p122 = por %p120, %p121
    %p123 = scmp.ne.s32.totalorder %s112, %s113
    %p124 = scmp.eq.s32.totalorder %s15, 0
    %p125 = por %p123, %p124
    %p126 = scmp.ne.s32.totalorder %s112, %s113
    %p127 = scmp.eq.s32.totalorder %s16, 1
    %p128 = por %p126, %p127
    %p130 = scmp.ne.s32.totalorder %s113, %s129
    %p131 = scmp.eq.s32.totalorder %s16, 0
    %p132 = por %p130, %p131
    %p133 = scmp.le.s32.totalorder 1, %s10
    %p134 = scmp.lt.s32.totalorder %s10, 3
    %p135 = pnand %p133, %p134
    %p136 = pneg %p135
    // Predicated region
    $region9: #{_lambda_.3} parent=5 // pred_check
      _
    $region10: #{_lambda_.3} parent=5 // pred_check_branch
      %138 = sbr.rel (%p135) target = $region12
    $region11: #{_lambda_.3} parent=5 // pred_region
      %s139 = ssub.s32 %s10, 1
      // Predicated region
      $region13: #{_lambda_.3} parent=11 // pred_check
        %p140 = pneg %p57
      $region14: #{_lambda_.3} parent=11 // pred_check_branch
        %142 = sbr.rel (%p140) target = $region16
      $region15: #{_lambda_.3} parent=11 // pred_region
        _
      $region16: #{_lambda_.3} parent=11 // pred_fallthru
        _
      // Predicated region
      $region17: #{_lambda_.3} parent=11 // pred_check
        %p143 = pneg %p78
      $region18: #{_lambda_.3} parent=11 // pred_check_branch
        %145 = sbr.rel (%p143) target = $region20
      $region19: #{_lambda_.3} parent=11 // pred_region
        _
      $region20: #{_lambda_.3} parent=11 // pred_fallthru
        _
      // Predicated region
      $region21: #{_lambda_.3} parent=11 // pred_check
        %p146 = pneg %p99
      $region22: #{_lambda_.3} parent=11 // pred_check_branch
        %148 = sbr.rel (%p146) target = $region24
      $region23: #{_lambda_.3} parent=11 // pred_region
        _
      $region24: #{_lambda_.3} parent=11 // pred_fallthru
        _
    $region12: #{_lambda_.3} parent=5 // pred_fallthru
      _
    %p149 = scmp.lt.s32.totalorder %s10, 2
    // Predicated region
    $region25: #{_lambda_.3} parent=5 // pred_check
      %p150 = pneg %p149
    $region26: #{_lambda_.3} parent=5 // pred_check_branch
      %152 = sbr.rel (%p150) target = $region28
    $region27: #{_lambda_.3} parent=5 // pred_region
      // Predicated region
      $region29: #{_lambda_.3} parent=27 // pred_check
        %p153 = pneg %p30
      $region30: #{_lambda_.3} parent=27 // pred_check_branch
        %155 = sbr.rel (%p153) target = $region32
      $region31: #{_lambda_.3} parent=27 // pred_region
        %p156 = scmp.lt.s32.totalorder %s10, 1
        %s157 = scalar_select %p156, %s10, 1
        %s158 = smul.addr %s157, 2
        %s159 = smul.addr %s158, 8
        %s160 = scalar_lea.vmem %s0, %s159
      $region32: #{_lambda_.3} parent=27 // pred_fallthru
        _
    $region28: #{_lambda_.3} parent=5 // pred_fallthru
      _
    %p161 = scmp.le.s32.totalorder 1, %s10
    %p162 = scmp.lt.s32.totalorder %s10, 3
    %p163 = pnand %p161, %p162
    %p164 = pneg %p163
    // Predicated region
    $region33: #{_lambda_.3} parent=5 // pred_check
      _
    $region34: #{_lambda_.3} parent=5 // pred_check_branch
      %166 = sbr.rel (%p163) target = $region36
    $region35: #{_lambda_.3} parent=5 // pred_region
      %s167 = ssub.s32 %s10, 1
      %p168 = scmp.lt.s32.totalorder %s15, 1
      %s169 = scalar_select %p168, %s15, 1
      %s170 = smul.addr %s169, 2
      %s171 = smul.addr %s170, 8
      %s172 = scalar_lea.vmem %s0, %s171
      %p173 = pneg %p36
      %p174 = pneg %p33
      %p175 = pneg %p57
      %p176 = pneg %p54
      %p177 = pneg %p78
      %p178 = pneg %p75
      %p179 = pneg %p99
      %p180 = pneg %p96
      %p181 = pneg %p125
      %p182 = pneg %p122
      %p183 = scmp.lt.s32.totalorder %s15, 1
      %s184 = scalar_select %p183, %s15, 1
      %s185 = smul.addr %s184, 2
      %s186 = smul.addr %s185, 8
      %s187 = scalar_lea.vmem %s4, %s186
      %p188 = scmp.lt.s32.totalorder %s15, 1
      %s189 = scalar_select %p188, %s15, 1
      %s190 = smul.addr %s189, 2
      %s191 = smul.addr %s190, 8
      %s192 = scalar_lea.vmem %s0, %s191
      %p193 = scmp.lt.s32.totalorder %s15, 1
      %s194 = scalar_select %p193, %s15, 1
      %s195 = smul.addr %s194, 2
      %s196 = smul.addr %s195, 8
      %s197 = scalar_lea.vmem %s4, %s196
      %v199 = vld [vmem:[%s192] sm:$0xff]
      %v200 = vld [vmem:[%s192 + $0x8] sm:$0xff]
      %v201 = vld [vmem:[%s1] sm:$0xff]
      %v202 = vld [vmem:[%s1 + $0x8] sm:$0xff]
      %v203 = vld [vmem:[%s1 + $0x10] sm:$0xff]
      %v204 = vld [vmem:[%s1 + $0x18] sm:$0xff]
      %v205 = vld [vmem:[%s1 + $0x20] sm:$0xff]
      %v206 = vld [vmem:[%s1 + $0x28] sm:$0xff]
      %v207 = vld [vmem:[%s1 + $0x30] sm:$0xff]
      %v208 = vld [vmem:[%s1 + $0x38] sm:$0xff]
      %v209 = vpack.c.bf16 %v200, %v199
      %v210 = vpack.c.bf16 %v202, %v201
      %v211 = vpack.c.bf16 %v204, %v203
      %v212 = vpack.c.bf16 %v206, %v205
      %v213 = vpack.c.bf16 %v208, %v207
      %v214 = vld [vmem:[%s2] sm:$0x1]
      %v216 = vlaneseq
      %v217 = vshrl.u32 %v216, 7
      %v218 = vsub.s32 0, %v217
      %v219 = vrot.slane %v214, %v218
      %vm221 = vcmask 523264
      %v223 = vsel %vm221, %v209, 0
      %225 = vmatprep.subr.bf16.mxu0 0
      %226 = vmatpush1.bf16.msra.mxu0 %v210
      %227 = vmatprep.subr.bf16.mxu0 0
      %228 = vmatpush1.bf16.msra.mxu0 %v211
      %229 = vmatprep.subr.bf16.mxu0 0
      %230 = vmatpush1.bf16.msra.mxu0 %v212
      %231 = vmatprep.subr.bf16.mxu0 0
      %232 = vmatpush1.bf16.msra.mxu0 %v213
      %233 = vmatprep.subr.bf16.mxu0 0
      %234 = vmatpush1.bf16.msra.mxu0 0
      %235 = vmatprep.subr.bf16.mxu0 0
      %236 = vmatpush1.bf16.msra.mxu0 0
      %237 = vmatprep.subr.bf16.mxu0 0
      %238 = vmatpush1.bf16.msra.mxu0 0
      %239 = vmatprep.subr.bf16.mxu0 0
      %240 = vmatpush1.bf16.msra.mxu0 0
      %241 = vmatprep.subr.bf16.mxu0 0
      %242 = vmatpush1.bf16.msra.mxu0 0
      %243 = vmatprep.subr.bf16.mxu0 0
      %244 = vmatpush1.bf16.msra.mxu0 0
      %245 = vmatprep.subr.bf16.mxu0 0
      %246 = vmatpush1.bf16.msra.mxu0 0
      %247 = vmatprep.subr.bf16.mxu0 0
      %248 = vmatpush1.bf16.msra.mxu0 0
      %249 = vmatprep.subr.bf16.mxu0 0
      %250 = vmatpush1.bf16.msra.mxu0 0
      %251 = vmatprep.subr.bf16.mxu0 0
      %252 = vmatpush1.bf16.msra.mxu0 0
      %253 = vmatprep.subr.bf16.mxu0 0
      %254 = vmatpush1.bf16.msra.mxu0 0
      %255 = vmatprep.subr.bf16.mxu0 0
      %256 = vmatpush1.bf16.msra.mxu0 0
      %257 = vmatprep.mubr.bf16.mxu0 0
      %258 = vmatmul.mubr.bf16.gmra.mrb[0].mxu0 %v223
      %v259 = vpop.f32.mrb[0].mxu0
      %v260 = vadd.f32 %v219, %v259
      %v261 = vpop.f32.mrb[0].mxu0
      %v262 = vpop.f32.mrb[0].mxu0
      %v263 = vadd.f32 %v219, %v262
      %v264 = vpop.f32.mrb[0].mxu0
      %265 = vdwg.mxu0
      %v266 = vld [vmem:[%s3] sm:$0xff]
      %v267 = vld [vmem:[%s3 + $0x8] sm:$0xff]
      %v268 = vadd.f32 %v260, %v266
      %v269 = vadd.f32 %v263, %v267
      %vm270 = vcmask 261120
      %271 = vst.msk [vmem:[%s197] sm:$0xff] %vm270, %v268
      %272 = vst.msk [vmem:[%s197 + $0x8] sm:$0xff] %vm270, %v269
      %p273 = scmp.lt.s32.totalorder %s15, 1
      %s274 = scalar_select %p273, %s15, 1
      %s275 = smul.addr %s274, 2
      %s276 = smul.addr %s275, 8
      %s277 = scalar_lea.vmem %s4, %s276
      // Predicated region
      $region37: #{_lambda_.3} parent=35 // pred_check
        %p278 = pneg %p122
      $region38: #{_lambda_.3} parent=35 // pred_check_branch
        %280 = sbr.rel (%p278) target = $region40
      $region39: #{_lambda_.3} parent=35 // pred_region
        _
      $region40: #{_lambda_.3} parent=35 // pred_fallthru
        _
    $region36: #{_lambda_.3} parent=5 // pred_fallthru
      _
    %p281 = scmp.le.s32.totalorder 2, %s10
    // Predicated region
    $region41: #{_lambda_.3} parent=5 // pred_check
      %p282 = pneg %p281
    $region42: #{_lambda_.3} parent=5 // pred_check_branch
      %284 = sbr.rel (%p282) target = $region44
    $region43: #{_lambda_.3} parent=5 // pred_region
      %s285 = ssub.s32 %s10, 2
      // Predicated region
      $region45: #{_lambda_.3} parent=43 // pred_check
        %p286 = pneg %p128
      $region46: #{_lambda_.3} parent=43 // pred_check_branch
        %288 = sbr.rel (%p286) target = $region48
      $region47: #{_lambda_.3} parent=43 // pred_region
        %p289 = scmp.lt.s32.totalorder %s16, 1
        %s290 = scalar_select %p289, %s16, 1
        %s291 = smul.addr %s290, 2
        %s292 = smul.addr %s291, 8
        %s293 = scalar_lea.vmem %s4, %s292
      $region48: #{_lambda_.3} parent=43 // pred_fallthru
        _
    $region44: #{_lambda_.3} parent=5 // pred_fallthru
      _
  $region6: #{_lambda_.3} parent=0 // loop_footer
    %s14 = sadd.s32 1, %s10
  $region7: #{_lambda_.3} parent=0 // loop_footer_branch
    %9 = sbr.rel target = $region3
  $region8: #{_lambda_.3} parent=0 // loop_exit
    _

// kernel: _lambda_.4
$region0: #{_lambda_.4}
  #allocation0 [shape = 'u32[]', space=smem, size = 0x4, offset = 0x4, fixed_abs, tag = 'smem constant byte address 0x4 - core index']
  #allocation1 [shape = 'u32[144,128]{1,0:T(1,128)}', space=vmem, size = 0x12000, scoped, tag = 'internal scratch']
  %s0 = inlined_call_operand.vmem [shape: f32[2,16,32], index: 0, kind: input, shape index: {}]
  %s1 = inlined_call_operand.vmem [shape: f32[1,32], index: 1, kind: input, shape index: {}]
  %s2 = inlined_call_operand.vmem [shape: f32[1,32], index: 2, kind: input, shape index: {}]
  %s3 = inlined_call_operand.vmem [shape: f32[32,96], index: 3, kind: input, shape index: {}]
  %s4 = inlined_call_operand.vmem [shape: f32[1,96], index: 4, kind: input, shape index: {}]
  %s5 = inlined_call_operand.vmem [shape: f32[32,32], index: 5, kind: input, shape index: {}]
  %s6 = inlined_call_operand.vmem [shape: f32[1,32], index: 6, kind: input, shape index: {}]
  %s7 = inlined_call_operand.vmem [shape: f32[1,32], index: 7, kind: input, shape index: {}]
  %s8 = inlined_call_operand.vmem [shape: f32[1,32], index: 8, kind: input, shape index: {}]
  %s9 = inlined_call_operand.vmem [shape: f32[32,64], index: 9, kind: input, shape index: {}]
  %s10 = inlined_call_operand.vmem [shape: f32[1,64], index: 10, kind: input, shape index: {}]
  %s11 = inlined_call_operand.vmem [shape: f32[64,32], index: 11, kind: input, shape index: {}]
  %s12 = inlined_call_operand.vmem [shape: f32[1,32], index: 12, kind: input, shape index: {}]
  %s13 = inlined_call_operand.vmem [shape: f32[2,16,32], index: 13, kind: output, shape index: {}]
  %s14 = sld [smem:[#allocation0]]
  $region85: #{_lambda_.4} parent=0
    _
  %s16 = ssub.s32 1, %s14
  %s17 = scalar_select 0, %s16, %s14
  loop: start=0, step=1, limit=4
  $region2: #{_lambda_.4} parent=0 // loop_pre_header
    _
  $region3: #{_lambda_.4} parent=0 // loop_header
    %s19 = sphi 0, %s23
    %p20 = scmp.ge.s32.totalorder %s19, 4
    %s29 = sphi 0, %s31
    %s32 = sphi 0, %s29
    %s33 = sphi 0, %s32
    %s49 = sphi 0, %s33
    %s53 = sphi 0, %s53
    %s55 = sphi 0, %s53
    %s56 = sphi 0, %s55
    %s70 = sphi 0, %s56
    %s74 = sphi 0, %s74
    %s76 = sphi 0, %s74
    %s77 = sphi 0, %s76
    %s91 = sphi 0, %s77
    %s95 = sphi 0, %s95
    %s97 = sphi 0, %s95
    %s98 = sphi 0, %s97
    %s112 = sphi 0, %s98
    %s116 = sphi 0, %s116
    %s118 = sphi 0, %s116
    %s119 = sphi 0, %s118
    %s133 = sphi 0, %s119
    %s137 = sphi 0, %s137
    %s139 = sphi 0, %s137
    %s140 = sphi 0, %s139
    %s154 = sphi 0, %s140
    %s158 = sphi 0, %s158
    %s160 = sphi 0, %s158
    %s161 = sphi 0, %s160
    %s175 = sphi 0, %s161
    %s179 = sphi 0, %s179
    %s181 = sphi 0, %s179
    %s182 = sphi 0, %s181
    %s196 = sphi 0, %s182
    %s200 = sphi 0, %s200
    %s202 = sphi 0, %s200
    %s203 = sphi 0, %s202
    %s217 = sphi 0, %s203
    %s221 = sphi 0, %s221
    %s223 = sphi 0, %s221
    %s224 = sphi 0, %s223
    %s238 = sphi 0, %s224
    %s242 = sphi 0, %s242
    %s244 = sphi 0, %s242
    %s245 = sphi 0, %s244
    %s259 = sphi 0, %s245
    %s263 = sphi 0, %s263
    %s265 = sphi 0, %s263
    %s266 = sphi 0, %s265
    %s280 = sphi 0, %s266
    %s284 = sphi 0, %s284
    %s286 = sphi 0, %s284
    %s287 = sphi 0, %s286
    %s301 = sphi 0, %s287
    %s307 = sphi 0, %s309
    %s310 = sphi 0, %s307
    %s311 = sphi 0, %s310
    %s327 = sphi 0, %s311
  $region4: #{_lambda_.4} parent=0 // loop_header_branch
    %22 = sbr.rel (%p20) target = $region8
  $region5: #{_lambda_.4} parent=0 // loop_body
    %s24 = ssub.s32 %s19, 1
    %s25 = ssub.s32 %s19, 2
    %s26 = sadd.s32 %s19, 1
    %s27 = ssub.s32 %s19, %s26
    %p28 = scmp.eq.s32.totalorder %s27, 0
    %s30 = sadd.s32 %s29, 1
    %s31 = scalar_select %p28, %s29, %s30
    %p34 = pneg %p28
    %p35 = scmp.eq.s32.totalorder %s19, 1
    %p36 = por %p34, %p35
    %p37 = scmp.ne.s32.totalorder %s29, %s32
    %p38 = scmp.eq.s32.totalorder %s19, 0
    %p39 = por %p37, %p38
    %p40 = scmp.ne.s32.totalorder %s29, %s32
    %p41 = scmp.eq.s32.totalorder %s24, 1
    %p42 = por %p40, %p41
    %p43 = scmp.ne.s32.totalorder %s32, %s33
    %p44 = scmp.eq.s32.totalorder %s24, 0
    %p45 = por %p43, %p44
    %p46 = scmp.ne.s32.totalorder %s32, %s33
    %p47 = scmp.eq.s32.totalorder %s25, 1
    %p48 = por %p46, %p47
    %p50 = scmp.ne.s32.totalorder %s33, %s49
    %p51 = scmp.eq.s32.totalorder %s25, 0
    %p52 = por %p50, %p51
    %s54 = sadd.s32 %s53, 1
    %p57 = scmp.eq.s32.totalorder %s19, 1
    %p58 = scmp.ne.s32.totalorder %s53, %s55
    %p59 = scmp.eq.s32.totalorder %s19, 0
    %p60 = por %p58, %p59
    %p61 = scmp.ne.s32.totalorder %s53, %s55
    %p62 = scmp.eq.s32.totalorder %s24, 1
    %p63 = por %p61, %p62
    %p64 = scmp.ne.s32.totalorder %s55, %s56
    %p65 = scmp.eq.s32.totalorder %s24, 0
    %p66 = por %p64, %p65
    %p67 = scmp.ne.s32.totalorder %s55, %s56
    %p68 = scmp.eq.s32.totalorder %s25, 1
    %p69 = por %p67, %p68
    %p71 = scmp.ne.s32.totalorder %s56, %s70
    %p72 = scmp.eq.s32.totalorder %s25, 0
    %p73 = por %p71, %p72
    %s75 = sadd.s32 %s74, 1
    %p78 = scmp.eq.s32.totalorder %s19, 1
    %p79 = scmp.ne.s32.totalorder %s74, %s76
    %p80 = scmp.eq.s32.totalorder %s19, 0
    %p81 = por %p79, %p80
    %p82 = scmp.ne.s32.totalorder %s74, %s76
    %p83 = scmp.eq.s32.totalorder %s24, 1
    %p84 = por %p82, %p83
    %p85 = scmp.ne.s32.totalorder %s76, %s77
    %p86 = scmp.eq.s32.totalorder %s24, 0
    %p87 = por %p85, %p86
    %p88 = scmp.ne.s32.totalorder %s76, %s77
    %p89 = scmp.eq.s32.totalorder %s25, 1
    %p90 = por %p88, %p89
    %p92 = scmp.ne.s32.totalorder %s77, %s91
    %p93 = scmp.eq.s32.totalorder %s25, 0
    %p94 = por %p92, %p93
    %s96 = sadd.s32 %s95, 1
    %p99 = scmp.eq.s32.totalorder %s19, 1
    %p100 = scmp.ne.s32.totalorder %s95, %s97
    %p101 = scmp.eq.s32.totalorder %s19, 0
    %p102 = por %p100, %p101
    %p103 = scmp.ne.s32.totalorder %s95, %s97
    %p104 = scmp.eq.s32.totalorder %s24, 1
    %p105 = por %p103, %p104
    %p106 = scmp.ne.s32.totalorder %s97, %s98
    %p107 = scmp.eq.s32.totalorder %s24, 0
    %p108 = por %p106, %p107
    %p109 = scmp.ne.s32.totalorder %s97, %s98
    %p110 = scmp.eq.s32.totalorder %s25, 1
    %p111 = por %p109, %p110
    %p113 = scmp.ne.s32.totalorder %s98, %s112
    %p114 = scmp.eq.s32.totalorder %s25, 0
    %p115 = por %p113, %p114
    %s117 = sadd.s32 %s116, 1
    %p120 = scmp.eq.s32.totalorder %s19, 1
    %p121 = scmp.ne.s32.totalorder %s116, %s118
    %p122 = scmp.eq.s32.totalorder %s19, 0
    %p123 = por %p121, %p122
    %p124 = scmp.ne.s32.totalorder %s116, %s118
    %p125 = scmp.eq.s32.totalorder %s24, 1
    %p126 = por %p124, %p125
    %p127 = scmp.ne.s32.totalorder %s118, %s119
    %p128 = scmp.eq.s32.totalorder %s24, 0
    %p129 = por %p127, %p128
    %p130 = scmp.ne.s32.totalorder %s118, %s119
    %p131 = scmp.eq.s32.totalorder %s25, 1
    %p132 = por %p130, %p131
    %p134 = scmp.ne.s32.totalorder %s119, %s133
    %p135 = scmp.eq.s32.totalorder %s25, 0
    %p136 = por %p134, %p135
    %s138 = sadd.s32 %s137, 1
    %p141 = scmp.eq.s32.totalorder %s19, 1
    %p142 = scmp.ne.s32.totalorder %s137, %s139
    %p143 = scmp.eq.s32.totalorder %s19, 0
    %p144 = por %p142, %p143
    %p145 = scmp.ne.s32.totalorder %s137, %s139
    %p146 = scmp.eq.s32.totalorder %s24, 1
    %p147 = por %p145, %p146
    %p148 = scmp.ne.s32.totalorder %s139, %s140
    %p149 = scmp.eq.s32.totalorder %s24, 0
    %p150 = por %p148, %p149
    %p151 = scmp.ne.s32.totalorder %s139, %s140
    %p152 = scmp.eq.s32.totalorder %s25, 1
    %p153 = por %p151, %p152
    %p155 = scmp.ne.s32.totalorder %s140, %s154
    %p156 = scmp.eq.s32.totalorder %s25, 0
    %p157 = por %p155, %p156
    %s159 = sadd.s32 %s158, 1
    %p162 = scmp.eq.s32.totalorder %s19, 1
    %p163 = scmp.ne.s32.totalorder %s158, %s160
    %p164 = scmp.eq.s32.totalorder %s19, 0
    %p165 = por %p163, %p164
    %p166 = scmp.ne.s32.totalorder %s158, %s160
    %p167 = scmp.eq.s32.totalorder %s24, 1
    %p168 = por %p166, %p167
    %p169 = scmp.ne.s32.totalorder %s160, %s161
    %p170 = scmp.eq.s32.totalorder %s24, 0
    %p171 = por %p169, %p170
    %p172 = scmp.ne.s32.totalorder %s160, %s161
    %p173 = scmp.eq.s32.totalorder %s25, 1
    %p174 = por %p172, %p173
    %p176 = scmp.ne.s32.totalorder %s161, %s175
    %p177 = scmp.eq.s32.totalorder %s25, 0
    %p178 = por %p176, %p177
    %s180 = sadd.s32 %s179, 1
    %p183 = scmp.eq.s32.totalorder %s19, 1
    %p184 = scmp.ne.s32.totalorder %s179, %s181
    %p185 = scmp.eq.s32.totalorder %s19, 0
    %p186 = por %p184, %p185
    %p187 = scmp.ne.s32.totalorder %s179, %s181
    %p188 = scmp.eq.s32.totalorder %s24, 1
    %p189 = por %p187, %p188
    %p190 = scmp.ne.s32.totalorder %s181, %s182
    %p191 = scmp.eq.s32.totalorder %s24, 0
    %p192 = por %p190, %p191
    %p193 = scmp.ne.s32.totalorder %s181, %s182
    %p194 = scmp.eq.s32.totalorder %s25, 1
    %p195 = por %p193, %p194
    %p197 = scmp.ne.s32.totalorder %s182, %s196
    %p198 = scmp.eq.s32.totalorder %s25, 0
    %p199 = por %p197, %p198
    %s201 = sadd.s32 %s200, 1
    %p204 = scmp.eq.s32.totalorder %s19, 1
    %p205 = scmp.ne.s32.totalorder %s200, %s202
    %p206 = scmp.eq.s32.totalorder %s19, 0
    %p207 = por %p205, %p206
    %p208 = scmp.ne.s32.totalorder %s200, %s202
    %p209 = scmp.eq.s32.totalorder %s24, 1
    %p210 = por %p208, %p209
    %p211 = scmp.ne.s32.totalorder %s202, %s203
    %p212 = scmp.eq.s32.totalorder %s24, 0
    %p213 = por %p211, %p212
    %p214 = scmp.ne.s32.totalorder %s202, %s203
    %p215 = scmp.eq.s32.totalorder %s25, 1
    %p216 = por %p214, %p215
    %p218 = scmp.ne.s32.totalorder %s203, %s217
    %p219 = scmp.eq.s32.totalorder %s25, 0
    %p220 = por %p218, %p219
    %s222 = sadd.s32 %s221, 1
    %p225 = scmp.eq.s32.totalorder %s19, 1
    %p226 = scmp.ne.s32.totalorder %s221, %s223
    %p227 = scmp.eq.s32.totalorder %s19, 0
    %p228 = por %p226, %p227
    %p229 = scmp.ne.s32.totalorder %s221, %s223
    %p230 = scmp.eq.s32.totalorder %s24, 1
    %p231 = por %p229, %p230
    %p232 = scmp.ne.s32.totalorder %s223, %s224
    %p233 = scmp.eq.s32.totalorder %s24, 0
    %p234 = por %p232, %p233
    %p235 = scmp.ne.s32.totalorder %s223, %s224
    %p236 = scmp.eq.s32.totalorder %s25, 1
    %p237 = por %p235, %p236
    %p239 = scmp.ne.s32.totalorder %s224, %s238
    %p240 = scmp.eq.s32.totalorder %s25, 0
    %p241 = por %p239, %p240
    %s243 = sadd.s32 %s242, 1
    %p246 = scmp.eq.s32.totalorder %s19, 1
    %p247 = scmp.ne.s32.totalorder %s242, %s244
    %p248 = scmp.eq.s32.totalorder %s19, 0
    %p249 = por %p247, %p248
    %p250 = scmp.ne.s32.totalorder %s242, %s244
    %p251 = scmp.eq.s32.totalorder %s24, 1
    %p252 = por %p250, %p251
    %p253 = scmp.ne.s32.totalorder %s244, %s245
    %p254 = scmp.eq.s32.totalorder %s24, 0
    %p255 = por %p253, %p254
    %p256 = scmp.ne.s32.totalorder %s244, %s245
    %p257 = scmp.eq.s32.totalorder %s25, 1
    %p258 = por %p256, %p257
    %p260 = scmp.ne.s32.totalorder %s245, %s259
    %p261 = scmp.eq.s32.totalorder %s25, 0
    %p262 = por %p260, %p261
    %s264 = sadd.s32 %s263, 1
    %p267 = scmp.eq.s32.totalorder %s19, 1
    %p268 = scmp.ne.s32.totalorder %s263, %s265
    %p269 = scmp.eq.s32.totalorder %s19, 0
    %p270 = por %p268, %p269
    %p271 = scmp.ne.s32.totalorder %s263, %s265
    %p272 = scmp.eq.s32.totalorder %s24, 1
    %p273 = por %p271, %p272
    %p274 = scmp.ne.s32.totalorder %s265, %s266
    %p275 = scmp.eq.s32.totalorder %s24, 0
    %p276 = por %p274, %p275
    %p277 = scmp.ne.s32.totalorder %s265, %s266
    %p278 = scmp.eq.s32.totalorder %s25, 1
    %p279 = por %p277, %p278
    %p281 = scmp.ne.s32.totalorder %s266, %s280
    %p282 = scmp.eq.s32.totalorder %s25, 0
    %p283 = por %p281, %p282
    %s285 = sadd.s32 %s284, 1
    %p288 = scmp.eq.s32.totalorder %s19, 1
    %p289 = scmp.ne.s32.totalorder %s284, %s286
    %p290 = scmp.eq.s32.totalorder %s19, 0
    %p291 = por %p289, %p290
    %p292 = scmp.ne.s32.totalorder %s284, %s286
    %p293 = scmp.eq.s32.totalorder %s24, 1
    %p294 = por %p292, %p293
    %p295 = scmp.ne.s32.totalorder %s286, %s287
    %p296 = scmp.eq.s32.totalorder %s24, 0
    %p297 = por %p295, %p296
    %p298 = scmp.ne.s32.totalorder %s286, %s287
    %p299 = scmp.eq.s32.totalorder %s25, 1
    %p300 = por %p298, %p299
    %p302 = scmp.ne.s32.totalorder %s287, %s301
    %p303 = scmp.eq.s32.totalorder %s25, 0
    %p304 = por %p302, %p303
    %s305 = ssub.s32 %s19, %s26
    %p306 = scmp.eq.s32.totalorder %s305, 0
    %s308 = sadd.s32 %s307, 1
    %s309 = scalar_select %p306, %s307, %s308
    %p312 = pneg %p306
    %p313 = scmp.eq.s32.totalorder %s19, 1
    %p314 = por %p312, %p313
    %p315 = scmp.ne.s32.totalorder %s307, %s310
    %p316 = scmp.eq.s32.totalorder %s19, 0
    %p317 = por %p315, %p316
    %p318 = scmp.ne.s32.totalorder %s307, %s310
    %p319 = scmp.eq.s32.totalorder %s24, 1
    %p320 = por %p318, %p319
    %p321 = scmp.ne.s32.totalorder %s310, %s311
    %p322 = scmp.eq.s32.totalorder %s24, 0
    %p323 = por %p321, %p322
    %p324 = scmp.ne.s32.totalorder %s310, %s311
    %p325 = scmp.eq.s32.totalorder %s25, 1
    %p326 = por %p324, %p325
    %p328 = scmp.ne.s32.totalorder %s311, %s327
    %p329 = scmp.eq.s32.totalorder %s25, 0
    %p330 = por %p328, %p329
    %p331 = scmp.le.s32.totalorder 1, %s19
    %p332 = scmp.lt.s32.totalorder %s19, 3
    %p333 = pnand %p331, %p332
    %p334 = pneg %p333
    // Predicated region
    $region9: #{_lambda_.4} parent=5 // pred_check
      _
    $region10: #{_lambda_.4} parent=5 // pred_check_branch
      %336 = sbr.rel (%p333) target = $region12
    $region11: #{_lambda_.4} parent=5 // pred_region
      %s337 = ssub.s32 %s19, 1
      // Predicated region
      $region13: #{_lambda_.4} parent=11 // pred_check
        %p338 = pneg %p66
      $region14: #{_lambda_.4} parent=11 // pred_check_branch
        %340 = sbr.rel (%p338) target = $region16
      $region15: #{_lambda_.4} parent=11 // pred_region
        _
      $region16: #{_lambda_.4} parent=11 // pred_fallthru
        _
      // Predicated region
      $region17: #{_lambda_.4} parent=11 // pred_check
        %p341 = pneg %p87
      $region18: #{_lambda_.4} parent=11 // pred_check_branch
        %343 = sbr.rel (%p341) target = $region20
      $region19: #{_lambda_.4} parent=11 // pred_region
        _
      $region20: #{_lambda_.4} parent=11 // pred_fallthru
        _
      // Predicated region
      $region21: #{_lambda_.4} parent=11 // pred_check
        %p344 = pneg %p108
      $region22: #{_lambda_.4} parent=11 // pred_check_branch
        %346 = sbr.rel (%p344) target = $region24
      $region23: #{_lambda_.4} parent=11 // pred_region
        _
      $region24: #{_lambda_.4} parent=11 // pred_fallthru
        _
      // Predicated region
      $region25: #{_lambda_.4} parent=11 // pred_check
        %p347 = pneg %p129
      $region26: #{_lambda_.4} parent=11 // pred_check_branch
        %349 = sbr.rel (%p347) target = $region28
      $region27: #{_lambda_.4} parent=11 // pred_region
        _
      $region28: #{_lambda_.4} parent=11 // pred_fallthru
        _
      // Predicated region
      $region29: #{_lambda_.4} parent=11 // pred_check
        %p350 = pneg %p150
      $region30: #{_lambda_.4} parent=11 // pred_check_branch
        %352 = sbr.rel (%p350) target = $region32
      $region31: #{_lambda_.4} parent=11 // pred_region
        _
      $region32: #{_lambda_.4} parent=11 // pred_fallthru
        _
      // Predicated region
      $region33: #{_lambda_.4} parent=11 // pred_check
        %p353 = pneg %p171
      $region34: #{_lambda_.4} parent=11 // pred_check_branch
        %355 = sbr.rel (%p353) target = $region36
      $region35: #{_lambda_.4} parent=11 // pred_region
        _
      $region36: #{_lambda_.4} parent=11 // pred_fallthru
        _
      // Predicated region
      $region37: #{_lambda_.4} parent=11 // pred_check
        %p356 = pneg %p192
      $region38: #{_lambda_.4} parent=11 // pred_check_branch
        %358 = sbr.rel (%p356) target = $region40
      $region39: #{_lambda_.4} parent=11 // pred_region
        _
      $region40: #{_lambda_.4} parent=11 // pred_fallthru
        _
      // Predicated region
      $region41: #{_lambda_.4} parent=11 // pred_check
        %p359 = pneg %p213
      $region42: #{_lambda_.4} parent=11 // pred_check_branch
        %361 = sbr.rel (%p359) target = $region44
      $region43: #{_lambda_.4} parent=11 // pred_region
        _
      $region44: #{_lambda_.4} parent=11 // pred_fallthru
        _
      // Predicated region
      $region45: #{_lambda_.4} parent=11 // pred_check
        %p362 = pneg %p234
      $region46: #{_lambda_.4} parent=11 // pred_check_branch
        %364 = sbr.rel (%p362) target = $region48
      $region47: #{_lambda_.4} parent=11 // pred_region
        _
      $region48: #{_lambda_.4} parent=11 // pred_fallthru
        _
      // Predicated region
      $region49: #{_lambda_.4} parent=11 // pred_check
        %p365 = pneg %p255
      $region50: #{_lambda_.4} parent=11 // pred_check_branch
        %367 = sbr.rel (%p365) target = $region52
      $region51: #{_lambda_.4} parent=11 // pred_region
        _
      $region52: #{_lambda_.4} parent=11 // pred_fallthru
        _
      // Predicated region
      $region53: #{_lambda_.4} parent=11 // pred_check
        %p368 = pneg %p276
      $region54: #{_lambda_.4} parent=11 // pred_check_branch
        %370 = sbr.rel (%p368) target = $region56
      $region55: #{_lambda_.4} parent=11 // pred_region
        _
      $region56: #{_lambda_.4} parent=11 // pred_fallthru
        _
      // Predicated region
      $region57: #{_lambda_.4} parent=11 // pred_check
        %p371 = pneg %p297
      $region58: #{_lambda_.4} parent=11 // pred_check_branch
        %373 = sbr.rel (%p371) target = $region60
      $region59: #{_lambda_.4} parent=11 // pred_region
        _
      $region60: #{_lambda_.4} parent=11 // pred_fallthru
        _
    $region12: #{_lambda_.4} parent=5 // pred_fallthru
      _
    %p374 = scmp.lt.s32.totalorder %s19, 2
    // Predicated region
    $region61: #{_lambda_.4} parent=5 // pred_check
      %p375 = pneg %p374
    $region62: #{_lambda_.4} parent=5 // pred_check_branch
      %377 = sbr.rel (%p375) target = $region64
    $region63: #{_lambda_.4} parent=5 // pred_region
      // Predicated region
      $region65: #{_lambda_.4} parent=63 // pred_check
        %p378 = pneg %p39
      $region66: #{_lambda_.4} parent=63 // pred_check_branch
        %380 = sbr.rel (%p378) target = $region68
      $region67: #{_lambda_.4} parent=63 // pred_region
        %p381 = scmp.lt.s32.totalorder %s19, 1
        %s382 = scalar_select %p381, %s19, 1
        %s383 = smul.addr %s382, 2
        %s384 = smul.addr %s383, 8
        %s385 = scalar_lea.vmem %s0, %s384
      $region68: #{_lambda_.4} parent=63 // pred_fallthru
        _
    $region64: #{_lambda_.4} parent=5 // pred_fallthru
      _
    %p386 = scmp.le.s32.totalorder 1, %s19
    %p387 = scmp.lt.s32.totalorder %s19, 3
    %p388 = pnand %p386, %p387
    %p389 = pneg %p388
    // Predicated region
    $region69: #{_lambda_.4} parent=5 // pred_check
      _
    $region70: #{_lambda_.4} parent=5 // pred_check_branch
      %391 = sbr.rel (%p388) target = $region72
    $region71: #{_lambda_.4} parent=5 // pred_region
      %s392 = ssub.s32 %s19, 1
      %p393 = scmp.lt.s32.totalorder %s24, 1
      %s394 = scalar_select %p393, %s24, 1
      %s395 = smul.addr %s394, 2
      %s396 = smul.addr %s395, 8
      %s397 = scalar_lea.vmem %s0, %s396
      %p398 = pneg %p45
      %p399 = pneg %p42
      %p400 = pneg %p66
      %p401 = pneg %p63
      %p402 = pneg %p87
      %p403 = pneg %p84
      %p404 = pneg %p108
      %p405 = pneg %p105
      %p406 = pneg %p129
      %p407 = pneg %p126
      %p408 = pneg %p150
      %p409 = pneg %p147
      %p410 = pneg %p171
      %p411 = pneg %p168
      %p412 = pneg %p192
      %p413 = pneg %p189
      %p414 = pneg %p213
      %p415 = pneg %p210
      %p416 = pneg %p234
      %p417 = pneg %p231
      %p418 = pneg %p255
      %p419 = pneg %p252
      %p420 = pneg %p276
      %p421 = pneg %p273
      %p422 = pneg %p297
      %p423 = pneg %p294
      %p424 = pneg %p323
      %p425 = pneg %p320
      %p426 = scmp.lt.s32.totalorder %s24, 1
      %s427 = scalar_select %p426, %s24, 1
      %s428 = smul.addr %s427, 2
      %s429 = smul.addr %s428, 8
      %s430 = scalar_lea.vmem %s13, %s429
      %p431 = scmp.lt.s32.totalorder %s24, 1
      %s432 = scalar_select %p431, %s24, 1
      %s433 = smul.addr %s432, 2
      %s434 = smul.addr %s433, 8
      %s435 = scalar_lea.vmem %s0, %s434
      %p436 = scmp.lt.s32.totalorder %s24, 1
      %s437 = scalar_select %p436, %s24, 1
      %s438 = smul.addr %s437, 2
      %s439 = smul.addr %s438, 8
      %s440 = scalar_lea.vmem %s13, %s439
      %v442 = vld [vmem:[%s435] sm:$0xff]
      %v443 = vld [vmem:[%s435 + $0x8] sm:$0xff]
      %v444 = vld [vmem:[%s1] sm:$0x1]
      %v445 = vld [vmem:[%s2] sm:$0x1]
      %vm446 = vcmask 261120
      %v447 = vsel %vm446, %v442, 0.0
      %448 = vadd.xlane.f32.xlu0 %v447
      %v449 = vpop.xlane.xlu0 %448
      %v450 = vsel %vm446, %v443, 0.0
      %451 = vadd.xlane.f32.xlu0 %v450
      %v452 = vpop.xlane.xlu0 %451
      %v453 = vrcp.pop 32.0
      %v454 = vmul.f32 %v449, %v453
      %v455 = vmul.f32 %v452, %v453
      %v456 = vsub.f32 %v442, %v454
      %v457 = vsub.f32 %v443, %v455
      %v458 = vmul.f32 %v456, %v456
      %v459 = vmul.f32 %v457, %v457
      %v460 = vsel %vm446, %v458, 0.0
      %461 = vadd.xlane.f32.xlu0 %v460
      %v462 = vpop.xlane.xlu0 %461
      %v463 = vsel %vm446, %v459, 0.0
      %464 = vadd.xlane.f32.xlu0 %v463
      %v465 = vpop.xlane.xlu0 %464
      %v466 = vmul.f32 %v462, %v453
      %v467 = vmul.f32 %v465, %v453
      %v468 = vadd.f32 %v466, 1e-05
      %v469 = vadd.f32 %v467, 1e-05
      %v470 = vrsqrt.pop %v468
      %v471 = vrsqrt.pop %v469
      %v472 = vmul.f32 %v456, %v470
      %v473 = vmul.f32 %v457, %v471
      %v475 = vlaneseq
      %v476 = vshrl.u32 %v475, 7
      %v477 = vsub.s32 0, %v476
      %v478 = vrot.slane %v444, %v477
      %v480 = vmul.f32 %v472, %v478
      %v481 = vmul.f32 %v473, %v478
      %v483 = vlaneseq
      %v484 = vshrl.u32 %v483, 7
      %v485 = vsub.s32 0, %v484
      %v486 = vrot.slane %v445, %v485
      %v488 = vadd.f32 %v480, %v486
      %v489 = vadd.f32 %v481, %v486
      %v490 = vld [vmem:[%s3] sm:$0xff]
      %v491 = vld [vmem:[%s3 + $0x8] sm:$0xff]
      %v492 = vld [vmem:[%s3 + $0x10] sm:$0xff]
      %v493 = vld [vmem:[%s3 + $0x18] sm:$0xff]
      %v494 = vpack.c.bf16 %v489, %v488
      %v495 = vpack.c.bf16 %v491, %v490
      %v496 = vpack.c.bf16 %v493, %v492
      %v497 = vld [vmem:[%s4] sm:$0x1]
      %v499 = vlaneseq
      %v500 = vshrl.u32 %v499, 7
      %v501 = vsub.s32 0, %v500
      %v502 = vrot.slane %v497, %v501
      %v505 = vsel %vm446, %v494, 0
      %507 = vmatprep.subr.bf16.mxu0 0
      %508 = vmatpush1.bf16.msra.mxu0 %v495
      %509 = vmatprep.subr.bf16.mxu0 0
      %510 = vmatpush1.bf16.msra.mxu0 %v496
      %511 = vmatprep.subr.bf16.mxu0 0
      %512 = vmatpush1.bf16.msra.mxu0 0
      %513 = vmatprep.subr.bf16.mxu0 0
      %514 = vmatpush1.bf16.msra.mxu0 0
      %515 = vmatprep.subr.bf16.mxu0 0
      %516 = vmatpush1.bf16.msra.mxu0 0
      %517 = vmatprep.subr.bf16.mxu0 0
      %518 = vmatpush1.bf16.msra.mxu0 0
      %519 = vmatprep.subr.bf16.mxu0 0
      %520 = vmatpush1.bf16.msra.mxu0 0
      %521 = vmatprep.subr.bf16.mxu0 0
      %522 = vmatpush1.bf16.msra.mxu0 0
      %523 = vmatprep.subr.bf16.mxu0 0
      %524 = vmatpush1.bf16.msra.mxu0 0
      %525 = vmatprep.subr.bf16.mxu0 0
      %526 = vmatpush1.bf16.msra.mxu0 0
      %527 = vmatprep.subr.bf16.mxu0 0
      %528 = vmatpush1.bf16.msra.mxu0 0
      %529 = vmatprep.subr.bf16.mxu0 0
      %530 = vmatpush1.bf16.msra.mxu0 0
      %531 = vmatprep.subr.bf16.mxu0 0
      %532 = vmatpush1.bf16.msra.mxu0 0
      %533 = vmatprep.subr.bf16.mxu0 0
      %534 = vmatpush1.bf16.msra.mxu0 0
      %535 = vmatprep.subr.bf16.mxu0 0
      %536 = vmatpush1.bf16.msra.mxu0 0
      %537 = vmatprep.subr.bf16.mxu0 0
      %538 = vmatpush1.bf16.msra.mxu0 0
      %539 = vmatprep.mubr.bf16.mxu0 0
      %540 = vmatmul.mubr.bf16.gmra.mrb[0].mxu0 %v505
      %v541 = vpop.f32.mrb[0].mxu0
      %v542 = vadd.f32 %v502, %v541
      %v543 = vpop.f32.mrb[0].mxu0
      %v544 = vpop.f32.mrb[0].mxu0
      %v545 = vadd.f32 %v502, %v544
      %v546 = vpop.f32.mrb[0].mxu0
      %547 = vdwg.mxu0
      %v548 = vld [vmem:[%s5] sm:$0xff]
      %v549 = vld [vmem:[%s5 + $0x8] sm:$0xff]
      %v550 = vld [vmem:[%s5 + $0x10] sm:$0xff]
      %v551 = vld [vmem:[%s5 + $0x18] sm:$0xff]
      %v552 = vpack.c.bf16 %v545, %v542
      %554 = vrot.lane.b32.xlu0 %v552, 96
      %v555 = vpop.permute.xlu0 %554
      %vm556 = vcmask 64512
      %v558 = vsel %vm556, %v552, 0
      %v561 = vsel %vm556, %v555, 0
      %563 = vmatprep.subr.bf16.mxu0 0
      %564 = vmatpush1.bf16.xpose.msra.mxu0 %v561
      %565 = vmatprep.subr.bf16.mxu0 0
      %566 = vmatpush1.bf16.xpose.msra.mxu0 0
      %567 = vmatprep.subr.bf16.mxu0 0
      %568 = vmatpush1.bf16.xpose.msra.mxu0 0
      %569 = vmatprep.subr.bf16.mxu0 0
      %570 = vmatpush1.bf16.xpose.msra.mxu0 0
      %571 = vmatprep.subr.bf16.mxu0 0
      %572 = vmatpush1.bf16.xpose.msra.mxu0 0
      %573 = vmatprep.subr.bf16.mxu0 0
      %574 = vmatpush1.bf16.xpose.msra.mxu0 0
      %575 = vmatprep.subr.bf16.mxu0 0
      %576 = vmatpush1.bf16.xpose.msra.mxu0 0
      %577 = vmatprep.subr.bf16.mxu0 0
      %578 = vmatpush1.bf16.xpose.msra.mxu0 0
      %579 = vmatprep.subr.bf16.mxu0 0
      %580 = vmatpush1.bf16.xpose.msra.mxu0 0
      %581 = vmatprep.subr.bf16.mxu0 0
      %582 = vmatpush1.bf16.xpose.msra.mxu0 0
      %583 = vmatprep.subr.bf16.mxu0 0
      %584 = vmatpush1.bf16.xpose.msra.mxu0 0
      %585 = vmatprep.subr.bf16.mxu0 0
      %586 = vmatpush1.bf16.xpose.msra.mxu0 0
      %587 = vmatprep.subr.bf16.mxu0 0
      %588 = vmatpush1.bf16.xpose.msra.mxu0 0
      %589 = vmatprep.subr.bf16.mxu0 0
      %590 = vmatpush1.bf16.xpose.msra.mxu0 0
      %591 = vmatprep.subr.bf16.mxu0 0
      %592 = vmatpush1.bf16.xpose.msra.mxu0 0
      %593 = vmatprep.subr.bf16.mxu0 0
      %594 = vmatpush1.bf16.xpose.msra.mxu0 0
      %595 = vmatprep.mubr.bf16.mxu0 0
      %596 = vmatmul.mubr.bf16.gmra.mrb[0].mxu0 %v558
      %v597 = vpop.f32.mrb[0].mxu0
      %v598 = vadd.f32 0.0, %v597
      %v599 = vpop.f32.mrb[0].mxu0
      %v600 = vpop.f32.mrb[0].mxu0
      %v601 = vadd.f32 0.0, %v600
      %v602 = vpop.f32.mrb[0].mxu0
      %603 = vdwg.mxu0
      %v604 = vmul.f32 %v598, 0.35355338
      %v605 = vmul.f32 %v601, 0.35355338
      %vm606 = vcmask 130048
      %v607 = vsel %vm606, %v604, -inf
      %608 = vmax.xlane.f32.xlu0 %v607
      %v609 = vpop.xlane.xlu0 %608
      %v610 = vsel %vm606, %v605, -inf
      %611 = vmax.xlane.f32.xlu0 %v610
      %v612 = vpop.xlane.xlu0 %611
      %v613 = vsub.f32 %v604, %v609
      %v614 = vsub.f32 %v605, %v612
      %v615 = vmul.f32 %v613, 1.442695
      %v616 = vpow.pop %v615
      %v617 = vmul.f32 %v614, 1.442695
      %v618 = vpow.pop %v617
      %v619 = vsel %vm606, %v616, 0.0
      %620 = vadd.xlane.f32.xlu0 %v619
      %v621 = vpop.xlane.xlu0 %620
      %v622 = vsel %vm606, %v618, 0.0
      %623 = vadd.xlane.f32.xlu0 %v622
      %v624 = vpop.xlane.xlu0 %623
      %v625 = vrcp.pop %v621
      %v626 = vrcp.pop %v624
      %v627 = vmul.f32 %v616, %v625
      %v628 = vmul.f32 %v618, %v626
      %v629 = vpack.c.bf16 %v628, %v627
      %630 = vrot.lane.b32.xlu0 %v552, 64
      %v631 = vpop.permute.xlu0 %630
      %v634 = vsel %vm606, %v629, 0
      %636 = vmatprep.subr.bf16.mxu0 0
      %637 = vmatpush1.bf16.msra.mxu0 %v631
      %638 = vmatprep.subr.bf16.mxu0 0
      %639 = vmatpush1.bf16.msra.mxu0 0
      %640 = vmatprep.subr.bf16.mxu0 0
      %641 = vmatpush1.bf16.msra.mxu0 0
      %642 = vmatprep.subr.bf16.mxu0 0
      %643 = vmatpush1.bf16.msra.mxu0 0
      %644 = vmatprep.subr.bf16.mxu0 0
      %645 = vmatpush1.bf16.msra.mxu0 0
      %646 = vmatprep.subr.bf16.mxu0 0
      %647 = vmatpush1.bf16.msra.mxu0 0
      %648 = vmatprep.subr.bf16.mxu0 0
      %649 = vmatpush1.bf16.msra.mxu0 0
      %650 = vmatprep.subr.bf16.mxu0 0
      %651 = vmatpush1.bf16.msra.mxu0 0
      %652 = vmatprep.subr.bf16.mxu0 0
      %653 = vmatpush1.bf16.msra.mxu0 0
      %654 = vmatprep.subr.bf16.mxu0 0
      %655 = vmatpush1.bf16.msra.mxu0 0
      %656 = vmatprep.subr.bf16.mxu0 0
      %657 = vmatpush1.bf16.msra.mxu0 0
      %658 = vmatprep.subr.bf16.mxu0 0
      %659 = vmatpush1.bf16.msra.mxu0 0
      %660 = vmatprep.subr.bf16.mxu0 0
      %661 = vmatpush1.bf16.msra.mxu0 0
      %662 = vmatprep.subr.bf16.mxu0 0
      %663 = vmatpush1.bf16.msra.mxu0 0
      %664 = vmatprep.subr.bf16.mxu0 0
      %665 = vmatpush1.bf16.msra.mxu0 0
      %666 = vmatprep.subr.bf16.mxu0 0
      %667 = vmatpush1.bf16.msra.mxu0 0
      %668 = vmatprep.mubr.bf16.mxu0 0
      %669 = vmatmul.mubr.bf16.gmra.mrb[0].mxu0 %v634
      %v670 = vpop.f32.mrb[0].mxu0
      %v671 = vadd.f32 0.0, %v670
      %v672 = vpop.f32.mrb[0].mxu0
      %v673 = vpop.f32.mrb[0].mxu0
      %v674 = vadd.f32 0.0, %v673
      %v675 = vpop.f32.mrb[0].mxu0
      %676 = vdwg.mxu0
      %v677 = vpack.c.bf16 %v674, %v671
      %v678 = vpack.c.bf16 %v548, %v548
      %679 = vrot.lane.b32.xlu0 %v552, 120
      %v680 = vpop.permute.xlu0 %679
      %681 = vrot.lane.b32.xlu0 %v552, 88
      %v682 = vpop.permute.xlu0 %681
      %v684 = vsel %vm556, %v680, 0
      %v687 = vsel %vm556, %v682, 0
      %689 = vmatprep.subr.bf16.mxu0 0
      %690 = vmatpush1.bf16.xpose.msra.mxu0 %v687
      %691 = vmatprep.subr.bf16.mxu0 0
      %692 = vmatpush1.bf16.xpose.msra.mxu0 0
      %693 = vmatprep.subr.bf16.mxu0 0
      %694 = vmatpush1.bf16.xpose.msra.mxu0 0
      %695 = vmatprep.subr.bf16.mxu0 0
      %696 = vmatpush1.bf16.xpose.msra.mxu0 0
      %697 = vmatprep.subr.bf16.mxu0 0
      %698 = vmatpush1.bf16.xpose.msra.mxu0 0
      %699 = vmatprep.subr.bf16.mxu0 0
      %700 = vmatpush1.bf16.xpose.msra.mxu0 0
      %701 = vmatprep.subr.bf16.mxu0 0
      %702 = vmatpush1.bf16.xpose.msra.mxu0 0
      %703 = vmatprep.subr.bf16.mxu0 0
      %704 = vmatpush1.bf16.xpose.msra.mxu0 0
      %705 = vmatprep.subr.bf16.mxu0 0
      %706 = vmatpush1.bf16.xpose.msra.mxu0 0
      %707 = vmatprep.subr.bf16.mxu0 0
      %708 = vmatpush1.bf16.xpose.msra.mxu0 0
      %709 = vmatprep.subr.bf16.mxu0 0
      %710 = vmatpush1.bf16.xpose.msra.mxu0 0
      %711 = vmatprep.subr.bf16.mxu0 0
      %712 = vmatpush1.bf16.xpose.msra.mxu0 0
      %713 = vmatprep.subr.bf16.mxu0 0
      %714 = vmatpush1.bf16.xpose.msra.mxu0 0
      %715 = vmatprep.subr.bf16.mxu0 0
      %716 = vmatpush1.bf16.xpose.msra.mxu0 0
      %717 = vmatprep.subr.bf16.mxu0 0
      %718 = vmatpush1.bf16.xpose.msra.mxu0 0
      %719 = vmatprep.subr.bf16.mxu0 0
      %720 = vmatpush1.bf16.xpose.msra.mxu0 0
      %721 = vmatprep.mubr.bf16.mxu0 0
      %722 = vmatmul.mubr.bf16.gmra.mrb[0].mxu0 %v684
      %v723 = vpop.f32.mrb[0].mxu0
      %v724 = vadd.f32 0.0, %v723
      %v725 = vpop.f32.mrb[0].mxu0
      %v726 = vpop.f32.mrb[0].mxu0
      %v727 = vadd.f32 0.0, %v726
      %v728 = vpop.f32.mrb[0].mxu0
      %729 = vdwg.mxu0
      %v730 = vmul.f32 %v724, 0.35355338
      %v731 = vmul.f32 %v727, 0.35355338
      %v732 = vsel %vm606, %v730, -inf
      %733 = vmax.xlane.f32.xlu0 %v732
      %v734 = vpop.xlane.xlu0 %733
      %v735 = vsel %vm606, %v731, -inf
      %736 = vmax.xlane.f32.xlu0 %v735
      %v737 = vpop.xlane.xlu0 %736
      %v738 = vsub.f32 %v730, %v734
      %v739 = vsub.f32 %v731, %v737
      %v740 = vmul.f32 %v738, 1.442695
      %v741 = vpow.pop %v740
      %v742 = vmul.f32 %v739, 1.442695
      %v743 = vpow.pop %v742
      %v744 = vsel %vm606, %v741, 0.0
      %745 = vadd.xlane.f32.xlu0 %v744
      %v746 = vpop.xlane.xlu0 %745
      %v747 = vsel %vm606, %v743, 0.0
      %748 = vadd.xlane.f32.xlu0 %v747
      %v749 = vpop.xlane.xlu0 %748
      %v750 = vrcp.pop %v746
      %v751 = vrcp.pop %v749
      %v752 = vmul.f32 %v741, %v750
      %v753 = vmul.f32 %v743, %v751
      %v754 = vpack.c.bf16 %v753, %v752
      %755 = vrot.lane.b32.xlu0 %v552, 56
      %v756 = vpop.permute.xlu0 %755
      %v759 = vsel %vm606, %v754, 0
      %761 = vmatprep.subr.bf16.mxu0 0
      %762 = vmatpush1.bf16.msra.mxu0 %v756
      %763 = vmatprep.subr.bf16.mxu0 0
      %764 = vmatpush1.bf16.msra.mxu0 0
      %765 = vmatprep.subr.bf16.mxu0 0
      %766 = vmatpush1.bf16.msra.mxu0 0
      %767 = vmatprep.subr.bf16.mxu0 0
      %768 = vmatpush1.bf16.msra.mxu0 0
      %769 = vmatprep.subr.bf16.mxu0 0
      %770 = vmatpush1.bf16.msra.mxu0 0
      %771 = vmatprep.subr.bf16.mxu0 0
      %772 = vmatpush1.bf16.msra.mxu0 0
      %773 = vmatprep.subr.bf16.mxu0 0
      %774 = vmatpush1.bf16.msra.mxu0 0
      %775 = vmatprep.subr.bf16.mxu0 0
      %776 = vmatpush1.bf16.msra.mxu0 0
      %777 = vmatprep.subr.bf16.mxu0 0
      %778 = vmatpush1.bf16.msra.mxu0 0
      %779 = vmatprep.subr.bf16.mxu0 0
      %780 = vmatpush1.bf16.msra.mxu0 0
      %781 = vmatprep.subr.bf16.mxu0 0
      %782 = vmatpush1.bf16.msra.mxu0 0
      %783 = vmatprep.subr.bf16.mxu0 0
      %784 = vmatpush1.bf16.msra.mxu0 0
      %785 = vmatprep.subr.bf16.mxu0 0
      %786 = vmatpush1.bf16.msra.mxu0 0
      %787 = vmatprep.subr.bf16.mxu0 0
      %788 = vmatpush1.bf16.msra.mxu0 0
      %789 = vmatprep.subr.bf16.mxu0 0
      %790 = vmatpush1.bf16.msra.mxu0 0
      %791 = vmatprep.subr.bf16.mxu0 0
      %792 = vmatpush1.bf16.msra.mxu0 0
      %793 = vmatprep.mubr.bf16.mxu0 0
      %794 = vmatmul.mubr.bf16.gmra.mrb[0].mxu0 %v759
      %v795 = vpop.f32.mrb[0].mxu0
      %v796 = vadd.f32 0.0, %v795
      %v797 = vpop.f32.mrb[0].mxu0
      %v798 = vpop.f32.mrb[0].mxu0
      %v799 = vadd.f32 0.0, %v798
      %v800 = vpop.f32.mrb[0].mxu0
      %801 = vdwg.mxu0
      %v802 = vpack.c.bf16 %v799, %v796
      %v803 = vpack.c.bf16 %v549, %v549
      %v805 = vsel %vm556, %v802, 0
      %vm807 = vcmask 1043456
      %v809 = vsel %vm807, %v803, 0
      %811 = vmatprep.subr.bf16.mxu0 0
      %812 = vmatpush1.bf16.msra.mxu0 %v809
      %813 = vmatprep.subr.bf16.mxu0 0
      %814 = vmatpush1.bf16.msra.mxu0 0
      %815 = vmatprep.subr.bf16.mxu0 0
      %816 = vmatpush1.bf16.msra.mxu0 0
      %817 = vmatprep.subr.bf16.mxu0 0
      %818 = vmatpush1.bf16.msra.mxu0 0
      %819 = vmatprep.subr.bf16.mxu0 0
      %820 = vmatpush1.bf16.msra.mxu0 0
      %821 = vmatprep.subr.bf16.mxu0 0
      %822 = vmatpush1.bf16.msra.mxu0 0
      %823 = vmatprep.subr.bf16.mxu0 0
      %824 = vmatpush1.bf16.msra.mxu0 0
      %825 = vmatprep.subr.bf16.mxu0 0
      %826 = vmatpush1.bf16.msra.mxu0 0
      %827 = vmatprep.subr.bf16.mxu0 0
      %828 = vmatpush1.bf16.msra.mxu0 0
      %829 = vmatprep.subr.bf16.mxu0 0
      %830 = vmatpush1.bf16.msra.mxu0 0
      %831 = vmatprep.subr.bf16.mxu0 0
      %832 = vmatpush1.bf16.msra.mxu0 0
      %833 = vmatprep.subr.bf16.mxu0 0
      %834 = vmatpush1.bf16.msra.mxu0 0
      %835 = vmatprep.subr.bf16.mxu0 0
      %836 = vmatpush1.bf16.msra.mxu0 0
      %837 = vmatprep.subr.bf16.mxu0 0
      %838 = vmatpush1.bf16.msra.mxu0 0
      %839 = vmatprep.subr.bf16.mxu0 0
      %840 = vmatpush1.bf16.msra.mxu0 0
      %841 = vmatprep.subr.bf16.mxu0 0
      %842 = vmatpush1.bf16.msra.mxu0 0
      %843 = vmatprep.mubr.bf16.mxu0 0
      %844 = vmatmul.mubr.bf16.gmra.mrb[0].mxu0 %v805
      %v845 = vpop.f32.mrb[0].mxu0
      %v846 = vadd.f32 0.0, %v845
      %v847 = vpop.f32.mrb[0].mxu0
      %v848 = vpop.f32.mrb[0].mxu0
      %v849 = vadd.f32 0.0, %v848
      %v850 = vpop.f32.mrb[0].mxu0
      %851 = vdwg.mxu0
      %v853 = vsel %vm556, %v677, 0
      %v856 = vsel %vm807, %v678, 0
      %858 = vmatprep.subr.bf16.mxu0 0
      %859 = vmatpush1.bf16.msra.mxu0 %v856
      %860 = vmatprep.subr.bf16.mxu0 0
      %861 = vmatpush1.bf16.msra.mxu0 0
      %862 = vmatprep.subr.bf16.mxu0 0
      %863 = vmatpush1.bf16.msra.mxu0 0
      %864 = vmatprep.subr.bf16.mxu0 0
      %865 = vmatpush1.bf16.msra.mxu0 0
      %866 = vmatprep.subr.bf16.mxu0 0
      %867 = vmatpush1.bf16.msra.mxu0 0
      %868 = vmatprep.subr.bf16.mxu0 0
      %869 = vmatpush1.bf16.msra.mxu0 0
      %870 = vmatprep.subr.bf16.mxu0 0
      %871 = vmatpush1.bf16.msra.mxu0 0
      %872 = vmatprep.subr.bf16.mxu0 0
      %873 = vmatpush1.bf16.msra.mxu0 0
      %874 = vmatprep.subr.bf16.mxu0 0
      %875 = vmatpush1.bf16.msra.mxu0 0
      %876 = vmatprep.subr.bf16.mxu0 0
      %877 = vmatpush1.bf16.msra.mxu0 0
      %878 = vmatprep.subr.bf16.mxu0 0
      %879 = vmatpush1.bf16.msra.mxu0 0
      %880 = vmatprep.subr.bf16.mxu0 0
      %881 = vmatpush1.bf16.msra.mxu0 0
      %882 = vmatprep.subr.bf16.mxu0 0
      %883 = vmatpush1.bf16.msra.mxu0 0
      %884 = vmatprep.subr.bf16.mxu0 0
      %885 = vmatpush1.bf16.msra.mxu0 0
      %886 = vmatprep.subr.bf16.mxu0 0
      %887 = vmatpush1.bf16.msra.mxu0 0
      %888 = vmatprep.subr.bf16.mxu0 0
      %889 = vmatpush1.bf16.msra.mxu0 0
      %890 = vmatprep.mubr.bf16.mxu0 0
      %891 = vmatmul.mubr.bf16.gmra.mrb[0].mxu0 %v853
      %v892 = vpop.f32.mrb[0].mxu0
      %v893 = vadd.f32 %v846, %v892
      %v894 = vpop.f32.mrb[0].mxu0
      %v895 = vpop.f32.mrb[0].mxu0
      %v896 = vadd.f32 %v849, %v895
      %v897 = vpop.f32.mrb[0].mxu0
      %898 = vdwg.mxu0
      %899 = vrot.lane.b32.xlu0 %v552, 112
      %v900 = vpop.permute.xlu0 %899
      %901 = vrot.lane.b32.xlu0 %v552, 80
      %v902 = vpop.permute.xlu0 %901
      %v904 = vsel %vm556, %v900, 0
      %v907 = vsel %vm556, %v902, 0
      %909 = vmatprep.subr.bf16.mxu0 0
      %910 = vmatpush1.bf16.xpose.msra.mxu0 %v907
      %911 = vmatprep.subr.bf16.mxu0 0
      %912 = vmatpush1.bf16.xpose.msra.mxu0 0
      %913 = vmatprep.subr.bf16.mxu0 0
      %914 = vmatpush1.bf16.xpose.msra.mxu0 0
      %915 = vmatprep.subr.bf16.mxu0 0
      %916 = vmatpush1.bf16.xpose.msra.mxu0 0
      %917 = vmatprep.subr.bf16.mxu0 0
      %918 = vmatpush1.bf16.xpose.msra.mxu0 0
      %919 = vmatprep.subr.bf16.mxu0 0
      %920 = vmatpush1.bf16.xpose.msra.mxu0 0
      %921 = vmatprep.subr.bf16.mxu0 0
      %922 = vmatpush1.bf16.xpose.msra.mxu0 0
      %923 = vmatprep.subr.bf16.mxu0 0
      %924 = vmatpush1.bf16.xpose.msra.mxu0 0
      %925 = vmatprep.subr.bf16.mxu0 0
      %926 = vmatpush1.bf16.xpose.msra.mxu0 0
      %927 = vmatprep.subr.bf16.mxu0 0
      %928 = vmatpush1.bf16.xpose.msra.mxu0 0
      %929 = vmatprep.subr.bf16.mxu0 0
      %930 = vmatpush1.bf16.xpose.msra.mxu0 0
      %931 = vmatprep.subr.bf16.mxu0 0
      %932 = vmatpush1.bf16.xpose.msra.mxu0 0
      %933 = vmatprep.subr.bf16.mxu0 0
      %934 = vmatpush1.bf16.xpose.msra.mxu0 0
      %935 = vmatprep.subr.bf16.mxu0 0
      %936 = vmatpush1.bf16.xpose.msra.mxu0 0
      %937 = vmatprep.subr.bf16.mxu0 0
      %938 = vmatpush1.bf16.xpose.msra.mxu0 0
      %939 = vmatprep.subr.bf16.mxu0 0
      %940 = vmatpush1.bf16.xpose.msra.mxu0 0
      %941 = vmatprep.mubr.bf16.mxu0 0
      %942 = vmatmul.mubr.bf16.gmra.mrb[0].mxu0 %v904
      %v943 = vpop.f32.mrb[0].mxu0
      %v944 = vadd.f32 0.0, %v943
      %v945 = vpop.f32.mrb[0].mxu0
      %v946 = vpop.f32.mrb[0].mxu0
      %v947 = vadd.f32 0.0, %v946
      %v948 = vpop.f32.mrb[0].mxu0
      %949 = vdwg.mxu0
      %v950 = vmul.f32 %v944, 0.35355338
      %v951 = vmul.f32 %v947, 0.35355338
      %v952 = vsel %vm606, %v950, -inf
      %953 = vmax.xlane.f32.xlu0 %v952
      %v954 = vpop.xlane.xlu0 %953
      %v955 = vsel %vm606, %v951, -inf
      %956 = vmax.xlane.f32.xlu0 %v955
      %v957 = vpop.xlane.xlu0 %956
      %v958 = vsub.f32 %v950, %v954
      %v959 = vsub.f32 %v951, %v957
      %v960 = vmul.f32 %v958, 1.442695
      %v961 = vpow.pop %v960
      %v962 = vmul.f32 %v959, 1.442695
      %v963 = vpow.pop %v962
      %v964 = vsel %vm606, %v961, 0.0
      %965 = vadd.xlane.f32.xlu0 %v964
      %v966 = vpop.xlane.xlu0 %965
      %v967 = vsel %vm606, %v963, 0.0
      %968 = vadd.xlane.f32.xlu0 %v967
      %v969 = vpop.xlane.xlu0 %968
      %v970 = vrcp.pop %v966
      %v971 = vrcp.pop %v969
      %v972 = vmul.f32 %v961, %v970
      %v973 = vmul.f32 %v963, %v971
      %v974 = vpack.c.bf16 %v973, %v972
      %975 = vrot.lane.b32.xlu0 %v552, 48
      %v976 = vpop.permute.xlu0 %975
      %v979 = vsel %vm606, %v974, 0
      %981 = vmatprep.subr.bf16.mxu0 0
      %982 = vmatpush1.bf16.msra.mxu0 %v976
      %983 = vmatprep.subr.bf16.mxu0 0
      %984 = vmatpush1.bf16.msra.mxu0 0
      %985 = vmatprep.subr.bf16.mxu0 0
      %986 = vmatpush1.bf16.msra.mxu0 0
      %987 = vmatprep.subr.bf16.mxu0 0
      %988 = vmatpush1.bf16.msra.mxu0 0
      %989 = vmatprep.subr.bf16.mxu0 0
      %990 = vmatpush1.bf16.msra.mxu0 0
      %991 = vmatprep.subr.bf16.mxu0 0
      %992 = vmatpush1.bf16.msra.mxu0 0
      %993 = vmatprep.subr.bf16.mxu0 0
      %994 = vmatpush1.bf16.msra.mxu0 0
      %995 = vmatprep.subr.bf16.mxu0 0
      %996 = vmatpush1.bf16.msra.mxu0 0
      %997 = vmatprep.subr.bf16.mxu0 0
      %998 = vmatpush1.bf16.msra.mxu0 0
      %999 = vmatprep.subr.bf16.mxu0 0
      %1000 = vmatpush1.bf16.msra.mxu0 0
      %1001 = vmatprep.subr.bf16.mxu0 0
      %1002 = vmatpush1.bf16.msra.mxu0 0
      %1003 = vmatprep.subr.bf16.mxu0 0
      %1004 = vmatpush1.bf16.msra.mxu0 0
      %1005 = vmatprep.subr.bf16.mxu0 0
      %1006 = vmatpush1.bf16.msra.mxu0 0
      %1007 = vmatprep.subr.bf16.mxu0 0
      %1008 = vmatpush1.bf16.msra.mxu0 0
      %1009 = vmatprep.subr.bf16.mxu0 0
      %1010 = vmatpush1.bf16.msra.mxu0 0
      %1011 = vmatprep.subr.bf16.mxu0 0
      %1012 = vmatpush1.bf16.msra.mxu0 0
      %1013 = vmatprep.mubr.bf16.mxu0 0
      %1014 = vmatmul.mubr.bf16.gmra.mrb[0].mxu0 %v979
      %v1015 = vpop.f32.mrb[0].mxu0
      %v1016 = vadd.f32 0.0, %v1015
      %v1017 = vpop.f32.mrb[0].mxu0
      %v1018 = vpop.f32.mrb[0].mxu0
      %v1019 = vadd.f32 0.0, %v1018
      %v1020 = vpop.f32.mrb[0].mxu0
      %1021 = vdwg.mxu0
      %v1022 = vpack.c.bf16 %v1019, %v1016
      %v1023 = vpack.c.bf16 %v550, %v550
      %v1025 = vsel %vm556, %v1022, 0
      %v1028 = vsel %vm807, %v1023, 0
      %1030 = vmatprep.subr.bf16.mxu0 0
      %1031 = vmatpush1.bf16.msra.mxu0 %v1028
      %1032 = vmatprep.subr.bf16.mxu0 0
      %1033 = vmatpush1.bf16.msra.mxu0 0
      %1034 = vmatprep.subr.bf16.mxu0 0
      %1035 = vmatpush1.bf16.msra.mxu0 0
      %1036 = vmatprep.subr.bf16.mxu0 0
      %1037 = vmatpush1.bf16.msra.mxu0 0
      %1038 = vmatprep.subr.bf16.mxu0 0
      %1039 = vmatpush1.bf16.msra.mxu0 0
      %1040 = vmatprep.subr.bf16.mxu0 0
      %1041 = vmatpush1.bf16.msra.mxu0 0
      %1042 = vmatprep.subr.bf16.mxu0 0
      %1043 = vmatpush1.bf16.msra.mxu0 0
      %1044 = vmatprep.subr.bf16.mxu0 0
      %1045 = vmatpush1.bf16.msra.mxu0 0
      %1046 = vmatprep.subr.bf16.mxu0 0
      %1047 = vmatpush1.bf16.msra.mxu0 0
      %1048 = vmatprep.subr.bf16.mxu0 0
      %1049 = vmatpush1.bf16.msra.mxu0 0
      %1050 = vmatprep.subr.bf16.mxu0 0
      %1051 = vmatpush1.bf16.msra.mxu0 0
      %1052 = vmatprep.subr.bf16.mxu0 0
      %1053 = vmatpush1.bf16.msra.mxu0 0
      %1054 = vmatprep.subr.bf16.mxu0 0
      %1055 = vmatpush1.bf16.msra.mxu0 0
      %1056 = vmatprep.subr.bf16.mxu0 0
      %1057 = vmatpush1.bf16.msra.mxu0 0
      %1058 = vmatprep.subr.bf16.mxu0 0
      %1059 = vmatpush1.bf16.msra.mxu0 0
      %1060 = vmatprep.subr.bf16.mxu0 0
      %1061 = vmatpush1.bf16.msra.mxu0 0
      %1062 = vmatprep.mubr.bf16.mxu0 0
      %1063 = vmatmul.mubr.bf16.gmra.mrb[0].mxu0 %v1025
      %v1064 = vpop.f32.mrb[0].mxu0
      %v1065 = vadd.f32 0.0, %v1064
      %v1066 = vpop.f32.mrb[0].mxu0
      %v1067 = vpop.f32.mrb[0].mxu0
      %v1068 = vadd.f32 0.0, %v1067
      %v1069 = vpop.f32.mrb[0].mxu0
      %1070 = vdwg.mxu0
      %v1071 = vadd.f32 %v893, %v1065
      %v1072 = vadd.f32 %v896, %v1068
      %1073 = vrot.lane.b32.xlu0 %v552, 104
      %v1074 = vpop.permute.xlu0 %1073
      %1075 = vrot.lane.b32.xlu0 %v552, 72
      %v1076 = vpop.permute.xlu0 %1075
      %v1078 = vsel %vm556, %v1074, 0
      %v1081 = vsel %vm556, %v1076, 0
      %1083 = vmatprep.subr.bf16.mxu0 0
      %1084 = vmatpush1.bf16.xpose.msra.mxu0 %v1081
      %1085 = vmatprep.subr.bf16.mxu0 0
      %1086 = vmatpush1.bf16.xpose.msra.mxu0 0
      %1087 = vmatprep.subr.bf16.mxu0 0
      %1088 = vmatpush1.bf16.xpose.msra.mxu0 0
      %1089 = vmatprep.subr.bf16.mxu0 0
      %1090 = vmatpush1.bf16.xpose.msra.mxu0 0
      %1091 = vmatprep.subr.bf16.mxu0 0
      %1092 = vmatpush1.bf16.xpose.msra.mxu0 0
      %1093 = vmatprep.subr.bf16.mxu0 0
      %1094 = vmatpush1.bf16.xpose.msra.mxu0 0
      %1095 = vmatprep.subr.bf16.mxu0 0
      %1096 = vmatpush1.bf16.xpose.msra.mxu0 0
      %1097 = vmatprep.subr.bf16.mxu0 0
      %1098 = vmatpush1.bf16.xpose.msra.mxu0 0
      %1099 = vmatprep.subr.bf16.mxu0 0
      %1100 = vmatpush1.bf16.xpose.msra.mxu0 0
      %1101 = vmatprep.subr.bf16.mxu0 0
      %1102 = vmatpush1.bf16.xpose.msra.mxu0 0
      %1103 = vmatprep.subr.bf16.mxu0 0
      %1104 = vmatpush1.bf16.xpose.msra.mxu0 0
      %1105 = vmatprep.subr.bf16.mxu0 0
      %1106 = vmatpush1.bf16.xpose.msra.mxu0 0
      %1107 = vmatprep.subr.bf16.mxu0 0
      %1108 = vmatpush1.bf16.xpose.msra.mxu0 0
      %1109 = vmatprep.subr.bf16.mxu0 0
      %1110 = vmatpush1.bf16.xpose.msra.mxu0 0
      %1111 = vmatprep.subr.bf16.mxu0 0
      %1112 = vmatpush1.bf16.xpose.msra.mxu0 0
      %1113 = vmatprep.subr.bf16.mxu0 0
      %1114 = vmatpush1.bf16.xpose.msra.mxu0 0
      %1115 = vmatprep.mubr.bf16.mxu0 0
      %1116 = vmatmul.mubr.bf16.gmra.mrb[0].mxu0 %v1078
      %v1117 = vpop.f32.mrb[0].mxu0
      %v1118 = vadd.f32 0.0, %v1117
      %v1119 = vpop.f32.mrb[0].mxu0
      %v1120 = vpop.f32.mrb[0].mxu0
      %v1121 = vadd.f32 0.0, %v1120
      %v1122 = vpop.f32.mrb[0].mxu0
      %1123 = vdwg.mxu0
      %v1124 = vmul.f32 %v1118, 0.35355338
      %v1125 = vmul.f32 %v1121, 0.35355338
      %v1126 = vsel %vm606, %v1124, -inf
      %1127 = vmax.xlane.f32.xlu0 %v1126
      %v1128 = vpop.xlane.xlu0 %1127
      %v1129 = vsel %vm606, %v1125, -inf
      %1130 = vmax.xlane.f32.xlu0 %v1129
      %v1131 = vpop.xlane.xlu0 %1130
      %v1132 = vsub.f32 %v1124, %v1128
      %v1133 = vsub.f32 %v1125, %v1131
      %v1134 = vmul.f32 %v1132, 1.442695
      %v1135 = vpow.pop %v1134
      %v1136 = vmul.f32 %v1133, 1.442695
      %v1137 = vpow.pop %v1136
      %v1138 = vsel %vm606, %v1135, 0.0
      %1139 = vadd.xlane.f32.xlu0 %v1138
      %v1140 = vpop.xlane.xlu0 %1139
      %v1141 = vsel %vm606, %v1137, 0.0
      %1142 = vadd.xlane.f32.xlu0 %v1141
      %v1143 = vpop.xlane.xlu0 %1142
      %v1144 = vrcp.pop %v1140
      %v1145 = vrcp.pop %v1143
      %v1146 = vmul.f32 %v1135, %v1144
      %v1147 = vmul.f32 %v1137, %v1145
      %v1148 = vpack.c.bf16 %v1147, %v1146
      %1149 = vrot.lane.b32.xlu0 %v552, 40
      %v1150 = vpop.permute.xlu0 %1149
      %v1153 = vsel %vm606, %v1148, 0
      %1155 = vmatprep.subr.bf16.mxu0 0
      %1156 = vmatpush1.bf16.msra.mxu0 %v1150
      %1157 = vmatprep.subr.bf16.mxu0 0
      %1158 = vmatpush1.bf16.msra.mxu0 0
      %1159 = vmatprep.subr.bf16.mxu0 0
      %1160 = vmatpush1.bf16.msra.mxu0 0
      %1161 = vmatprep.subr.bf16.mxu0 0
      %1162 = vmatpush1.bf16.msra.mxu0 0
      %1163 = vmatprep.subr.bf16.mxu0 0
      %1164 = vmatpush1.bf16.msra.mxu0 0
      %1165 = vmatprep.subr.bf16.mxu0 0
      %1166 = vmatpush1.bf16.msra.mxu0 0
      %1167 = vmatprep.subr.bf16.mxu0 0
      %1168 = vmatpush1.bf16.msra.mxu0 0
      %1169 = vmatprep.subr.bf16.mxu0 0
      %1170 = vmatpush1.bf16.msra.mxu0 0
      %1171 = vmatprep.subr.bf16.mxu0 0
      %1172 = vmatpush1.bf16.msra.mxu0 0
      %1173 = vmatprep.subr.bf16.mxu0 0
      %1174 = vmatpush1.bf16.msra.mxu0 0
      %1175 = vmatprep.subr.bf16.mxu0 0
      %1176 = vmatpush1.bf16.msra.mxu0 0
      %1177 = vmatprep.subr.bf16.mxu0 0
      %1178 = vmatpush1.bf16.msra.mxu0 0
      %1179 = vmatprep.subr.bf16.mxu0 0
      %1180 = vmatpush1.bf16.msra.mxu0 0
      %1181 = vmatprep.subr.bf16.mxu0 0
      %1182 = vmatpush1.bf16.msra.mxu0 0
      %1183 = vmatprep.subr.bf16.mxu0 0
      %1184 = vmatpush1.bf16.msra.mxu0 0
      %1185 = vmatprep.subr.bf16.mxu0 0
      %1186 = vmatpush1.bf16.msra.mxu0 0
      %1187 = vmatprep.mubr.bf16.mxu0 0
      %1188 = vmatmul.mubr.bf16.gmra.mrb[0].mxu0 %v1153
      %v1189 = vpop.f32.mrb[0].mxu0
      %v1190 = vadd.f32 0.0, %v1189
      %v1191 = vpop.f32.mrb[0].mxu0
      %v1192 = vpop.f32.mrb[0].mxu0
      %v1193 = vadd.f32 0.0, %v1192
      %v1194 = vpop.f32.mrb[0].mxu0
      %1195 = vdwg.mxu0
      %v1196 = vpack.c.bf16 %v1193, %v1190
      %v1197 = vpack.c.bf16 %v551, %v551
      %v1199 = vsel %vm556, %v1196, 0
      %v1202 = vsel %vm807, %v1197, 0
      %1204 = vmatprep.subr.bf16.mxu0 0
      %1205 = vmatpush1.bf16.msra.mxu0 %v1202
      %1206 = vmatprep.subr.bf16.mxu0 0
      %1207 = vmatpush1.bf16.msra.mxu0 0
      %1208 = vmatprep.subr.bf16.mxu0 0
      %1209 = vmatpush1.bf16.msra.mxu0 0
      %1210 = vmatprep.subr.bf16.mxu0 0
      %1211 = vmatpush1.bf16.msra.mxu0 0
      %1212 = vmatprep.subr.bf16.mxu0 0
      %1213 = vmatpush1.bf16.msra.mxu0 0
      %1214 = vmatprep.subr.bf16.mxu0 0
      %1215 = vmatpush1.bf16.msra.mxu0 0
      %1216 = vmatprep.subr.bf16.mxu0 0
      %1217 = vmatpush1.bf16.msra.mxu0 0
      %1218 = vmatprep.subr.bf16.mxu0 0
      %1219 = vmatpush1.bf16.msra.mxu0 0
      %1220 = vmatprep.subr.bf16.mxu0 0
      %1221 = vmatpush1.bf16.msra.mxu0 0
      %1222 = vmatprep.subr.bf16.mxu0 0
      %1223 = vmatpush1.bf16.msra.mxu0 0
      %1224 = vmatprep.subr.bf16.mxu0 0
      %1225 = vmatpush1.bf16.msra.mxu0 0
      %1226 = vmatprep.subr.bf16.mxu0 0
      %1227 = vmatpush1.bf16.msra.mxu0 0
      %1228 = vmatprep.subr.bf16.mxu0 0
      %1229 = vmatpush1.bf16.msra.mxu0 0
      %1230 = vmatprep.subr.bf16.mxu0 0
      %1231 = vmatpush1.bf16.msra.mxu0 0
      %1232 = vmatprep.subr.bf16.mxu0 0
      %1233 = vmatpush1.bf16.msra.mxu0 0
      %1234 = vmatprep.subr.bf16.mxu0 0
      %1235 = vmatpush1.bf16.msra.mxu0 0
      %1236 = vmatprep.mubr.bf16.mxu0 0
      %1237 = vmatmul.mubr.bf16.gmra.mrb[0].mxu0 %v1199
      %v1238 = vpop.f32.mrb[0].mxu0
      %v1239 = vadd.f32 0.0, %v1238
      %v1240 = vpop.f32.mrb[0].mxu0
      %v1241 = vpop.f32.mrb[0].mxu0
      %v1242 = vadd.f32 0.0, %v1241
      %v1243 = vpop.f32.mrb[0].mxu0
      %1244 = vdwg.mxu0
      %v1245 = vadd.f32 %v1071, %v1239
      %v1246 = vadd.f32 %v1072, %v1242
      %v1247 = vadd.f32 %v442, %v1245
      %v1248 = vadd.f32 %v443, %v1246
      %v1249 = vld [vmem:[%s6] sm:$0x1]
      %v1251 = vlaneseq
      %v1252 = vshrl.u32 %v1251, 7
      %v1253 = vsub.s32 0, %v1252
      %v1254 = vrot.slane %v1249, %v1253
      %v1256 = vadd.f32 %v1247, %v1254
      %v1257 = vadd.f32 %v1248, %v1254
      %v1258 = vld [vmem:[%s7] sm:$0x1]
      %v1259 = vld [vmem:[%s8] sm:$0x1]
      %v1260 = vsel %vm446, %v1256, 0.0
      %1261 = vadd.xlane.f32.xlu0 %v1260
      %v1262 = vpop.xlane.xlu0 %1261
      %v1263 = vsel %vm446, %v1257, 0.0
      %1264 = vadd.xlane.f32.xlu0 %v1263
      %v1265 = vpop.xlane.xlu0 %1264
      %v1266 = vmul.f32 %v1262, %v453
      %v1267 = vmul.f32 %v1265, %v453
      %v1268 = vsub.f32 %v1256, %v1266
      %v1269 = vsub.f32 %v1257, %v1267
      %v1270 = vmul.f32 %v1268, %v1268
      %v1271 = vmul.f32 %v1269, %v1269
      %v1272 = vsel %vm446, %v1270, 0.0
      %1273 = vadd.xlane.f32.xlu0 %v1272
      %v1274 = vpop.xlane.xlu0 %1273
      %v1275 = vsel %vm446, %v1271, 0.0
      %1276 = vadd.xlane.f32.xlu0 %v1275
      %v1277 = vpop.xlane.xlu0 %1276
      %v1278 = vmul.f32 %v1274, %v453
      %v1279 = vmul.f32 %v1277, %v453
      %v1280 = vadd.f32 %v1278, 1e-05
      %v1281 = vadd.f32 %v1279, 1e-05
      %v1282 = vrsqrt.pop %v1280
      %v1283 = vrsqrt.pop %v1281
      %v1284 = vmul.f32 %v1268, %v1282
      %v1285 = vmul.f32 %v1269, %v1283
      %v1287 = vlaneseq
      %v1288 = vshrl.u32 %v1287, 7
      %v1289 = vsub.s32 0, %v1288
      %v1290 = vrot.slane %v1258, %v1289
      %v1292 = vmul.f32 %v1284, %v1290
      %v1293 = vmul.f32 %v1285, %v1290
      %v1295 = vlaneseq
      %v1296 = vshrl.u32 %v1295, 7
      %v1297 = vsub.s32 0, %v1296
      %v1298 = vrot.slane %v1259, %v1297
      %v1300 = vadd.f32 %v1292, %v1298
      %v1301 = vadd.f32 %v1293, %v1298
      %v1302 = vld [vmem:[%s9] sm:$0xff]
      %v1303 = vld [vmem:[%s9 + $0x8] sm:$0xff]
      %v1304 = vld [vmem:[%s9 + $0x10] sm:$0xff]
      %v1305 = vld [vmem:[%s9 + $0x18] sm:$0xff]
      %v1306 = vpack.c.bf16 %v1301, %v1300
      %v1307 = vpack.c.bf16 %v1303, %v1302
      %v1308 = vpack.c.bf16 %v1305, %v1304
      %v1309 = vld [vmem:[%s10] sm:$0x1]
      %v1311 = vlaneseq
      %v1312 = vshrl.u32 %v1311, 7
      %v1313 = vsub.s32 0, %v1312
      %v1314 = vrot.slane %v1309, %v1313
      %v1317 = vsel %vm446, %v1306, 0
      %1319 = vmatprep.subr.bf16.mxu0 0
      %1320 = vmatpush1.bf16.msra.mxu0 %v1307
      %1321 = vmatprep.subr.bf16.mxu0 0
      %1322 = vmatpush1.bf16.msra.mxu0 %v1308
      %1323 = vmatprep.subr.bf16.mxu0 0
      %1324 = vmatpush1.bf16.msra.mxu0 0
      %1325 = vmatprep.subr.bf16.mxu0 0
      %1326 = vmatpush1.bf16.msra.mxu0 0
      %1327 = vmatprep.subr.bf16.mxu0 0
      %1328 = vmatpush1.bf16.msra.mxu0 0
      %1329 = vmatprep.subr.bf16.mxu0 0
      %1330 = vmatpush1.bf16.msra.mxu0 0
      %1331 = vmatprep.subr.bf16.mxu0 0
      %1332 = vmatpush1.bf16.msra.mxu0 0
      %1333 = vmatprep.subr.bf16.mxu0 0
      %1334 = vmatpush1.bf16.msra.mxu0 0
      %1335 = vmatprep.subr.bf16.mxu0 0
      %1336 = vmatpush1.bf16.msra.mxu0 0
      %1337 = vmatprep.subr.bf16.mxu0 0
      %1338 = vmatpush1.bf16.msra.mxu0 0
      %1339 = vmatprep.subr.bf16.mxu0 0
      %1340 = vmatpush1.bf16.msra.mxu0 0
      %1341 = vmatprep.subr.bf16.mxu0 0
      %1342 = vmatpush1.bf16.msra.mxu0 0
      %1343 = vmatprep.subr.bf16.mxu0 0
      %1344 = vmatpush1.bf16.msra.mxu0 0
      %1345 = vmatprep.subr.bf16.mxu0 0
      %1346 = vmatpush1.bf16.msra.mxu0 0
      %1347 = vmatprep.subr.bf16.mxu0 0
      %1348 = vmatpush1.bf16.msra.mxu0 0
      %1349 = vmatprep.subr.bf16.mxu0 0
      %1350 = vmatpush1.bf16.msra.mxu0 0
      %1351 = vmatprep.mubr.bf16.mxu0 0
      %1352 = vmatmul.mubr.bf16.gmra.mrb[0].mxu0 %v1317
      %v1353 = vpop.f32.mrb[0].mxu0
      %v1354 = vadd.f32 %v1314, %v1353
      %v1355 = vpop.f32.mrb[0].mxu0
      %v1356 = vpop.f32.mrb[0].mxu0
      %v1357 = vadd.f32 %v1314, %v1356
      %v1358 = vpop.f32.mrb[0].mxu0
      %1359 = vdwg.mxu0
      %v1360 = vmul.f32 %v1354, %v1354
      %v1361 = vmul.f32 %v1357, %v1357
      %v1362 = vmul.f32 %v1354, %v1360
      %v1363 = vmul.f32 %v1357, %v1361
      %v1364 = vmul.f32 %v1362, 0.044715
      %v1365 = vmul.f32 %v1363, 0.044715
      %v1366 = vadd.f32 %v1354, %v1364
      %v1367 = vadd.f32 %v1357, %v1365
      %v1368 = vmul.f32 %v1366, 0.7978846
      %v1369 = vmul.f32 %v1367, 0.7978846
      %v1370 = vtanh.pop %v1368
      %v1371 = vtanh.pop %v1369
      %v1372 = vadd.f32 %v1370, 1.0
      %v1373 = vadd.f32 %v1371, 1.0
      %v1374 = vmul.f32 %v1372, 0.5
      %v1375 = vmul.f32 %v1373, 0.5
      %v1376 = vmul.f32 %v1354, %v1374
      %v1377 = vmul.f32 %v1357, %v1375
      %v1378 = vld [vmem:[%s11] sm:$0xff]
      %v1379 = vld [vmem:[%s11 + $0x8] sm:$0xff]
      %v1380 = vld [vmem:[%s11 + $0x10] sm:$0xff]
      %v1381 = vld [vmem:[%s11 + $0x18] sm:$0xff]
      %v1382 = vld [vmem:[%s11 + $0x20] sm:$0xff]
      %v1383 = vld [vmem:[%s11 + $0x28] sm:$0xff]
      %v1384 = vld [vmem:[%s11 + $0x30] sm:$0xff]
      %v1385 = vld [vmem:[%s11 + $0x38] sm:$0xff]
      %v1386 = vpack.c.bf16 %v1377, %v1376
      %v1387 = vpack.c.bf16 %v1379, %v1378
      %v1388 = vpack.c.bf16 %v1381, %v1380
      %v1389 = vpack.c.bf16 %v1383, %v1382
      %v1390 = vpack.c.bf16 %v1385, %v1384
      %v1391 = vld [vmem:[%s12] sm:$0x1]
      %v1393 = vlaneseq
      %v1394 = vshrl.u32 %v1393, 7
      %v1395 = vsub.s32 0, %v1394
      %v1396 = vrot.slane %v1391, %v1395
      %vm1398 = vcmask 523264
      %v1400 = vsel %vm1398, %v1386, 0
      %1402 = vmatprep.subr.bf16.mxu0 0
      %1403 = vmatpush1.bf16.msra.mxu0 %v1387
      %1404 = vmatprep.subr.bf16.mxu0 0
      %1405 = vmatpush1.bf16.msra.mxu0 %v1388
      %1406 = vmatprep.subr.bf16.mxu0 0
      %1407 = vmatpush1.bf16.msra.mxu0 %v1389
      %1408 = vmatprep.subr.bf16.mxu0 0
      %1409 = vmatpush1.bf16.msra.mxu0 %v1390
      %1410 = vmatprep.subr.bf16.mxu0 0
      %1411 = vmatpush1.bf16.msra.mxu0 0
      %1412 = vmatprep.subr.bf16.mxu0 0
      %1413 = vmatpush1.bf16.msra.mxu0 0
      %1414 = vmatprep.subr.bf16.mxu0 0
      %1415 = vmatpush1.bf16.msra.mxu0 0
      %1416 = vmatprep.subr.bf16.mxu0 0
      %1417 = vmatpush1.bf16.msra.mxu0 0
      %1418 = vmatprep.subr.bf16.mxu0 0
      %1419 = vmatpush1.bf16.msra.mxu0 0
      %1420 = vmatprep.subr.bf16.mxu0 0
      %1421 = vmatpush1.bf16.msra.mxu0 0
      %1422 = vmatprep.subr.bf16.mxu0 0
      %1423 = vmatpush1.bf16.msra.mxu0 0
      %1424 = vmatprep.subr.bf16.mxu0 0
      %1425 = vmatpush1.bf16.msra.mxu0 0
      %1426 = vmatprep.subr.bf16.mxu0 0
      %1427 = vmatpush1.bf16.msra.mxu0 0
      %1428 = vmatprep.subr.bf16.mxu0 0
      %1429 = vmatpush1.bf16.msra.mxu0 0
      %1430 = vmatprep.subr.bf16.mxu0 0
      %1431 = vmatpush1.bf16.msra.mxu0 0
      %1432 = vmatprep.subr.bf16.mxu0 0
      %1433 = vmatpush1.bf16.msra.mxu0 0
      %1434 = vmatprep.mubr.bf16.mxu0 0
      %1435 = vmatmul.mubr.bf16.gmra.mrb[0].mxu0 %v1400
      %v1436 = vpop.f32.mrb[0].mxu0
      %v1437 = vadd.f32 %v1396, %v1436
      %v1438 = vpop.f32.mrb[0].mxu0
      %v1439 = vpop.f32.mrb[0].mxu0
      %v1440 = vadd.f32 %v1396, %v1439
      %v1441 = vpop.f32.mrb[0].mxu0
      %1442 = vdwg.mxu0
      %v1443 = vadd.f32 %v1256, %v1437
      %v1444 = vadd.f32 %v1257, %v1440
      %1445 = vst.msk [vmem:[%s440] sm:$0xff] %vm446, %v1443
      %1446 = vst.msk [vmem:[%s440 + $0x8] sm:$0xff] %vm446, %v1444
      %p1447 = scmp.lt.s32.totalorder %s24, 1
      %s1448 = scalar_select %p1447, %s24, 1
      %s1449 = smul.addr %s1448, 2
      %s1450 = smul.addr %s1449, 8
      %s1451 = scalar_lea.vmem %s13, %s1450
      // Predicated region
      $region73: #{_lambda_.4} parent=71 // pred_check
        %p1452 = pneg %p320
      $region74: #{_lambda_.4} parent=71 // pred_check_branch
        %1454 = sbr.rel (%p1452) target = $region76
      $region75: #{_lambda_.4} parent=71 // pred_region
        _
      $region76: #{_lambda_.4} parent=71 // pred_fallthru
        _
    $region72: #{_lambda_.4} parent=5 // pred_fallthru
      _
    %p1455 = scmp.le.s32.totalorder 2, %s19
    // Predicated region
    $region77: #{_lambda_.4} parent=5 // pred_check
      %p1456 = pneg %p1455
    $region78: #{_lambda_.4} parent=5 // pred_check_branch
      %1458 = sbr.rel (%p1456) target = $region80
    $region79: #{_lambda_.4} parent=5 // pred_region
      %s1459 = ssub.s32 %s19, 2
      // Predicated region
      $region81: #{_lambda_.4} parent=79 // pred_check
        %p1460 = pneg %p326
      $region82: #{_lambda_.4} parent=79 // pred_check_branch
        %1462 = sbr.rel (%p1460) target = $region84
      $region83: #{_lambda_.4} parent=79 // pred_region
        %p1463 = scmp.lt.s32.totalorder %s25, 1
        %s1464 = scalar_select %p1463, %s25, 1
        %s1465 = smul.addr %s1464, 2
        %s1466 = smul.addr %s1465, 8
        %s1467 = scalar_lea.vmem %s13, %s1466
      $region84: #{_lambda_.4} parent=79 // pred_fallthru
        _
    $region80: #{_lambda_.4} parent=5 // pred_fallthru
      _
  $region6: #{_lambda_.4} parent=0 // loop_footer
    %s23 = sadd.s32 1, %s19
  $region7: #{_lambda_.4} parent=0 // loop_footer_branch
    %18 = sbr.rel target = $region3
  $region8: #{_lambda_.4} parent=0 // loop_exit
    _

// kernel: _lambda_.5
$region0: #{_lambda_.5}
  #allocation0 [shape = 'u32[]', space=smem, size = 0x4, offset = 0x4, fixed_abs, tag = 'smem constant byte address 0x4 - core index']
  #allocation1 [shape = 'u32[144,128]{1,0:T(1,128)}', space=vmem, size = 0x12000, scoped, tag = 'internal scratch']
  %s0 = inlined_call_operand.vmem [shape: f32[2,16,32], index: 0, kind: input, shape index: {}]
  %s1 = inlined_call_operand.vmem [shape: f32[1,32], index: 1, kind: input, shape index: {}]
  %s2 = inlined_call_operand.vmem [shape: f32[1,32], index: 2, kind: input, shape index: {}]
  %s3 = inlined_call_operand.vmem [shape: f32[32,96], index: 3, kind: input, shape index: {}]
  %s4 = inlined_call_operand.vmem [shape: f32[1,96], index: 4, kind: input, shape index: {}]
  %s5 = inlined_call_operand.vmem [shape: f32[32,32], index: 5, kind: input, shape index: {}]
  %s6 = inlined_call_operand.vmem [shape: f32[1,32], index: 6, kind: input, shape index: {}]
  %s7 = inlined_call_operand.vmem [shape: f32[1,32], index: 7, kind: input, shape index: {}]
  %s8 = inlined_call_operand.vmem [shape: f32[1,32], index: 8, kind: input, shape index: {}]
  %s9 = inlined_call_operand.vmem [shape: f32[32,64], index: 9, kind: input, shape index: {}]
  %s10 = inlined_call_operand.vmem [shape: f32[1,64], index: 10, kind: input, shape index: {}]
  %s11 = inlined_call_operand.vmem [shape: f32[64,32], index: 11, kind: input, shape index: {}]
  %s12 = inlined_call_operand.vmem [shape: f32[1,32], index: 12, kind: input, shape index: {}]
  %s13 = inlined_call_operand.hbm [shape: f32[2,16,32], index: 13, kind: output, shape index: {}]
  %s14 = sld [smem:[#allocation0]]
  $region85: #{_lambda_.5} parent=0
    _
  %s16 = ssub.s32 1, %s14
  %s17 = scalar_select 0, %s16, %s14
  $region1: #{_lambda_.5} parent=0
    #allocation2 [shape = 'u8[16384]{0}', space=vmem, size = 0x4000, scoped, tag = 'output window, operand 0']
    #allocation3 [shape = 's32[2]{0}', space=sflag, size = 0x8, scoped, tag = 'scoped memory for _lambda_.5']
    %18 = vsyncpa [#allocation3], 0
    %s19 = scalar_lea.sflag [#allocation3], 1
    %20 = vsyncpa %s19, 0
    loop: start=0, step=1, limit=4
    $region2: #{_lambda_.5} parent=1 // loop_pre_header
      _
    $region3: #{_lambda_.5} parent=1 // loop_header
      %s22 = sphi 0, %s26
      %p23 = scmp.ge.s32.totalorder %s22, 4
      %s32 = sphi 0, %s34
      %s35 = sphi 0, %s32
      %s36 = sphi 0, %s35
      %s52 = sphi 0, %s36
      %s56 = sphi 0, %s56
      %s58 = sphi 0, %s56
      %s59 = sphi 0, %s58
      %s73 = sphi 0, %s59
      %s77 = sphi 0, %s77
      %s79 = sphi 0, %s77
      %s80 = sphi 0, %s79
      %s94 = sphi 0, %s80
      %s98 = sphi 0, %s98
      %s100 = sphi 0, %s98
      %s101 = sphi 0, %s100
      %s115 = sphi 0, %s101
      %s119 = sphi 0, %s119
      %s121 = sphi 0, %s119
      %s122 = sphi 0, %s121
      %s136 = sphi 0, %s122
      %s140 = sphi 0, %s140
      %s142 = sphi 0, %s140
      %s143 = sphi 0, %s142
      %s157 = sphi 0, %s143
      %s161 = sphi 0, %s161
      %s163 = sphi 0, %s161
      %s164 = sphi 0, %s163
      %s178 = sphi 0, %s164
      %s182 = sphi 0, %s182
      %s184 = sphi 0, %s182
      %s185 = sphi 0, %s184
      %s199 = sphi 0, %s185
      %s203 = sphi 0, %s203
      %s205 = sphi 0, %s203
      %s206 = sphi 0, %s205
      %s220 = sphi 0, %s206
      %s224 = sphi 0, %s224
      %s226 = sphi 0, %s224
      %s227 = sphi 0, %s226
      %s241 = sphi 0, %s227
      %s245 = sphi 0, %s245
      %s247 = sphi 0, %s245
      %s248 = sphi 0, %s247
      %s262 = sphi 0, %s248
      %s266 = sphi 0, %s266
      %s268 = sphi 0, %s266
      %s269 = sphi 0, %s268
      %s283 = sphi 0, %s269
      %s287 = sphi 0, %s287
      %s289 = sphi 0, %s287
      %s290 = sphi 0, %s289
      %s304 = sphi 0, %s290
      %s310 = sphi 0, %s312
      %s313 = sphi 0, %s310
      %s314 = sphi 0, %s313
      %s330 = sphi 0, %s314
    $region4: #{_lambda_.5} parent=1 // loop_header_branch
      %25 = sbr.rel (%p23) target = $region8
    $region5: #{_lambda_.5} parent=1 // loop_body
      %s27 = ssub.s32 %s22, 1
      %s28 = ssub.s32 %s22, 2
      %s29 = sadd.s32 %s22, 1
      %s30 = ssub.s32 %s22, %s29
      %p31 = scmp.eq.s32.totalorder %s30, 0
      %s33 = sadd.s32 %s32, 1
      %s34 = scalar_select %p31, %s32, %s33
      %p37 = pneg %p31
      %p38 = scmp.eq.s32.totalorder %s22, 1
      %p39 = por %p37, %p38
      %p40 = scmp.ne.s32.totalorder %s32, %s35
      %p41 = scmp.eq.s32.totalorder %s22, 0
      %p42 = por %p40, %p41
      %p43 = scmp.ne.s32.totalorder %s32, %s35
      %p44 = scmp.eq.s32.totalorder %s27, 1
      %p45 = por %p43, %p44
      %p46 = scmp.ne.s32.totalorder %s35, %s36
      %p47 = scmp.eq.s32.totalorder %s27, 0
      %p48 = por %p46, %p47
      %p49 = scmp.ne.s32.totalorder %s35, %s36
      %p50 = scmp.eq.s32.totalorder %s28, 1
      %p51 = por %p49, %p50
      %p53 = scmp.ne.s32.totalorder %s36, %s52
      %p54 = scmp.eq.s32.totalorder %s28, 0
      %p55 = por %p53, %p54
      %s57 = sadd.s32 %s56, 1
      %p60 = scmp.eq.s32.totalorder %s22, 1
      %p61 = scmp.ne.s32.totalorder %s56, %s58
      %p62 = scmp.eq.s32.totalorder %s22, 0
      %p63 = por %p61, %p62
      %p64 = scmp.ne.s32.totalorder %s56, %s58
      %p65 = scmp.eq.s32.totalorder %s27, 1
      %p66 = por %p64, %p65
      %p67 = scmp.ne.s32.totalorder %s58, %s59
      %p68 = scmp.eq.s32.totalorder %s27, 0
      %p69 = por %p67, %p68
      %p70 = scmp.ne.s32.totalorder %s58, %s59
      %p71 = scmp.eq.s32.totalorder %s28, 1
      %p72 = por %p70, %p71
      %p74 = scmp.ne.s32.totalorder %s59, %s73
      %p75 = scmp.eq.s32.totalorder %s28, 0
      %p76 = por %p74, %p75
      %s78 = sadd.s32 %s77, 1
      %p81 = scmp.eq.s32.totalorder %s22, 1
      %p82 = scmp.ne.s32.totalorder %s77, %s79
      %p83 = scmp.eq.s32.totalorder %s22, 0
      %p84 = por %p82, %p83
      %p85 = scmp.ne.s32.totalorder %s77, %s79
      %p86 = scmp.eq.s32.totalorder %s27, 1
      %p87 = por %p85, %p86
      %p88 = scmp.ne.s32.totalorder %s79, %s80
      %p89 = scmp.eq.s32.totalorder %s27, 0
      %p90 = por %p88, %p89
      %p91 = scmp.ne.s32.totalorder %s79, %s80
      %p92 = scmp.eq.s32.totalorder %s28, 1
      %p93 = por %p91, %p92
      %p95 = scmp.ne.s32.totalorder %s80, %s94
      %p96 = scmp.eq.s32.totalorder %s28, 0
      %p97 = por %p95, %p96
      %s99 = sadd.s32 %s98, 1
      %p102 = scmp.eq.s32.totalorder %s22, 1
      %p103 = scmp.ne.s32.totalorder %s98, %s100
      %p104 = scmp.eq.s32.totalorder %s22, 0
      %p105 = por %p103, %p104
      %p106 = scmp.ne.s32.totalorder %s98, %s100
      %p107 = scmp.eq.s32.totalorder %s27, 1
      %p108 = por %p106, %p107
      %p109 = scmp.ne.s32.totalorder %s100, %s101
      %p110 = scmp.eq.s32.totalorder %s27, 0
      %p111 = por %p109, %p110
      %p112 = scmp.ne.s32.totalorder %s100, %s101
      %p113 = scmp.eq.s32.totalorder %s28, 1
      %p114 = por %p112, %p113
      %p116 = scmp.ne.s32.totalorder %s101, %s115
      %p117 = scmp.eq.s32.totalorder %s28, 0
      %p118 = por %p116, %p117
      %s120 = sadd.s32 %s119, 1
      %p123 = scmp.eq.s32.totalorder %s22, 1
      %p124 = scmp.ne.s32.totalorder %s119, %s121
      %p125 = scmp.eq.s32.totalorder %s22, 0
      %p126 = por %p124, %p125
      %p127 = scmp.ne.s32.totalorder %s119, %s121
      %p128 = scmp.eq.s32.totalorder %s27, 1
      %p129 = por %p127, %p128
      %p130 = scmp.ne.s32.totalorder %s121, %s122
      %p131 = scmp.eq.s32.totalorder %s27, 0
      %p132 = por %p130, %p131
      %p133 = scmp.ne.s32.totalorder %s121, %s122
      %p134 = scmp.eq.s32.totalorder %s28, 1
      %p135 = por %p133, %p134
      %p137 = scmp.ne.s32.totalorder %s122, %s136
      %p138 = scmp.eq.s32.totalorder %s28, 0
      %p139 = por %p137, %p138
      %s141 = sadd.s32 %s140, 1
      %p144 = scmp.eq.s32.totalorder %s22, 1
      %p145 = scmp.ne.s32.totalorder %s140, %s142
      %p146 = scmp.eq.s32.totalorder %s22, 0
      %p147 = por %p145, %p146
      %p148 = scmp.ne.s32.totalorder %s140, %s142
      %p149 = scmp.eq.s32.totalorder %s27, 1
      %p150 = por %p148, %p149
      %p151 = scmp.ne.s32.totalorder %s142, %s143
      %p152 = scmp.eq.s32.totalorder %s27, 0
      %p153 = por %p151, %p152
      %p154 = scmp.ne.s32.totalorder %s142, %s143
      %p155 = scmp.eq.s32.totalorder %s28, 1
      %p156 = por %p154, %p155
      %p158 = scmp.ne.s32.totalorder %s143, %s157
      %p159 = scmp.eq.s32.totalorder %s28, 0
      %p160 = por %p158, %p159
      %s162 = sadd.s32 %s161, 1
      %p165 = scmp.eq.s32.totalorder %s22, 1
      %p166 = scmp.ne.s32.totalorder %s161, %s163
      %p167 = scmp.eq.s32.totalorder %s22, 0
      %p168 = por %p166, %p167
      %p169 = scmp.ne.s32.totalorder %s161, %s163
      %p170 = scmp.eq.s32.totalorder %s27, 1
      %p171 = por %p169, %p170
      %p172 = scmp.ne.s32.totalorder %s163, %s164
      %p173 = scmp.eq.s32.totalorder %s27, 0
      %p174 = por %p172, %p173
      %p175 = scmp.ne.s32.totalorder %s163, %s164
      %p176 = scmp.eq.s32.totalorder %s28, 1
      %p177 = por %p175, %p176
      %p179 = scmp.ne.s32.totalorder %s164, %s178
      %p180 = scmp.eq.s32.totalorder %s28, 0
      %p181 = por %p179, %p180
      %s183 = sadd.s32 %s182, 1
      %p186 = scmp.eq.s32.totalorder %s22, 1
      %p187 = scmp.ne.s32.totalorder %s182, %s184
      %p188 = scmp.eq.s32.totalorder %s22, 0
      %p189 = por %p187, %p188
      %p190 = scmp.ne.s32.totalorder %s182, %s184
      %p191 = scmp.eq.s32.totalorder %s27, 1
      %p192 = por %p190, %p191
      %p193 = scmp.ne.s32.totalorder %s184, %s185
      %p194 = scmp.eq.s32.totalorder %s27, 0
      %p195 = por %p193, %p194
      %p196 = scmp.ne.s32.totalorder %s184, %s185
      %p197 = scmp.eq.s32.totalorder %s28, 1
      %p198 = por %p196, %p197
      %p200 = scmp.ne.s32.totalorder %s185, %s199
      %p201 = scmp.eq.s32.totalorder %s28, 0
      %p202 = por %p200, %p201
      %s204 = sadd.s32 %s203, 1
      %p207 = scmp.eq.s32.totalorder %s22, 1
      %p208 = scmp.ne.s32.totalorder %s203, %s205
      %p209 = scmp.eq.s32.totalorder %s22, 0
      %p210 = por %p208, %p209
      %p211 = scmp.ne.s32.totalorder %s203, %s205
      %p212 = scmp.eq.s32.totalorder %s27, 1
      %p213 = por %p211, %p212
      %p214 = scmp.ne.s32.totalorder %s205, %s206
      %p215 = scmp.eq.s32.totalorder %s27, 0
      %p216 = por %p214, %p215
      %p217 = scmp.ne.s32.totalorder %s205, %s206
      %p218 = scmp.eq.s32.totalorder %s28, 1
      %p219 = por %p217, %p218
      %p221 = scmp.ne.s32.totalorder %s206, %s220
      %p222 = scmp.eq.s32.totalorder %s28, 0
      %p223 = por %p221, %p222
      %s225 = sadd.s32 %s224, 1
      %p228 = scmp.eq.s32.totalorder %s22, 1
      %p229 = scmp.ne.s32.totalorder %s224, %s226
      %p230 = scmp.eq.s32.totalorder %s22, 0
      %p231 = por %p229, %p230
      %p232 = scmp.ne.s32.totalorder %s224, %s226
      %p233 = scmp.eq.s32.totalorder %s27, 1
      %p234 = por %p232, %p233
      %p235 = scmp.ne.s32.totalorder %s226, %s227
      %p236 = scmp.eq.s32.totalorder %s27, 0
      %p237 = por %p235, %p236
      %p238 = scmp.ne.s32.totalorder %s226, %s227
      %p239 = scmp.eq.s32.totalorder %s28, 1
      %p240 = por %p238, %p239
      %p242 = scmp.ne.s32.totalorder %s227, %s241
      %p243 = scmp.eq.s32.totalorder %s28, 0
      %p244 = por %p242, %p243
      %s246 = sadd.s32 %s245, 1
      %p249 = scmp.eq.s32.totalorder %s22, 1
      %p250 = scmp.ne.s32.totalorder %s245, %s247
      %p251 = scmp.eq.s32.totalorder %s22, 0
      %p252 = por %p250, %p251
      %p253 = scmp.ne.s32.totalorder %s245, %s247
      %p254 = scmp.eq.s32.totalorder %s27, 1
      %p255 = por %p253, %p254
      %p256 = scmp.ne.s32.totalorder %s247, %s248
      %p257 = scmp.eq.s32.totalorder %s27, 0
      %p258 = por %p256, %p257
      %p259 = scmp.ne.s32.totalorder %s247, %s248
      %p260 = scmp.eq.s32.totalorder %s28, 1
      %p261 = por %p259, %p260
      %p263 = scmp.ne.s32.totalorder %s248, %s262
      %p264 = scmp.eq.s32.totalorder %s28, 0
      %p265 = por %p263, %p264
      %s267 = sadd.s32 %s266, 1
      %p270 = scmp.eq.s32.totalorder %s22, 1
      %p271 = scmp.ne.s32.totalorder %s266, %s268
      %p272 = scmp.eq.s32.totalorder %s22, 0
      %p273 = por %p271, %p272
      %p274 = scmp.ne.s32.totalorder %s266, %s268
      %p275 = scmp.eq.s32.totalorder %s27, 1
      %p276 = por %p274, %p275
      %p277 = scmp.ne.s32.totalorder %s268, %s269
      %p278 = scmp.eq.s32.totalorder %s27, 0
      %p279 = por %p277, %p278
      %p280 = scmp.ne.s32.totalorder %s268, %s269
      %p281 = scmp.eq.s32.totalorder %s28, 1
      %p282 = por %p280, %p281
      %p284 = scmp.ne.s32.totalorder %s269, %s283
      %p285 = scmp.eq.s32.totalorder %s28, 0
      %p286 = por %p284, %p285
      %s288 = sadd.s32 %s287, 1
      %p291 = scmp.eq.s32.totalorder %s22, 1
      %p292 = scmp.ne.s32.totalorder %s287, %s289
      %p293 = scmp.eq.s32.totalorder %s22, 0
      %p294 = por %p292, %p293
      %p295 = scmp.ne.s32.totalorder %s287, %s289
      %p296 = scmp.eq.s32.totalorder %s27, 1
      %p297 = por %p295, %p296
      %p298 = scmp.ne.s32.totalorder %s289, %s290
      %p299 = scmp.eq.s32.totalorder %s27, 0
      %p300 = por %p298, %p299
      %p301 = scmp.ne.s32.totalorder %s289, %s290
      %p302 = scmp.eq.s32.totalorder %s28, 1
      %p303 = por %p301, %p302
      %p305 = scmp.ne.s32.totalorder %s290, %s304
      %p306 = scmp.eq.s32.totalorder %s28, 0
      %p307 = por %p305, %p306
      %s308 = ssub.s32 %s22, %s29
      %p309 = scmp.eq.s32.totalorder %s308, 0
      %s311 = sadd.s32 %s310, 1
      %s312 = scalar_select %p309, %s310, %s311
      %p315 = pneg %p309
      %p316 = scmp.eq.s32.totalorder %s22, 1
      %p317 = por %p315, %p316
      %p318 = scmp.ne.s32.totalorder %s310, %s313
      %p319 = scmp.eq.s32.totalorder %s22, 0
      %p320 = por %p318, %p319
      %p321 = scmp.ne.s32.totalorder %s310, %s313
      %p322 = scmp.eq.s32.totalorder %s27, 1
      %p323 = por %p321, %p322
      %p324 = scmp.ne.s32.totalorder %s313, %s314
      %p325 = scmp.eq.s32.totalorder %s27, 0
      %p326 = por %p324, %p325
      %p327 = scmp.ne.s32.totalorder %s313, %s314
      %p328 = scmp.eq.s32.totalorder %s28, 1
      %p329 = por %p327, %p328
      %p331 = scmp.ne.s32.totalorder %s314, %s330
      %p332 = scmp.eq.s32.totalorder %s28, 0
      %p333 = por %p331, %p332
      %p334 = scmp.le.s32.totalorder 1, %s22
      %p335 = scmp.lt.s32.totalorder %s22, 3
      %p336 = pnand %p334, %p335
      %p337 = pneg %p336
      // Predicated region
      $region9: #{_lambda_.5} parent=5 // pred_check
        _
      $region10: #{_lambda_.5} parent=5 // pred_check_branch
        %339 = sbr.rel (%p336) target = $region12
      $region11: #{_lambda_.5} parent=5 // pred_region
        %s340 = ssub.s32 %s22, 1
        // Predicated region
        $region13: #{_lambda_.5} parent=11 // pred_check
          %p341 = pneg %p69
        $region14: #{_lambda_.5} parent=11 // pred_check_branch
          %343 = sbr.rel (%p341) target = $region16
        $region15: #{_lambda_.5} parent=11 // pred_region
          _
        $region16: #{_lambda_.5} parent=11 // pred_fallthru
          _
        // Predicated region
        $region17: #{_lambda_.5} parent=11 // pred_check
          %p344 = pneg %p90
        $region18: #{_lambda_.5} parent=11 // pred_check_branch
          %346 = sbr.rel (%p344) target = $region20
        $region19: #{_lambda_.5} parent=11 // pred_region
          _
        $region20: #{_lambda_.5} parent=11 // pred_fallthru
          _
        // Predicated region
        $region21: #{_lambda_.5} parent=11 // pred_check
          %p347 = pneg %p111
        $region22: #{_lambda_.5} parent=11 // pred_check_branch
          %349 = sbr.rel (%p347) target = $region24
        $region23: #{_lambda_.5} parent=11 // pred_region
          _
        $region24: #{_lambda_.5} parent=11 // pred_fallthru
          _
        // Predicated region
        $region25: #{_lambda_.5} parent=11 // pred_check
          %p350 = pneg %p132
        $region26: #{_lambda_.5} parent=11 // pred_check_branch
          %352 = sbr.rel (%p350) target = $region28
        $region27: #{_lambda_.5} parent=11 // pred_region
          _
        $region28: #{_lambda_.5} parent=11 // pred_fallthru
          _
        // Predicated region
        $region29: #{_lambda_.5} parent=11 // pred_check
          %p353 = pneg %p153
        $region30: #{_lambda_.5} parent=11 // pred_check_branch
          %355 = sbr.rel (%p353) target = $region32
        $region31: #{_lambda_.5} parent=11 // pred_region
          _
        $region32: #{_lambda_.5} parent=11 // pred_fallthru
          _
        // Predicated region
        $region33: #{_lambda_.5} parent=11 // pred_check
          %p356 = pneg %p174
        $region34: #{_lambda_.5} parent=11 // pred_check_branch
          %358 = sbr.rel (%p356) target = $region36
        $region35: #{_lambda_.5} parent=11 // pred_region
          _
        $region36: #{_lambda_.5} parent=11 // pred_fallthru
          _
        // Predicated region
        $region37: #{_lambda_.5} parent=11 // pred_check
          %p359 = pneg %p195
        $region38: #{_lambda_.5} parent=11 // pred_check_branch
          %361 = sbr.rel (%p359) target = $region40
        $region39: #{_lambda_.5} parent=11 // pred_region
          _
        $region40: #{_lambda_.5} parent=11 // pred_fallthru
          _
        // Predicated region
        $region41: #{_lambda_.5} parent=11 // pred_check
          %p362 = pneg %p216
        $region42: #{_lambda_.5} parent=11 // pred_check_branch
          %364 = sbr.rel (%p362) target = $region44
        $region43: #{_lambda_.5} parent=11 // pred_region
          _
        $region44: #{_lambda_.5} parent=11 // pred_fallthru
          _
        // Predicated region
        $region45: #{_lambda_.5} parent=11 // pred_check
          %p365 = pneg %p237
        $region46: #{_lambda_.5} parent=11 // pred_check_branch
          %367 = sbr.rel (%p365) target = $region48
        $region47: #{_lambda_.5} parent=11 // pred_region
          _
        $region48: #{_lambda_.5} parent=11 // pred_fallthru
          _
        // Predicated region
        $region49: #{_lambda_.5} parent=11 // pred_check
          %p368 = pneg %p258
        $region50: #{_lambda_.5} parent=11 // pred_check_branch
          %370 = sbr.rel (%p368) target = $region52
        $region51: #{_lambda_.5} parent=11 // pred_region
          _
        $region52: #{_lambda_.5} parent=11 // pred_fallthru
          _
        // Predicated region
        $region53: #{_lambda_.5} parent=11 // pred_check
          %p371 = pneg %p279
        $region54: #{_lambda_.5} parent=11 // pred_check_branch
          %373 = sbr.rel (%p371) target = $region56
        $region55: #{_lambda_.5} parent=11 // pred_region
          _
        $region56: #{_lambda_.5} parent=11 // pred_fallthru
          _
        // Predicated region
        $region57: #{_lambda_.5} parent=11 // pred_check
          %p374 = pneg %p300
        $region58: #{_lambda_.5} parent=11 // pred_check_branch
          %376 = sbr.rel (%p374) target = $region60
        $region59: #{_lambda_.5} parent=11 // pred_region
          _
        $region60: #{_lambda_.5} parent=11 // pred_fallthru
          _
      $region12: #{_lambda_.5} parent=5 // pred_fallthru
        _
      %p377 = scmp.lt.s32.totalorder %s22, 2
      // Predicated region
      $region61: #{_lambda_.5} parent=5 // pred_check
        %p378 = pneg %p377
      $region62: #{_lambda_.5} parent=5 // pred_check_branch
        %380 = sbr.rel (%p378) target = $region64
      $region63: #{_lambda_.5} parent=5 // pred_region
        // Predicated region
        $region65: #{_lambda_.5} parent=63 // pred_check
          %p381 = pneg %p42
        $region66: #{_lambda_.5} parent=63 // pred_check_branch
          %383 = sbr.rel (%p381) target = $region68
        $region67: #{_lambda_.5} parent=63 // pred_region
          %p384 = scmp.lt.s32.totalorder %s22, 1
          %s385 = scalar_select %p384, %s22, 1
          %s386 = smul.addr %s385, 2
          %s387 = smul.addr %s386, 8
          %s388 = scalar_lea.vmem %s0, %s387
        $region68: #{_lambda_.5} parent=63 // pred_fallthru
          _
      $region64: #{_lambda_.5} parent=5 // pred_fallthru
        _
      %p389 = scmp.le.s32.totalorder 1, %s22
      %p390 = scmp.lt.s32.totalorder %s22, 3
      %p391 = pnand %p389, %p390
      %p392 = pneg %p391
      // Predicated region
      $region69: #{_lambda_.5} parent=5 // pred_check
        _
      $region70: #{_lambda_.5} parent=5 // pred_check_branch
        %394 = sbr.rel (%p391) target = $region72
      $region71: #{_lambda_.5} parent=5 // pred_region
        %s395 = ssub.s32 %s22, 1
        %p396 = scmp.lt.s32.totalorder %s27, 1
        %s397 = scalar_select %p396, %s27, 1
        %s398 = smul.addr %s397, 2
        %s399 = smul.addr %s398, 8
        %s400 = scalar_lea.vmem %s0, %s399
        %p401 = pneg %p48
        %p402 = pneg %p45
        %p403 = pneg %p69
        %p404 = pneg %p66
        %p405 = pneg %p90
        %p406 = pneg %p87
        %p407 = pneg %p111
        %p408 = pneg %p108
        %p409 = pneg %p132
        %p410 = pneg %p129
        %p411 = pneg %p153
        %p412 = pneg %p150
        %p413 = pneg %p174
        %p414 = pneg %p171
        %p415 = pneg %p195
        %p416 = pneg %p192
        %p417 = pneg %p216
        %p418 = pneg %p213
        %p419 = pneg %p237
        %p420 = pneg %p234
        %p421 = pneg %p258
        %p422 = pneg %p255
        %p423 = pneg %p279
        %p424 = pneg %p276
        %p425 = pneg %p300
        %p426 = pneg %p297
        %p427 = pneg %p326
        %p428 = pneg %p323
        %s429 = sand.u32 %s313, 1
        %s430 = scalar_lea.sflag [#allocation3], %s429
        %s431 = sand.u32 %s313, 1
        %s432 = smul.addr %s431, 16
        %s433 = scalar_lea.vmem [#allocation2], %s432
        %p434 = scmp.lt.s32.totalorder %s27, 1
        %s435 = scalar_select %p434, %s27, 1
        %s436 = smul.addr %s435, 2
        %s437 = smul.addr %s436, 8
        %s438 = scalar_lea.vmem %s0, %s437
        %v440 = vld [vmem:[%s438] sm:$0xff]
        %v441 = vld [vmem:[%s438 + $0x8] sm:$0xff]
        %v442 = vld [vmem:[%s1] sm:$0x1]
        %v443 = vld [vmem:[%s2] sm:$0x1]
        %vm444 = vcmask 261120
        %v445 = vsel %vm444, %v440, 0.0
        %446 = vadd.xlane.f32.xlu0 %v445
        %v447 = vpop.xlane.xlu0 %446
        %v448 = vsel %vm444, %v441, 0.0
        %449 = vadd.xlane.f32.xlu0 %v448
        %v450 = vpop.xlane.xlu0 %449
        %v451 = vrcp.pop 32.0
        %v452 = vmul.f32 %v447, %v451
        %v453 = vmul.f32 %v450, %v451
        %v454 = vsub.f32 %v440, %v452
        %v455 = vsub.f32 %v441, %v453
        %v456 = vmul.f32 %v454, %v454
        %v457 = vmul.f32 %v455, %v455
        %v458 = vsel %vm444, %v456, 0.0
        %459 = vadd.xlane.f32.xlu0 %v458
        %v460 = vpop.xlane.xlu0 %459
        %v461 = vsel %vm444, %v457, 0.0
        %462 = vadd.xlane.f32.xlu0 %v461
        %v463 = vpop.xlane.xlu0 %462
        %v464 = vmul.f32 %v460, %v451
        %v465 = vmul.f32 %v463, %v451
        %v466 = vadd.f32 %v464, 1e-05
        %v467 = vadd.f32 %v465, 1e-05
        %v468 = vrsqrt.pop %v466
        %v469 = vrsqrt.pop %v467
        %v470 = vmul.f32 %v454, %v468
        %v471 = vmul.f32 %v455, %v469
        %v473 = vlaneseq
        %v474 = vshrl.u32 %v473, 7
        %v475 = vsub.s32 0, %v474
        %v476 = vrot.slane %v442, %v475
        %v478 = vmul.f32 %v470, %v476
        %v479 = vmul.f32 %v471, %v476
        %v481 = vlaneseq
        %v482 = vshrl.u32 %v481, 7
        %v483 = vsub.s32 0, %v482
        %v484 = vrot.slane %v443, %v483
        %v486 = vadd.f32 %v478, %v484
        %v487 = vadd.f32 %v479, %v484
        %v488 = vld [vmem:[%s3] sm:$0xff]
        %v489 = vld [vmem:[%s3 + $0x8] sm:$0xff]
        %v490 = vld [vmem:[%s3 + $0x10] sm:$0xff]
        %v491 = vld [vmem:[%s3 + $0x18] sm:$0xff]
        %v492 = vpack.c.bf16 %v487, %v486
        %v493 = vpack.c.bf16 %v489, %v488
        %v494 = vpack.c.bf16 %v491, %v490
        %v495 = vld [vmem:[%s4] sm:$0x1]
        %v497 = vlaneseq
        %v498 = vshrl.u32 %v497, 7
        %v499 = vsub.s32 0, %v498
        %v500 = vrot.slane %v495, %v499
        %v503 = vsel %vm444, %v492, 0
        %505 = vmatprep.subr.bf16.mxu0 0
        %506 = vmatpush1.bf16.msra.mxu0 %v493
        %507 = vmatprep.subr.bf16.mxu0 0
        %508 = vmatpush1.bf16.msra.mxu0 %v494
        %509 = vmatprep.subr.bf16.mxu0 0
        %510 = vmatpush1.bf16.msra.mxu0 0
        %511 = vmatprep.subr.bf16.mxu0 0
        %512 = vmatpush1.bf16.msra.mxu0 0
        %513 = vmatprep.subr.bf16.mxu0 0
        %514 = vmatpush1.bf16.msra.mxu0 0
        %515 = vmatprep.subr.bf16.mxu0 0
        %516 = vmatpush1.bf16.msra.mxu0 0
        %517 = vmatprep.subr.bf16.mxu0 0
        %518 = vmatpush1.bf16.msra.mxu0 0
        %519 = vmatprep.subr.bf16.mxu0 0
        %520 = vmatpush1.bf16.msra.mxu0 0
        %521 = vmatprep.subr.bf16.mxu0 0
        %522 = vmatpush1.bf16.msra.mxu0 0
        %523 = vmatprep.subr.bf16.mxu0 0
        %524 = vmatpush1.bf16.msra.mxu0 0
        %525 = vmatprep.subr.bf16.mxu0 0
        %526 = vmatpush1.bf16.msra.mxu0 0
        %527 = vmatprep.subr.bf16.mxu0 0
        %528 = vmatpush1.bf16.msra.mxu0 0
        %529 = vmatprep.subr.bf16.mxu0 0
        %530 = vmatpush1.bf16.msra.mxu0 0
        %531 = vmatprep.subr.bf16.mxu0 0
        %532 = vmatpush1.bf16.msra.mxu0 0
        %533 = vmatprep.subr.bf16.mxu0 0
        %534 = vmatpush1.bf16.msra.mxu0 0
        %535 = vmatprep.subr.bf16.mxu0 0
        %536 = vmatpush1.bf16.msra.mxu0 0
        %537 = vmatprep.mubr.bf16.mxu0 0
        %538 = vmatmul.mubr.bf16.gmra.mrb[0].mxu0 %v503
        %v539 = vpop.f32.mrb[0].mxu0
        %v540 = vadd.f32 %v500, %v539
        %v541 = vpop.f32.mrb[0].mxu0
        %v542 = vpop.f32.mrb[0].mxu0
        %v543 = vadd.f32 %v500, %v542
        %v544 = vpop.f32.mrb[0].mxu0
        %545 = vdwg.mxu0
        %v546 = vld [vmem:[%s5] sm:$0xff]
        %v547 = vld [vmem:[%s5 + $0x8] sm:$0xff]
        %v548 = vld [vmem:[%s5 + $0x10] sm:$0xff]
        %v549 = vld [vmem:[%s5 + $0x18] sm:$0xff]
        %v550 = vpack.c.bf16 %v543, %v540
        %552 = vrot.lane.b32.xlu0 %v550, 96
        %v553 = vpop.permute.xlu0 %552
        %vm554 = vcmask 64512
        %v556 = vsel %vm554, %v550, 0
        %v559 = vsel %vm554, %v553, 0
        %561 = vmatprep.subr.bf16.mxu0 0
        %562 = vmatpush1.bf16.xpose.msra.mxu0 %v559
        %563 = vmatprep.subr.bf16.mxu0 0
        %564 = vmatpush1.bf16.xpose.msra.mxu0 0
        %565 = vmatprep.subr.bf16.mxu0 0
        %566 = vmatpush1.bf16.xpose.msra.mxu0 0
        %567 = vmatprep.subr.bf16.mxu0 0
        %568 = vmatpush1.bf16.xpose.msra.mxu0 0
        %569 = vmatprep.subr.bf16.mxu0 0
        %570 = vmatpush1.bf16.xpose.msra.mxu0 0
        %571 = vmatprep.subr.bf16.mxu0 0
        %572 = vmatpush1.bf16.xpose.msra.mxu0 0
        %573 = vmatprep.subr.bf16.mxu0 0
        %574 = vmatpush1.bf16.xpose.msra.mxu0 0
        %575 = vmatprep.subr.bf16.mxu0 0
        %576 = vmatpush1.bf16.xpose.msra.mxu0 0
        %577 = vmatprep.subr.bf16.mxu0 0
        %578 = vmatpush1.bf16.xpose.msra.mxu0 0
        %579 = vmatprep.subr.bf16.mxu0 0
        %580 = vmatpush1.bf16.xpose.msra.mxu0 0
        %581 = vmatprep.subr.bf16.mxu0 0
        %582 = vmatpush1.bf16.xpose.msra.mxu0 0
        %583 = vmatprep.subr.bf16.mxu0 0
        %584 = vmatpush1.bf16.xpose.msra.mxu0 0
        %585 = vmatprep.subr.bf16.mxu0 0
        %586 = vmatpush1.bf16.xpose.msra.mxu0 0
        %587 = vmatprep.subr.bf16.mxu0 0
        %588 = vmatpush1.bf16.xpose.msra.mxu0 0
        %589 = vmatprep.subr.bf16.mxu0 0
        %590 = vmatpush1.bf16.xpose.msra.mxu0 0
        %591 = vmatprep.subr.bf16.mxu0 0
        %592 = vmatpush1.bf16.xpose.msra.mxu0 0
        %593 = vmatprep.mubr.bf16.mxu0 0
        %594 = vmatmul.mubr.bf16.gmra.mrb[0].mxu0 %v556
        %v595 = vpop.f32.mrb[0].mxu0
        %v596 = vadd.f32 0.0, %v595
        %v597 = vpop.f32.mrb[0].mxu0
        %v598 = vpop.f32.mrb[0].mxu0
        %v599 = vadd.f32 0.0, %v598
        %v600 = vpop.f32.mrb[0].mxu0
        %601 = vdwg.mxu0
        %v602 = vmul.f32 %v596, 0.35355338
        %v603 = vmul.f32 %v599, 0.35355338
        %vm604 = vcmask 130048
        %v605 = vsel %vm604, %v602, -inf
        %606 = vmax.xlane.f32.xlu0 %v605
        %v607 = vpop.xlane.xlu0 %606
        %v608 = vsel %vm604, %v603, -inf
        %609 = vmax.xlane.f32.xlu0 %v608
        %v610 = vpop.xlane.xlu0 %609
        %v611 = vsub.f32 %v602, %v607
        %v612 = vsub.f32 %v603, %v610
        %v613 = vmul.f32 %v611, 1.442695
        %v614 = vpow.pop %v613
        %v615 = vmul.f32 %v612, 1.442695
        %v616 = vpow.pop %v615
        %v617 = vsel %vm604, %v614, 0.0
        %618 = vadd.xlane.f32.xlu0 %v617
        %v619 = vpop.xlane.xlu0 %618
        %v620 = vsel %vm604, %v616, 0.0
        %621 = vadd.xlane.f32.xlu0 %v620
        %v622 = vpop.xlane.xlu0 %621
        %v623 = vrcp.pop %v619
        %v624 = vrcp.pop %v622
        %v625 = vmul.f32 %v614, %v623
        %v626 = vmul.f32 %v616, %v624
        %v627 = vpack.c.bf16 %v626, %v625
        %628 = vrot.lane.b32.xlu0 %v550, 64
        %v629 = vpop.permute.xlu0 %628
        %v632 = vsel %vm604, %v627, 0
        %634 = vmatprep.subr.bf16.mxu0 0
        %635 = vmatpush1.bf16.msra.mxu0 %v629
        %636 = vmatprep.subr.bf16.mxu0 0
        %637 = vmatpush1.bf16.msra.mxu0 0
        %638 = vmatprep.subr.bf16.mxu0 0
        %639 = vmatpush1.bf16.msra.mxu0 0
        %640 = vmatprep.subr.bf16.mxu0 0
        %641 = vmatpush1.bf16.msra.mxu0 0
        %642 = vmatprep.subr.bf16.mxu0 0
        %643 = vmatpush1.bf16.msra.mxu0 0
        %644 = vmatprep.subr.bf16.mxu0 0
        %645 = vmatpush1.bf16.msra.mxu0 0
        %646 = vmatprep.subr.bf16.mxu0 0
        %647 = vmatpush1.bf16.msra.mxu0 0
        %648 = vmatprep.subr.bf16.mxu0 0
        %649 = vmatpush1.bf16.msra.mxu0 0
        %650 = vmatprep.subr.bf16.mxu0 0
        %651 = vmatpush1.bf16.msra.mxu0 0
        %652 = vmatprep.subr.bf16.mxu0 0
        %653 = vmatpush1.bf16.msra.mxu0 0
        %654 = vmatprep.subr.bf16.mxu0 0
        %655 = vmatpush1.bf16.msra.mxu0 0
        %656 = vmatprep.subr.bf16.mxu0 0
        %657 = vmatpush1.bf16.msra.mxu0 0
        %658 = vmatprep.subr.bf16.mxu0 0
        %659 = vmatpush1.bf16.msra.mxu0 0
        %660 = vmatprep.subr.bf16.mxu0 0
        %661 = vmatpush1.bf16.msra.mxu0 0
        %662 = vmatprep.subr.bf16.mxu0 0
        %663 = vmatpush1.bf16.msra.mxu0 0
        %664 = vmatprep.subr.bf16.mxu0 0
        %665 = vmatpush1.bf16.msra.mxu0 0
        %666 = vmatprep.mubr.bf16.mxu0 0
        %667 = vmatmul.mubr.bf16.gmra.mrb[0].mxu0 %v632
        %v668 = vpop.f32.mrb[0].mxu0
        %v669 = vadd.f32 0.0, %v668
        %v670 = vpop.f32.mrb[0].mxu0
        %v671 = vpop.f32.mrb[0].mxu0
        %v672 = vadd.f32 0.0, %v671
        %v673 = vpop.f32.mrb[0].mxu0
        %674 = vdwg.mxu0
        %v675 = vpack.c.bf16 %v672, %v669
        %v676 = vpack.c.bf16 %v546, %v546
        %677 = vrot.lane.b32.xlu0 %v550, 120
        %v678 = vpop.permute.xlu0 %677
        %679 = vrot.lane.b32.xlu0 %v550, 88
        %v680 = vpop.permute.xlu0 %679
        %v682 = vsel %vm554, %v678, 0
        %v685 = vsel %vm554, %v680, 0
        %687 = vmatprep.subr.bf16.mxu0 0
        %688 = vmatpush1.bf16.xpose.msra.mxu0 %v685
        %689 = vmatprep.subr.bf16.mxu0 0
        %690 = vmatpush1.bf16.xpose.msra.mxu0 0
        %691 = vmatprep.subr.bf16.mxu0 0
        %692 = vmatpush1.bf16.xpose.msra.mxu0 0
        %693 = vmatprep.subr.bf16.mxu0 0
        %694 = vmatpush1.bf16.xpose.msra.mxu0 0
        %695 = vmatprep.subr.bf16.mxu0 0
        %696 = vmatpush1.bf16.xpose.msra.mxu0 0
        %697 = vmatprep.subr.bf16.mxu0 0
        %698 = vmatpush1.bf16.xpose.msra.mxu0 0
        %699 = vmatprep.subr.bf16.mxu0 0
        %700 = vmatpush1.bf16.xpose.msra.mxu0 0
        %701 = vmatprep.subr.bf16.mxu0 0
        %702 = vmatpush1.bf16.xpose.msra.mxu0 0
        %703 = vmatprep.subr.bf16.mxu0 0
        %704 = vmatpush1.bf16.xpose.msra.mxu0 0
        %705 = vmatprep.subr.bf16.mxu0 0
        %706 = vmatpush1.bf16.xpose.msra.mxu0 0
        %707 = vmatprep.subr.bf16.mxu0 0
        %708 = vmatpush1.bf16.xpose.msra.mxu0 0
        %709 = vmatprep.subr.bf16.mxu0 0
        %710 = vmatpush1.bf16.xpose.msra.mxu0 0
        %711 = vmatprep.subr.bf16.mxu0 0
        %712 = vmatpush1.bf16.xpose.msra.mxu0 0
        %713 = vmatprep.subr.bf16.mxu0 0
        %714 = vmatpush1.bf16.xpose.msra.mxu0 0
        %715 = vmatprep.subr.bf16.mxu0 0
        %716 = vmatpush1.bf16.xpose.msra.mxu0 0
        %717 = vmatprep.subr.bf16.mxu0 0
        %718 = vmatpush1.bf16.xpose.msra.mxu0 0
        %719 = vmatprep.mubr.bf16.mxu0 0
        %720 = vmatmul.mubr.bf16.gmra.mrb[0].mxu0 %v682
        %v721 = vpop.f32.mrb[0].mxu0
        %v722 = vadd.f32 0.0, %v721
        %v723 = vpop.f32.mrb[0].mxu0
        %v724 = vpop.f32.mrb[0].mxu0
        %v725 = vadd.f32 0.0, %v724
        %v726 = vpop.f32.mrb[0].mxu0
        %727 = vdwg.mxu0
        %v728 = vmul.f32 %v722, 0.35355338
        %v729 = vmul.f32 %v725, 0.35355338
        %v730 = vsel %vm604, %v728, -inf
        %731 = vmax.xlane.f32.xlu0 %v730
        %v732 = vpop.xlane.xlu0 %731
        %v733 = vsel %vm604, %v729, -inf
        %734 = vmax.xlane.f32.xlu0 %v733
        %v735 = vpop.xlane.xlu0 %734
        %v736 = vsub.f32 %v728, %v732
        %v737 = vsub.f32 %v729, %v735
        %v738 = vmul.f32 %v736, 1.442695
        %v739 = vpow.pop %v738
        %v740 = vmul.f32 %v737, 1.442695
        %v741 = vpow.pop %v740
        %v742 = vsel %vm604, %v739, 0.0
        %743 = vadd.xlane.f32.xlu0 %v742
        %v744 = vpop.xlane.xlu0 %743
        %v745 = vsel %vm604, %v741, 0.0
        %746 = vadd.xlane.f32.xlu0 %v745
        %v747 = vpop.xlane.xlu0 %746
        %v748 = vrcp.pop %v744
        %v749 = vrcp.pop %v747
        %v750 = vmul.f32 %v739, %v748
        %v751 = vmul.f32 %v741, %v749
        %v752 = vpack.c.bf16 %v751, %v750
        %753 = vrot.lane.b32.xlu0 %v550, 56
        %v754 = vpop.permute.xlu0 %753
        %v757 = vsel %vm604, %v752, 0
        %759 = vmatprep.subr.bf16.mxu0 0
        %760 = vmatpush1.bf16.msra.mxu0 %v754
        %761 = vmatprep.subr.bf16.mxu0 0
        %762 = vmatpush1.bf16.msra.mxu0 0
        %763 = vmatprep.subr.bf16.mxu0 0
        %764 = vmatpush1.bf16.msra.mxu0 0
        %765 = vmatprep.subr.bf16.mxu0 0
        %766 = vmatpush1.bf16.msra.mxu0 0
        %767 = vmatprep.subr.bf16.mxu0 0
        %768 = vmatpush1.bf16.msra.mxu0 0
        %769 = vmatprep.subr.bf16.mxu0 0
        %770 = vmatpush1.bf16.msra.mxu0 0
        %771 = vmatprep.subr.bf16.mxu0 0
        %772 = vmatpush1.bf16.msra.mxu0 0
        %773 = vmatprep.subr.bf16.mxu0 0
        %774 = vmatpush1.bf16.msra.mxu0 0
        %775 = vmatprep.subr.bf16.mxu0 0
        %776 = vmatpush1.bf16.msra.mxu0 0
        %777 = vmatprep.subr.bf16.mxu0 0
        %778 = vmatpush1.bf16.msra.mxu0 0
        %779 = vmatprep.subr.bf16.mxu0 0
        %780 = vmatpush1.bf16.msra.mxu0 0
        %781 = vmatprep.subr.bf16.mxu0 0
        %782 = vmatpush1.bf16.msra.mxu0 0
        %783 = vmatprep.subr.bf16.mxu0 0
        %784 = vmatpush1.bf16.msra.mxu0 0
        %785 = vmatprep.subr.bf16.mxu0 0
        %786 = vmatpush1.bf16.msra.mxu0 0
        %787 = vmatprep.subr.bf16.mxu0 0
        %788 = vmatpush1.bf16.msra.mxu0 0
        %789 = vmatprep.subr.bf16.mxu0 0
        %790 = vmatpush1.bf16.msra.mxu0 0
        %791 = vmatprep.mubr.bf16.mxu0 0
        %792 = vmatmul.mubr.bf16.gmra.mrb[0].mxu0 %v757
        %v793 = vpop.f32.mrb[0].mxu0
        %v794 = vadd.f32 0.0, %v793
        %v795 = vpop.f32.mrb[0].mxu0
        %v796 = vpop.f32.mrb[0].mxu0
        %v797 = vadd.f32 0.0, %v796
        %v798 = vpop.f32.mrb[0].mxu0
        %799 = vdwg.mxu0
        %v800 = vpack.c.bf16 %v797, %v794
        %v801 = vpack.c.bf16 %v547, %v547
        %v803 = vsel %vm554, %v800, 0
        %vm805 = vcmask 1043456
        %v807 = vsel %vm805, %v801, 0
        %809 = vmatprep.subr.bf16.mxu0 0
        %810 = vmatpush1.bf16.msra.mxu0 %v807
        %811 = vmatprep.subr.bf16.mxu0 0
        %812 = vmatpush1.bf16.msra.mxu0 0
        %813 = vmatprep.subr.bf16.mxu0 0
        %814 = vmatpush1.bf16.msra.mxu0 0
        %815 = vmatprep.subr.bf16.mxu0 0
        %816 = vmatpush1.bf16.msra.mxu0 0
        %817 = vmatprep.subr.bf16.mxu0 0
        %818 = vmatpush1.bf16.msra.mxu0 0
        %819 = vmatprep.subr.bf16.mxu0 0
        %820 = vmatpush1.bf16.msra.mxu0 0
        %821 = vmatprep.subr.bf16.mxu0 0
        %822 = vmatpush1.bf16.msra.mxu0 0
        %823 = vmatprep.subr.bf16.mxu0 0
        %824 = vmatpush1.bf16.msra.mxu0 0
        %825 = vmatprep.subr.bf16.mxu0 0
        %826 = vmatpush1.bf16.msra.mxu0 0
        %827 = vmatprep.subr.bf16.mxu0 0
        %828 = vmatpush1.bf16.msra.mxu0 0
        %829 = vmatprep.subr.bf16.mxu0 0
        %830 = vmatpush1.bf16.msra.mxu0 0
        %831 = vmatprep.subr.bf16.mxu0 0
        %832 = vmatpush1.bf16.msra.mxu0 0
        %833 = vmatprep.subr.bf16.mxu0 0
        %834 = vmatpush1.bf16.msra.mxu0 0
        %835 = vmatprep.subr.bf16.mxu0 0
        %836 = vmatpush1.bf16.msra.mxu0 0
        %837 = vmatprep.subr.bf16.mxu0 0
        %838 = vmatpush1.bf16.msra.mxu0 0
        %839 = vmatprep.subr.bf16.mxu0 0
        %840 = vmatpush1.bf16.msra.mxu0 0
        %841 = vmatprep.mubr.bf16.mxu0 0
        %842 = vmatmul.mubr.bf16.gmra.mrb[0].mxu0 %v803
        %v843 = vpop.f32.mrb[0].mxu0
        %v844 = vadd.f32 0.0, %v843
        %v845 = vpop.f32.mrb[0].mxu0
        %v846 = vpop.f32.mrb[0].mxu0
        %v847 = vadd.f32 0.0, %v846
        %v848 = vpop.f32.mrb[0].mxu0
        %849 = vdwg.mxu0
        %v851 = vsel %vm554, %v675, 0
        %v854 = vsel %vm805, %v676, 0
        %856 = vmatprep.subr.bf16.mxu0 0
        %857 = vmatpush1.bf16.msra.mxu0 %v854
        %858 = vmatprep.subr.bf16.mxu0 0
        %859 = vmatpush1.bf16.msra.mxu0 0
        %860 = vmatprep.subr.bf16.mxu0 0
        %861 = vmatpush1.bf16.msra.mxu0 0
        %862 = vmatprep.subr.bf16.mxu0 0
        %863 = vmatpush1.bf16.msra.mxu0 0
        %864 = vmatprep.subr.bf16.mxu0 0
        %865 = vmatpush1.bf16.msra.mxu0 0
        %866 = vmatprep.subr.bf16.mxu0 0
        %867 = vmatpush1.bf16.msra.mxu0 0
        %868 = vmatprep.subr.bf16.mxu0 0
        %869 = vmatpush1.bf16.msra.mxu0 0
        %870 = vmatprep.subr.bf16.mxu0 0
        %871 = vmatpush1.bf16.msra.mxu0 0
        %872 = vmatprep.subr.bf16.mxu0 0
        %873 = vmatpush1.bf16.msra.mxu0 0
        %874 = vmatprep.subr.bf16.mxu0 0
        %875 = vmatpush1.bf16.msra.mxu0 0
        %876 = vmatprep.subr.bf16.mxu0 0
        %877 = vmatpush1.bf16.msra.mxu0 0
        %878 = vmatprep.subr.bf16.mxu0 0
        %879 = vmatpush1.bf16.msra.mxu0 0
        %880 = vmatprep.subr.bf16.mxu0 0
        %881 = vmatpush1.bf16.msra.mxu0 0
        %882 = vmatprep.subr.bf16.mxu0 0
        %883 = vmatpush1.bf16.msra.mxu0 0
        %884 = vmatprep.subr.bf16.mxu0 0
        %885 = vmatpush1.bf16.msra.mxu0 0
        %886 = vmatprep.subr.bf16.mxu0 0
        %887 = vmatpush1.bf16.msra.mxu0 0
        %888 = vmatprep.mubr.bf16.mxu0 0
        %889 = vmatmul.mubr.bf16.gmra.mrb[0].mxu0 %v851
        %v890 = vpop.f32.mrb[0].mxu0
        %v891 = vadd.f32 %v844, %v890
        %v892 = vpop.f32.mrb[0].mxu0
        %v893 = vpop.f32.mrb[0].mxu0
        %v894 = vadd.f32 %v847, %v893
        %v895 = vpop.f32.mrb[0].mxu0
        %896 = vdwg.mxu0
        %897 = vrot.lane.b32.xlu0 %v550, 112
        %v898 = vpop.permute.xlu0 %897
        %899 = vrot.lane.b32.xlu0 %v550, 80
        %v900 = vpop.permute.xlu0 %899
        %v902 = vsel %vm554, %v898, 0
        %v905 = vsel %vm554, %v900, 0
        %907 = vmatprep.subr.bf16.mxu0 0
        %908 = vmatpush1.bf16.xpose.msra.mxu0 %v905
        %909 = vmatprep.subr.bf16.mxu0 0
        %910 = vmatpush1.bf16.xpose.msra.mxu0 0
        %911 = vmatprep.subr.bf16.mxu0 0
        %912 = vmatpush1.bf16.xpose.msra.mxu0 0
        %913 = vmatprep.subr.bf16.mxu0 0
        %914 = vmatpush1.bf16.xpose.msra.mxu0 0
        %915 = vmatprep.subr.bf16.mxu0 0
        %916 = vmatpush1.bf16.xpose.msra.mxu0 0
        %917 = vmatprep.subr.bf16.mxu0 0
        %918 = vmatpush1.bf16.xpose.msra.mxu0 0
        %919 = vmatprep.subr.bf16.mxu0 0
        %920 = vmatpush1.bf16.xpose.msra.mxu0 0
        %921 = vmatprep.subr.bf16.mxu0 0
        %922 = vmatpush1.bf16.xpose.msra.mxu0 0
        %923 = vmatprep.subr.bf16.mxu0 0
        %924 = vmatpush1.bf16.xpose.msra.mxu0 0
        %925 = vmatprep.subr.bf16.mxu0 0
        %926 = vmatpush1.bf16.xpose.msra.mxu0 0
        %927 = vmatprep.subr.bf16.mxu0 0
        %928 = vmatpush1.bf16.xpose.msra.mxu0 0
        %929 = vmatprep.subr.bf16.mxu0 0
        %930 = vmatpush1.bf16.xpose.msra.mxu0 0
        %931 = vmatprep.subr.bf16.mxu0 0
        %932 = vmatpush1.bf16.xpose.msra.mxu0 0
        %933 = vmatprep.subr.bf16.mxu0 0
        %934 = vmatpush1.bf16.xpose.msra.mxu0 0
        %935 = vmatprep.subr.bf16.mxu0 0
        %936 = vmatpush1.bf16.xpose.msra.mxu0 0
        %937 = vmatprep.subr.bf16.mxu0 0
        %938 = vmatpush1.bf16.xpose.msra.mxu0 0
        %939 = vmatprep.mubr.bf16.mxu0 0
        %940 = vmatmul.mubr.bf16.gmra.mrb[0].mxu0 %v902
        %v941 = vpop.f32.mrb[0].mxu0
        %v942 = vadd.f32 0.0, %v941
        %v943 = vpop.f32.mrb[0].mxu0
        %v944 = vpop.f32.mrb[0].mxu0
        %v945 = vadd.f32 0.0, %v944
        %v946 = vpop.f32.mrb[0].mxu0
        %947 = vdwg.mxu0
        %v948 = vmul.f32 %v942, 0.35355338
        %v949 = vmul.f32 %v945, 0.35355338
        %v950 = vsel %vm604, %v948, -inf
        %951 = vmax.xlane.f32.xlu0 %v950
        %v952 = vpop.xlane.xlu0 %951
        %v953 = vsel %vm604, %v949, -inf
        %954 = vmax.xlane.f32.xlu0 %v953
        %v955 = vpop.xlane.xlu0 %954
        %v956 = vsub.f32 %v948, %v952
        %v957 = vsub.f32 %v949, %v955
        %v958 = vmul.f32 %v956, 1.442695
        %v959 = vpow.pop %v958
        %v960 = vmul.f32 %v957, 1.442695
        %v961 = vpow.pop %v960
        %v962 = vsel %vm604, %v959, 0.0
        %963 = vadd.xlane.f32.xlu0 %v962
        %v964 = vpop.xlane.xlu0 %963
        %v965 = vsel %vm604, %v961, 0.0
        %966 = vadd.xlane.f32.xlu0 %v965
        %v967 = vpop.xlane.xlu0 %966
        %v968 = vrcp.pop %v964
        %v969 = vrcp.pop %v967
        %v970 = vmul.f32 %v959, %v968
        %v971 = vmul.f32 %v961, %v969
        %v972 = vpack.c.bf16 %v971, %v970
        %973 = vrot.lane.b32.xlu0 %v550, 48
        %v974 = vpop.permute.xlu0 %973
        %v977 = vsel %vm604, %v972, 0
        %979 = vmatprep.subr.bf16.mxu0 0
        %980 = vmatpush1.bf16.msra.mxu0 %v974
        %981 = vmatprep.subr.bf16.mxu0 0
        %982 = vmatpush1.bf16.msra.mxu0 0
        %983 = vmatprep.subr.bf16.mxu0 0
        %984 = vmatpush1.bf16.msra.mxu0 0
        %985 = vmatprep.subr.bf16.mxu0 0
        %986 = vmatpush1.bf16.msra.mxu0 0
        %987 = vmatprep.subr.bf16.mxu0 0
        %988 = vmatpush1.bf16.msra.mxu0 0
        %989 = vmatprep.subr.bf16.mxu0 0
        %990 = vmatpush1.bf16.msra.mxu0 0
        %991 = vmatprep.subr.bf16.mxu0 0
        %992 = vmatpush1.bf16.msra.mxu0 0
        %993 = vmatprep.subr.bf16.mxu0 0
        %994 = vmatpush1.bf16.msra.mxu0 0
        %995 = vmatprep.subr.bf16.mxu0 0
        %996 = vmatpush1.bf16.msra.mxu0 0
        %997 = vmatprep.subr.bf16.mxu0 0
        %998 = vmatpush1.bf16.msra.mxu0 0
        %999 = vmatprep.subr.bf16.mxu0 0
        %1000 = vmatpush1.bf16.msra.mxu0 0
        %1001 = vmatprep.subr.bf16.mxu0 0
        %1002 = vmatpush1.bf16.msra.mxu0 0
        %1003 = vmatprep.subr.bf16.mxu0 0
        %1004 = vmatpush1.bf16.msra.mxu0 0
        %1005 = vmatprep.subr.bf16.mxu0 0
        %1006 = vmatpush1.bf16.msra.mxu0 0
        %1007 = vmatprep.subr.bf16.mxu0 0
        %1008 = vmatpush1.bf16.msra.mxu0 0
        %1009 = vmatprep.subr.bf16.mxu0 0
        %1010 = vmatpush1.bf16.msra.mxu0 0
        %1011 = vmatprep.mubr.bf16.mxu0 0
        %1012 = vmatmul.mubr.bf16.gmra.mrb[0].mxu0 %v977
        %v1013 = vpop.f32.mrb[0].mxu0
        %v1014 = vadd.f32 0.0, %v1013
        %v1015 = vpop.f32.mrb[0].mxu0
        %v1016 = vpop.f32.mrb[0].mxu0
        %v1017 = vadd.f32 0.0, %v1016
        %v1018 = vpop.f32.mrb[0].mxu0
        %1019 = vdwg.mxu0
        %v1020 = vpack.c.bf16 %v1017, %v1014
        %v1021 = vpack.c.bf16 %v548, %v548
        %v1023 = vsel %vm554, %v1020, 0
        %v1026 = vsel %vm805, %v1021, 0
        %1028 = vmatprep.subr.bf16.mxu0 0
        %1029 = vmatpush1.bf16.msra.mxu0 %v1026
        %1030 = vmatprep.subr.bf16.mxu0 0
        %1031 = vmatpush1.bf16.msra.mxu0 0
        %1032 = vmatprep.subr.bf16.mxu0 0
        %1033 = vmatpush1.bf16.msra.mxu0 0
        %1034 = vmatprep.subr.bf16.mxu0 0
        %1035 = vmatpush1.bf16.msra.mxu0 0
        %1036 = vmatprep.subr.bf16.mxu0 0
        %1037 = vmatpush1.bf16.msra.mxu0 0
        %1038 = vmatprep.subr.bf16.mxu0 0
        %1039 = vmatpush1.bf16.msra.mxu0 0
        %1040 = vmatprep.subr.bf16.mxu0 0
        %1041 = vmatpush1.bf16.msra.mxu0 0
        %1042 = vmatprep.subr.bf16.mxu0 0
        %1043 = vmatpush1.bf16.msra.mxu0 0
        %1044 = vmatprep.subr.bf16.mxu0 0
        %1045 = vmatpush1.bf16.msra.mxu0 0
        %1046 = vmatprep.subr.bf16.mxu0 0
        %1047 = vmatpush1.bf16.msra.mxu0 0
        %1048 = vmatprep.subr.bf16.mxu0 0
        %1049 = vmatpush1.bf16.msra.mxu0 0
        %1050 = vmatprep.subr.bf16.mxu0 0
        %1051 = vmatpush1.bf16.msra.mxu0 0
        %1052 = vmatprep.subr.bf16.mxu0 0
        %1053 = vmatpush1.bf16.msra.mxu0 0
        %1054 = vmatprep.subr.bf16.mxu0 0
        %1055 = vmatpush1.bf16.msra.mxu0 0
        %1056 = vmatprep.subr.bf16.mxu0 0
        %1057 = vmatpush1.bf16.msra.mxu0 0
        %1058 = vmatprep.subr.bf16.mxu0 0
        %1059 = vmatpush1.bf16.msra.mxu0 0
        %1060 = vmatprep.mubr.bf16.mxu0 0
        %1061 = vmatmul.mubr.bf16.gmra.mrb[0].mxu0 %v1023
        %v1062 = vpop.f32.mrb[0].mxu0
        %v1063 = vadd.f32 0.0, %v1062
        %v1064 = vpop.f32.mrb[0].mxu0
        %v1065 = vpop.f32.mrb[0].mxu0
        %v1066 = vadd.f32 0.0, %v1065
        %v1067 = vpop.f32.mrb[0].mxu0
        %1068 = vdwg.mxu0
        %v1069 = vadd.f32 %v891, %v1063
        %v1070 = vadd.f32 %v894, %v1066
        %1071 = vrot.lane.b32.xlu0 %v550, 104
        %v1072 = vpop.permute.xlu0 %1071
        %1073 = vrot.lane.b32.xlu0 %v550, 72
        %v1074 = vpop.permute.xlu0 %1073
        %v1076 = vsel %vm554, %v1072, 0
        %v1079 = vsel %vm554, %v1074, 0
        %1081 = vmatprep.subr.bf16.mxu0 0
        %1082 = vmatpush1.bf16.xpose.msra.mxu0 %v1079
        %1083 = vmatprep.subr.bf16.mxu0 0
        %1084 = vmatpush1.bf16.xpose.msra.mxu0 0
        %1085 = vmatprep.subr.bf16.mxu0 0
        %1086 = vmatpush1.bf16.xpose.msra.mxu0 0
        %1087 = vmatprep.subr.bf16.mxu0 0
        %1088 = vmatpush1.bf16.xpose.msra.mxu0 0
        %1089 = vmatprep.subr.bf16.mxu0 0
        %1090 = vmatpush1.bf16.xpose.msra.mxu0 0
        %1091 = vmatprep.subr.bf16.mxu0 0
        %1092 = vmatpush1.bf16.xpose.msra.mxu0 0
        %1093 = vmatprep.subr.bf16.mxu0 0
        %1094 = vmatpush1.bf16.xpose.msra.mxu0 0
        %1095 = vmatprep.subr.bf16.mxu0 0
        %1096 = vmatpush1.bf16.xpose.msra.mxu0 0
        %1097 = vmatprep.subr.bf16.mxu0 0
        %1098 = vmatpush1.bf16.xpose.msra.mxu0 0
        %1099 = vmatprep.subr.bf16.mxu0 0
        %1100 = vmatpush1.bf16.xpose.msra.mxu0 0
        %1101 = vmatprep.subr.bf16.mxu0 0
        %1102 = vmatpush1.bf16.xpose.msra.mxu0 0
        %1103 = vmatprep.subr.bf16.mxu0 0
        %1104 = vmatpush1.bf16.xpose.msra.mxu0 0
        %1105 = vmatprep.subr.bf16.mxu0 0
        %1106 = vmatpush1.bf16.xpose.msra.mxu0 0
        %1107 = vmatprep.subr.bf16.mxu0 0
        %1108 = vmatpush1.bf16.xpose.msra.mxu0 0
        %1109 = vmatprep.subr.bf16.mxu0 0
        %1110 = vmatpush1.bf16.xpose.msra.mxu0 0
        %1111 = vmatprep.subr.bf16.mxu0 0
        %1112 = vmatpush1.bf16.xpose.msra.mxu0 0
        %1113 = vmatprep.mubr.bf16.mxu0 0
        %1114 = vmatmul.mubr.bf16.gmra.mrb[0].mxu0 %v1076
        %v1115 = vpop.f32.mrb[0].mxu0
        %v1116 = vadd.f32 0.0, %v1115
        %v1117 = vpop.f32.mrb[0].mxu0
        %v1118 = vpop.f32.mrb[0].mxu0
        %v1119 = vadd.f32 0.0, %v1118
        %v1120 = vpop.f32.mrb[0].mxu0
        %1121 = vdwg.mxu0
        %v1122 = vmul.f32 %v1116, 0.35355338
        %v1123 = vmul.f32 %v1119, 0.35355338
        %v1124 = vsel %vm604, %v1122, -inf
        %1125 = vmax.xlane.f32.xlu0 %v1124
        %v1126 = vpop.xlane.xlu0 %1125
        %v1127 = vsel %vm604, %v1123, -inf
        %1128 = vmax.xlane.f32.xlu0 %v1127
        %v1129 = vpop.xlane.xlu0 %1128
        %v1130 = vsub.f32 %v1122, %v1126
        %v1131 = vsub.f32 %v1123, %v1129
        %v1132 = vmul.f32 %v1130, 1.442695
        %v1133 = vpow.pop %v1132
        %v1134 = vmul.f32 %v1131, 1.442695
        %v1135 = vpow.pop %v1134
        %v1136 = vsel %vm604, %v1133, 0.0
        %1137 = vadd.xlane.f32.xlu0 %v1136
        %v1138 = vpop.xlane.xlu0 %1137
        %v1139 = vsel %vm604, %v1135, 0.0
        %1140 = vadd.xlane.f32.xlu0 %v1139
        %v1141 = vpop.xlane.xlu0 %1140
        %v1142 = vrcp.pop %v1138
        %v1143 = vrcp.pop %v1141
        %v1144 = vmul.f32 %v1133, %v1142
        %v1145 = vmul.f32 %v1135, %v1143
        %v1146 = vpack.c.bf16 %v1145, %v1144
        %1147 = vrot.lane.b32.xlu0 %v550, 40
        %v1148 = vpop.permute.xlu0 %1147
        %v1151 = vsel %vm604, %v1146, 0
        %1153 = vmatprep.subr.bf16.mxu0 0
        %1154 = vmatpush1.bf16.msra.mxu0 %v1148
        %1155 = vmatprep.subr.bf16.mxu0 0
        %1156 = vmatpush1.bf16.msra.mxu0 0
        %1157 = vmatprep.subr.bf16.mxu0 0
        %1158 = vmatpush1.bf16.msra.mxu0 0
        %1159 = vmatprep.subr.bf16.mxu0 0
        %1160 = vmatpush1.bf16.msra.mxu0 0
        %1161 = vmatprep.subr.bf16.mxu0 0
        %1162 = vmatpush1.bf16.msra.mxu0 0
        %1163 = vmatprep.subr.bf16.mxu0 0
        %1164 = vmatpush1.bf16.msra.mxu0 0
        %1165 = vmatprep.subr.bf16.mxu0 0
        %1166 = vmatpush1.bf16.msra.mxu0 0
        %1167 = vmatprep.subr.bf16.mxu0 0
        %1168 = vmatpush1.bf16.msra.mxu0 0
        %1169 = vmatprep.subr.bf16.mxu0 0
        %1170 = vmatpush1.bf16.msra.mxu0 0
        %1171 = vmatprep.subr.bf16.mxu0 0
        %1172 = vmatpush1.bf16.msra.mxu0 0
        %1173 = vmatprep.subr.bf16.mxu0 0
        %1174 = vmatpush1.bf16.msra.mxu0 0
        %1175 = vmatprep.subr.bf16.mxu0 0
        %1176 = vmatpush1.bf16.msra.mxu0 0
        %1177 = vmatprep.subr.bf16.mxu0 0
        %1178 = vmatpush1.bf16.msra.mxu0 0
        %1179 = vmatprep.subr.bf16.mxu0 0
        %1180 = vmatpush1.bf16.msra.mxu0 0
        %1181 = vmatprep.subr.bf16.mxu0 0
        %1182 = vmatpush1.bf16.msra.mxu0 0
        %1183 = vmatprep.subr.bf16.mxu0 0
        %1184 = vmatpush1.bf16.msra.mxu0 0
        %1185 = vmatprep.mubr.bf16.mxu0 0
        %1186 = vmatmul.mubr.bf16.gmra.mrb[0].mxu0 %v1151
        %v1187 = vpop.f32.mrb[0].mxu0
        %v1188 = vadd.f32 0.0, %v1187
        %v1189 = vpop.f32.mrb[0].mxu0
        %v1190 = vpop.f32.mrb[0].mxu0
        %v1191 = vadd.f32 0.0, %v1190
        %v1192 = vpop.f32.mrb[0].mxu0
        %1193 = vdwg.mxu0
        %v1194 = vpack.c.bf16 %v1191, %v1188
        %v1195 = vpack.c.bf16 %v549, %v549
        %v1197 = vsel %vm554, %v1194, 0
        %v1200 = vsel %vm805, %v1195, 0
        %1202 = vmatprep.subr.bf16.mxu0 0
        %1203 = vmatpush1.bf16.msra.mxu0 %v1200
        %1204 = vmatprep.subr.bf16.mxu0 0
        %1205 = vmatpush1.bf16.msra.mxu0 0
        %1206 = vmatprep.subr.bf16.mxu0 0
        %1207 = vmatpush1.bf16.msra.mxu0 0
        %1208 = vmatprep.subr.bf16.mxu0 0
        %1209 = vmatpush1.bf16.msra.mxu0 0
        %1210 = vmatprep.subr.bf16.mxu0 0
        %1211 = vmatpush1.bf16.msra.mxu0 0
        %1212 = vmatprep.subr.bf16.mxu0 0
        %1213 = vmatpush1.bf16.msra.mxu0 0
        %1214 = vmatprep.subr.bf16.mxu0 0
        %1215 = vmatpush1.bf16.msra.mxu0 0
        %1216 = vmatprep.subr.bf16.mxu0 0
        %1217 = vmatpush1.bf16.msra.mxu0 0
        %1218 = vmatprep.subr.bf16.mxu0 0
        %1219 = vmatpush1.bf16.msra.mxu0 0
        %1220 = vmatprep.subr.bf16.mxu0 0
        %1221 = vmatpush1.bf16.msra.mxu0 0
        %1222 = vmatprep.subr.bf16.mxu0 0
        %1223 = vmatpush1.bf16.msra.mxu0 0
        %1224 = vmatprep.subr.bf16.mxu0 0
        %1225 = vmatpush1.bf16.msra.mxu0 0
        %1226 = vmatprep.subr.bf16.mxu0 0
        %1227 = vmatpush1.bf16.msra.mxu0 0
        %1228 = vmatprep.subr.bf16.mxu0 0
        %1229 = vmatpush1.bf16.msra.mxu0 0
        %1230 = vmatprep.subr.bf16.mxu0 0
        %1231 = vmatpush1.bf16.msra.mxu0 0
        %1232 = vmatprep.subr.bf16.mxu0 0
        %1233 = vmatpush1.bf16.msra.mxu0 0
        %1234 = vmatprep.mubr.bf16.mxu0 0
        %1235 = vmatmul.mubr.bf16.gmra.mrb[0].mxu0 %v1197
        %v1236 = vpop.f32.mrb[0].mxu0
        %v1237 = vadd.f32 0.0, %v1236
        %v1238 = vpop.f32.mrb[0].mxu0
        %v1239 = vpop.f32.mrb[0].mxu0
        %v1240 = vadd.f32 0.0, %v1239
        %v1241 = vpop.f32.mrb[0].mxu0
        %1242 = vdwg.mxu0
        %v1243 = vadd.f32 %v1069, %v1237
        %v1244 = vadd.f32 %v1070, %v1240
        %v1245 = vadd.f32 %v440, %v1243
        %v1246 = vadd.f32 %v441, %v1244
        %v1247 = vld [vmem:[%s6] sm:$0x1]
        %v1249 = vlaneseq
        %v1250 = vshrl.u32 %v1249, 7
        %v1251 = vsub.s32 0, %v1250
        %v1252 = vrot.slane %v1247, %v1251
        %v1254 = vadd.f32 %v1245, %v1252
        %v1255 = vadd.f32 %v1246, %v1252
        %v1256 = vld [vmem:[%s7] sm:$0x1]
        %v1257 = vld [vmem:[%s8] sm:$0x1]
        %v1258 = vsel %vm444, %v1254, 0.0
        %1259 = vadd.xlane.f32.xlu0 %v1258
        %v1260 = vpop.xlane.xlu0 %1259
        %v1261 = vsel %vm444, %v1255, 0.0
        %1262 = vadd.xlane.f32.xlu0 %v1261
        %v1263 = vpop.xlane.xlu0 %1262
        %v1264 = vmul.f32 %v1260, %v451
        %v1265 = vmul.f32 %v1263, %v451
        %v1266 = vsub.f32 %v1254, %v1264
        %v1267 = vsub.f32 %v1255, %v1265
        %v1268 = vmul.f32 %v1266, %v1266
        %v1269 = vmul.f32 %v1267, %v1267
        %v1270 = vsel %vm444, %v1268, 0.0
        %1271 = vadd.xlane.f32.xlu0 %v1270
        %v1272 = vpop.xlane.xlu0 %1271
        %v1273 = vsel %vm444, %v1269, 0.0
        %1274 = vadd.xlane.f32.xlu0 %v1273
        %v1275 = vpop.xlane.xlu0 %1274
        %v1276 = vmul.f32 %v1272, %v451
        %v1277 = vmul.f32 %v1275, %v451
        %v1278 = vadd.f32 %v1276, 1e-05
        %v1279 = vadd.f32 %v1277, 1e-05
        %v1280 = vrsqrt.pop %v1278
        %v1281 = vrsqrt.pop %v1279
        %v1282 = vmul.f32 %v1266, %v1280
        %v1283 = vmul.f32 %v1267, %v1281
        %v1285 = vlaneseq
        %v1286 = vshrl.u32 %v1285, 7
        %v1287 = vsub.s32 0, %v1286
        %v1288 = vrot.slane %v1256, %v1287
        %v1290 = vmul.f32 %v1282, %v1288
        %v1291 = vmul.f32 %v1283, %v1288
        %v1293 = vlaneseq
        %v1294 = vshrl.u32 %v1293, 7
        %v1295 = vsub.s32 0, %v1294
        %v1296 = vrot.slane %v1257, %v1295
        %v1298 = vadd.f32 %v1290, %v1296
        %v1299 = vadd.f32 %v1291, %v1296
        %v1300 = vld [vmem:[%s9] sm:$0xff]
        %v1301 = vld [vmem:[%s9 + $0x8] sm:$0xff]
        %v1302 = vld [vmem:[%s9 + $0x10] sm:$0xff]
        %v1303 = vld [vmem:[%s9 + $0x18] sm:$0xff]
        %v1304 = vpack.c.bf16 %v1299, %v1298
        %v1305 = vpack.c.bf16 %v1301, %v1300
        %v1306 = vpack.c.bf16 %v1303, %v1302
        %v1307 = vld [vmem:[%s10] sm:$0x1]
        %v1309 = vlaneseq
        %v1310 = vshrl.u32 %v1309, 7
        %v1311 = vsub.s32 0, %v1310
        %v1312 = vrot.slane %v1307, %v1311
        %v1315 = vsel %vm444, %v1304, 0
        %1317 = vmatprep.subr.bf16.mxu0 0
        %1318 = vmatpush1.bf16.msra.mxu0 %v1305
        %1319 = vmatprep.subr.bf16.mxu0 0
        %1320 = vmatpush1.bf16.msra.mxu0 %v1306
        %1321 = vmatprep.subr.bf16.mxu0 0
        %1322 = vmatpush1.bf16.msra.mxu0 0
        %1323 = vmatprep.subr.bf16.mxu0 0
        %1324 = vmatpush1.bf16.msra.mxu0 0
        %1325 = vmatprep.subr.bf16.mxu0 0
        %1326 = vmatpush1.bf16.msra.mxu0 0
        %1327 = vmatprep.subr.bf16.mxu0 0
        %1328 = vmatpush1.bf16.msra.mxu0 0
        %1329 = vmatprep.subr.bf16.mxu0 0
        %1330 = vmatpush1.bf16.msra.mxu0 0
        %1331 = vmatprep.subr.bf16.mxu0 0
        %1332 = vmatpush1.bf16.msra.mxu0 0
        %1333 = vmatprep.subr.bf16.mxu0 0
        %1334 = vmatpush1.bf16.msra.mxu0 0
        %1335 = vmatprep.subr.bf16.mxu0 0
        %1336 = vmatpush1.bf16.msra.mxu0 0
        %1337 = vmatprep.subr.bf16.mxu0 0
        %1338 = vmatpush1.bf16.msra.mxu0 0
        %1339 = vmatprep.subr.bf16.mxu0 0
        %1340 = vmatpush1.bf16.msra.mxu0 0
        %1341 = vmatprep.subr.bf16.mxu0 0
        %1342 = vmatpush1.bf16.msra.mxu0 0
        %1343 = vmatprep.subr.bf16.mxu0 0
        %1344 = vmatpush1.bf16.msra.mxu0 0
        %1345 = vmatprep.subr.bf16.mxu0 0
        %1346 = vmatpush1.bf16.msra.mxu0 0
        %1347 = vmatprep.subr.bf16.mxu0 0
        %1348 = vmatpush1.bf16.msra.mxu0 0
        %1349 = vmatprep.mubr.bf16.mxu0 0
        %1350 = vmatmul.mubr.bf16.gmra.mrb[0].mxu0 %v1315
        %v1351 = vpop.f32.mrb[0].mxu0
        %v1352 = vadd.f32 %v1312, %v1351
        %v1353 = vpop.f32.mrb[0].mxu0
        %v1354 = vpop.f32.mrb[0].mxu0
        %v1355 = vadd.f32 %v1312, %v1354
        %v1356 = vpop.f32.mrb[0].mxu0
        %1357 = vdwg.mxu0
        %v1358 = vmul.f32 %v1352, %v1352
        %v1359 = vmul.f32 %v1355, %v1355
        %v1360 = vmul.f32 %v1352, %v1358
        %v1361 = vmul.f32 %v1355, %v1359
        %v1362 = vmul.f32 %v1360, 0.044715
        %v1363 = vmul.f32 %v1361, 0.044715
        %v1364 = vadd.f32 %v1352, %v1362
        %v1365 = vadd.f32 %v1355, %v1363
        %v1366 = vmul.f32 %v1364, 0.7978846
        %v1367 = vmul.f32 %v1365, 0.7978846
        %v1368 = vtanh.pop %v1366
        %v1369 = vtanh.pop %v1367
        %v1370 = vadd.f32 %v1368, 1.0
        %v1371 = vadd.f32 %v1369, 1.0
        %v1372 = vmul.f32 %v1370, 0.5
        %v1373 = vmul.f32 %v1371, 0.5
        %v1374 = vmul.f32 %v1352, %v1372
        %v1375 = vmul.f32 %v1355, %v1373
        %v1376 = vld [vmem:[%s11] sm:$0xff]
        %v1377 = vld [vmem:[%s11 + $0x8] sm:$0xff]
        %v1378 = vld [vmem:[%s11 + $0x10] sm:$0xff]
        %v1379 = vld [vmem:[%s11 + $0x18] sm:$0xff]
        %v1380 = vld [vmem:[%s11 + $0x20] sm:$0xff]
        %v1381 = vld [vmem:[%s11 + $0x28] sm:$0xff]
        %v1382 = vld [vmem:[%s11 + $0x30] sm:$0xff]
        %v1383 = vld [vmem:[%s11 + $0x38] sm:$0xff]
        %v1384 = vpack.c.bf16 %v1375, %v1374
        %v1385 = vpack.c.bf16 %v1377, %v1376
        %v1386 = vpack.c.bf16 %v1379, %v1378
        %v1387 = vpack.c.bf16 %v1381, %v1380
        %v1388 = vpack.c.bf16 %v1383, %v1382
        %v1389 = vld [vmem:[%s12] sm:$0x1]
        %v1391 = vlaneseq
        %v1392 = vshrl.u32 %v1391, 7
        %v1393 = vsub.s32 0, %v1392
        %v1394 = vrot.slane %v1389, %v1393
        %vm1396 = vcmask 523264
        %v1398 = vsel %vm1396, %v1384, 0
        %1400 = vmatprep.subr.bf16.mxu0 0
        %1401 = vmatpush1.bf16.msra.mxu0 %v1385
        %1402 = vmatprep.subr.bf16.mxu0 0
        %1403 = vmatpush1.bf16.msra.mxu0 %v1386
        %1404 = vmatprep.subr.bf16.mxu0 0
        %1405 = vmatpush1.bf16.msra.mxu0 %v1387
        %1406 = vmatprep.subr.bf16.mxu0 0
        %1407 = vmatpush1.bf16.msra.mxu0 %v1388
        %1408 = vmatprep.subr.bf16.mxu0 0
        %1409 = vmatpush1.bf16.msra.mxu0 0
        %1410 = vmatprep.subr.bf16.mxu0 0
        %1411 = vmatpush1.bf16.msra.mxu0 0
        %1412 = vmatprep.subr.bf16.mxu0 0
        %1413 = vmatpush1.bf16.msra.mxu0 0
        %1414 = vmatprep.subr.bf16.mxu0 0
        %1415 = vmatpush1.bf16.msra.mxu0 0
        %1416 = vmatprep.subr.bf16.mxu0 0
        %1417 = vmatpush1.bf16.msra.mxu0 0
        %1418 = vmatprep.subr.bf16.mxu0 0
        %1419 = vmatpush1.bf16.msra.mxu0 0
        %1420 = vmatprep.subr.bf16.mxu0 0
        %1421 = vmatpush1.bf16.msra.mxu0 0
        %1422 = vmatprep.subr.bf16.mxu0 0
        %1423 = vmatpush1.bf16.msra.mxu0 0
        %1424 = vmatprep.subr.bf16.mxu0 0
        %1425 = vmatpush1.bf16.msra.mxu0 0
        %1426 = vmatprep.subr.bf16.mxu0 0
        %1427 = vmatpush1.bf16.msra.mxu0 0
        %1428 = vmatprep.subr.bf16.mxu0 0
        %1429 = vmatpush1.bf16.msra.mxu0 0
        %1430 = vmatprep.subr.bf16.mxu0 0
        %1431 = vmatpush1.bf16.msra.mxu0 0
        %1432 = vmatprep.mubr.bf16.mxu0 0
        %1433 = vmatmul.mubr.bf16.gmra.mrb[0].mxu0 %v1398
        %v1434 = vpop.f32.mrb[0].mxu0
        %v1435 = vadd.f32 %v1394, %v1434
        %v1436 = vpop.f32.mrb[0].mxu0
        %v1437 = vpop.f32.mrb[0].mxu0
        %v1438 = vadd.f32 %v1394, %v1437
        %v1439 = vpop.f32.mrb[0].mxu0
        %1440 = vdwg.mxu0
        %v1441 = vadd.f32 %v1254, %v1435
        %v1442 = vadd.f32 %v1255, %v1438
        %1443 = vst.msk [vmem:[%s433] sm:$0xff] %vm444, %v1441
        %1444 = vst.msk [vmem:[%s433 + $0x8] sm:$0xff] %vm444, %v1442
        %s1445 = sand.u32 %s313, 1
        %s1446 = scalar_lea.sflag [#allocation3], %s1445
        %s1447 = sand.u32 %s313, 1
        %s1448 = smul.addr %s1447, 16
        %s1449 = scalar_lea.vmem [#allocation2], %s1448
        // Predicated region
        $region73: #{_lambda_.5} parent=71 // pred_check
          %p1450 = pneg %p323
        $region74: #{_lambda_.5} parent=71 // pred_check_branch
          %1452 = sbr.rel (%p1450) target = $region76
        $region75: #{_lambda_.5} parent=71 // pred_region
          %s1454 = ssub.s32 256, 256
          %1455 = vsyncadd %s1446, %s1454
          %s1456 = smul.addr %s27, 2
          %s1457 = smul.addr %s1456, 128
          %s1458 = scalar_lea.hbm %s13, %s1457
          %s1459 = sshll.u32 %s1449, 4
          %s1460 = int_to_ptr.vmem [resolvable:$true] %s1459
          %1465 = dma.vmem_to_hbm [thread:$0]  %s1460, 256, %s1458, %s1446, 128, 128, 8
        $region76: #{_lambda_.5} parent=71 // pred_fallthru
          _
      $region72: #{_lambda_.5} parent=5 // pred_fallthru
        _
      %p1466 = scmp.le.s32.totalorder 2, %s22
      // Predicated region
      $region77: #{_lambda_.5} parent=5 // pred_check
        %p1467 = pneg %p1466
      $region78: #{_lambda_.5} parent=5 // pred_check_branch
        %1469 = sbr.rel (%p1467) target = $region80
      $region79: #{_lambda_.5} parent=5 // pred_region
        %s1470 = ssub.s32 %s22, 2
        // Predicated region
        $region81: #{_lambda_.5} parent=79 // pred_check
          %p1471 = pneg %p329
        $region82: #{_lambda_.5} parent=79 // pred_check_branch
          %1473 = sbr.rel (%p1471) target = $region84
        $region83: #{_lambda_.5} parent=79 // pred_region
          %s1474 = sand.u32 %s314, 1
          %s1475 = scalar_lea.sflag [#allocation3], %s1474
          %s1476 = sand.u32 %s314, 1
          %s1477 = smul.addr %s1476, 16
          %s1478 = scalar_lea.vmem [#allocation2], %s1477
          %1479 = dma.done %s1475, 256
        $region84: #{_lambda_.5} parent=79 // pred_fallthru
          _
      $region80: #{_lambda_.5} parent=5 // pred_fallthru
        _
    $region6: #{_lambda_.5} parent=1 // loop_footer
      %s26 = sadd.s32 1, %s22
    $region7: #{_lambda_.5} parent=1 // loop_footer_branch
      %21 = sbr.rel target = $region3
    $region8: #{_lambda_.5} parent=1 // loop_exit
      _
    %1480 = vsyncpa [#allocation3], 1
    %s1481 = scalar_lea.sflag [#allocation3], 1
    %1482 = vsyncpa %s1481, 1

</llo_original>
